<compile_context>
chip_gen: v7x
topology: tpu7x:2x2x1
jax: 0.10.0
libtpu: 0.0.40
codegen_flags: <defaults>
</compile_context>

<pallas_src>
import functools

import jax
import jax.numpy as jnp
from jax.experimental import pallas as pl
from jax.experimental.pallas import tpu as pltpu


# Conv geometry fixed by the PyTorch module.
_K1, _S1 = 8, 4
_K2, _S2 = 4, 2
_K3, _S3 = 3, 1


# ----------------------------------------------------------------------------
# Fused Pallas kernel: conv1 GEMM -> conv2 -> conv3 -> flatten -> fc1 -> fc2
# (bias + ReLU after every layer, exactly like DConv.forward).
# One grid step processes `nb` samples; weights use constant index maps.
# ----------------------------------------------------------------------------
def _dconv_fused_kernel(a1_ref, w1_ref, b1_ref, w2_ref, b2_ref, w3_ref, b3_ref,
                        wf1_ref, bf1_ref, wf2_ref, bf2_ref, o_ref,
                        *, nb, oh1, ow1, oh2, ow2, oh3, ow3):
    f32, bf16 = jnp.float32, jnp.bfloat16

    # ---- conv1: single im2col GEMM (bf16 operand built in the wrapper) ------
    act1 = jnp.dot(a1_ref[...], w1_ref[...], preferred_element_type=f32)
    act1 = jnp.maximum(act1 + b1_ref[...], 0.0)           # f32 bias + ReLU
    c1 = act1.shape[-1]
    act1 = act1.astype(bf16)                              # MXU operand dtype

    # ---- conv2 (4x4, stride 2): K-concatenated im2col -> ONE 512-deep GEMM --
    # Stride-2 taps are gathered from the four even/odd (row, col) parity
    # sub-grids, so only unit-stride slices and static integer indexing are
    # needed (robust Mosaic lowering, no strided loads).
    a5 = act1.reshape(nb, oh1 // 2, 2, ow1, c1)
    grids = {}
    for hp in range(2):
        row = a5[:, :, hp, :, :].reshape(nb, oh1 // 2, ow1 // 2, 2, c1)
        for wp in range(2):
            grids[(hp, wp)] = row[:, :, :, wp, :]         # (nb, oh1//2, ow1//2, c1)
    wins2 = [grids[(ky % 2, kx % 2)][:, ky // 2:ky // 2 + oh2,
                                     kx // 2:kx // 2 + ow2, :]
             for ky in range(_K2) for kx in range(_K2)]
    m2 = nb * oh2 * ow2
    patches2 = jnp.concatenate(wins2, axis=-1).reshape(m2, _K2 * _K2 * c1)
    act2 = jnp.dot(patches2, w2_ref[...], preferred_element_type=f32)
    act2 = jnp.maximum(act2 + b2_ref[...], 0.0)
    c2 = act2.shape[-1]
    act2 = act2.astype(bf16)

    # ---- conv3 (3x3, stride 1): K-concatenated im2col -> ONE 576-deep GEMM --
    a2_4d = act2.reshape(nb, oh2, ow2, c2)
    wins3 = [a2_4d[:, ky:ky + oh3, kx:kx + ow3, :]
             for ky in range(_K3) for kx in range(_K3)]
    m3 = nb * oh3 * ow3
    patches3 = jnp.concatenate(wins3, axis=-1).reshape(m3, _K3 * _K3 * c2)
    act3 = jnp.dot(patches3, w3_ref[...], preferred_element_type=f32)
    act3 = jnp.maximum(act3 + b3_ref[...], 0.0)
    c3 = act3.shape[-1]
    act3 = act3.astype(bf16)

    # ---- flatten + fc1 + fc2 -------------------------------------------------
    # fc1's weight rows were permuted at init to (h, w, c) order, so flattening
    # the (nb, h, w, c)-ordered conv3 activation matches torch's NCHW .view().
    flat = act3.reshape(nb, oh3 * ow3 * c3)
    h = jnp.dot(flat, wf1_ref[...], preferred_element_type=f32)
    h = jnp.maximum(h + bf1_ref[...], 0.0).astype(bf16)
    out = jnp.dot(h, wf2_ref[...], preferred_element_type=f32)
    out = jnp.maximum(out + bf2_ref[...], 0.0)            # final ReLU (as in torch)
    o_ref[...] = out.astype(o_ref.dtype)


# ----------------------------------------------------------------------------
# Wrapper-side glue.
# ----------------------------------------------------------------------------
def _im2col(x_nhwc, kh, kw, stride):
    """(N,H,W,C) -> (N*OH*OW, C*KH*KW), columns ordered (c, ky, kx)."""
    n, h, w, c = x_nhwc.shape
    oh = (h - kh) // stride + 1
    ow = (w - kw) // stride + 1
    patches = [x_nhwc[:, ky:ky + oh * stride:stride, kx:kx + ow * stride:stride, :]
               for ky in range(kh) for kx in range(kw)]
    cols = jnp.stack(patches, axis=-1)                    # (N, OH, OW, C, KH*KW)
    return cols.reshape(n * oh * ow, c * kh * kw), (oh, ow)


def _per_sample_vmem_bytes(oh1, ow1, oh2, ow2, oh3, ow3):
    """Rough per-sample VMEM bytes: double-buffered bf16 a1 block plus live
    bf16/f32 copies of every intermediate (loose x6 factor for relayouts)."""
    a1 = oh1 * ow1 * 192 * 2 * 2
    inter = (oh1 * ow1 * 32
             + oh2 * ow2 * (512 + 64)
             + oh3 * ow3 * (576 + 64)) * 6
    return a1 + inter


def _pick_batch_tile(n, per_sample_bytes, budget_bytes=16 * 1024 * 1024):
    """Batch tile: as large as a conservative VMEM budget allows (16 MiB keeps
    the same choice safe on v5e's scoped default, v6e, and v7x's 64 MiB
    physical VMEM), capped at 64 samples, and chosen so output blocks have a
    multiple-of-8 row count or cover the full batch (layout constraint)."""
    cap = int(max(8, min(64, budget_bytes // max(per_sample_bytes, 1))))
    if n <= cap:
        return n
    nb = (cap // 8) * 8
    while nb >= 8:
        if n % nb == 0:
            return nb
        nb -= 8
    return n   # fallback: whole batch in one block


@jax.jit
def dconv_forward(packed, x_nchw):
    n = x_nchw.shape[0]
    x = jnp.transpose(x_nchw, (0, 2, 3, 1)).astype(jnp.bfloat16)   # NCHW -> NHWC
    # TODO(synk): build the conv1 im2col in-kernel from the raw NHWC image
    # (stride-4 phase split) to remove the 4x-expanded HBM materialization of
    # a1 entirely; for now a1 is emitted in bf16, which halves that DMA.
    a1, (oh1, ow1) = _im2col(x, _K1, _K1, _S1)
    oh2 = (oh1 - _K2) // _S2 + 1
    ow2 = (ow1 - _K2) // _S2 + 1
    oh3 = (oh2 - _K3) // _S3 + 1
    ow3 = (ow2 - _K3) // _S3 + 1
    # The in-kernel stride-2 parity gather assumes conv1's output spatial size
    # is even (true for the module's canonical input sizes, e.g. 36 / 84).
    assert oh1 % 2 == 0 and ow1 % 2 == 0, "conv1 output spatial must be even"
    out_dim = packed["wf2"].shape[1]

    nb = _pick_batch_tile(n, _per_sample_vmem_bytes(oh1, ow1, oh2, ow2, oh3, ow3))
    grid = (n // nb,)
    m1b = nb * oh1 * ow1

    kernel = functools.partial(_dconv_fused_kernel, nb=nb, oh1=oh1, ow1=ow1,
                               oh2=oh2, ow2=ow2, oh3=oh3, ow3=ow3)

    def const_spec(arr):            # whole array, same block every grid step
        nd = arr.ndim
        return pl.BlockSpec(arr.shape, lambda i: (0,) * nd)

    in_specs = [pl.BlockSpec((m1b, a1.shape[1]), lambda i: (i, 0))] + [
        const_spec(packed[k]) for k in
        ("w1", "b1", "w2", "b2", "w3", "b3", "wf1", "bf1", "wf2", "bf2")]
    out_specs = pl.BlockSpec((nb, out_dim), lambda i: (i, 0))

    return pl.pallas_call(
        kernel,
        out_shape=jax.ShapeDtypeStruct((n, out_dim), jnp.float32),
        grid=grid,
        in_specs=in_specs,
        out_specs=out_specs,
        compiler_params=pltpu.CompilerParams(
            dimension_semantics=("parallel",),
            vmem_limit_bytes=32 * 1024 * 1024),
    )(a1, packed["w1"], packed["b1"], packed["w2"], packed["b2"],
      packed["w3"], packed["b3"], packed["wf1"], packed["bf1"],
      packed["wf2"], packed["bf2"])


# ----------------------------------------------------------------------------
# Parameters: torch-layout init + one-time packing into kernel layout.
# ----------------------------------------------------------------------------
def _uniform(key, shape, fan_in):
    bound = 1.0 / jnp.sqrt(jnp.asarray(fan_in, jnp.float32))
    return jax.random.uniform(key, shape, jnp.float32, -bound, bound)


def init_dconv_params(key, inp_dim, out_dim):
    """PyTorch-layout params (Conv2d: (OC,IC,KH,KW), Linear: (out,in))."""
    ks = jax.random.split(key, 10)
    params = {}
    conv_cfg = [("conv1", 3, 32, _K1), ("conv2", 32, 64, _K2), ("conv3", 64, 64, _K3)]
    for i, (name, ci, co, k) in enumerate(conv_cfg):
        fan_in = ci * k * k
        params[name] = {"w": _uniform(ks[2 * i], (co, ci, k, k), fan_in),
                        "b": _uniform(ks[2 * i + 1], (co,), fan_in)}
    h1 = (inp_dim - _K1) // _S1 + 1
    h2 = (h1 - _K2) // _S2 + 1
    h3 = (h2 - _K3) // _S3 + 1
    dims = 64 * h3 * h3
    fc_cfg = [("fc1", dims, 16), ("fc2", 16, out_dim)]
    for i, (name, fi, fo) in enumerate(fc_cfg):
        params[name] = {"w": _uniform(ks[6 + 2 * i], (fo, fi), fi),
                        "b": _uniform(ks[7 + 2 * i], (fo,), fi)}
    return params


def pack_params(params, inp_dim):
    """One-time weight re-layouts (hoisted out of the per-call forward path).
    Weights are packed in bf16 (MXU operand dtype); biases stay f32."""
    h1 = (inp_dim - _K1) // _S1 + 1
    h2 = (h1 - _K2) // _S2 + 1
    h3 = (h2 - _K3) // _S3 + 1
    bf16, f32 = jnp.bfloat16, jnp.float32

    def conv_w(w):  # (OC, IC, KH, KW) -> (KH*KW*IC, OC), rows ordered (ky, kx, ic)
        oc, ic, kh, kw = w.shape
        return jnp.transpose(w, (2, 3, 1, 0)).reshape(kh * kw * ic, oc)

    w1 = params["conv1"]["w"]
    oc1, ic1, kh1, kw1 = w1.shape
    wf1 = params["fc1"]["w"]
    fo1 = wf1.shape[0]
    c3 = params["conv3"]["w"].shape[0]
    return {
        # conv1 keeps the wrapper im2col layout (IC*KH*KW, OC), cols (c, ky, kx):
        "w1": jnp.transpose(w1, (1, 2, 3, 0)).reshape(ic1 * kh1 * kw1, oc1).astype(bf16),
        "b1": params["conv1"]["b"].reshape(1, -1).astype(f32),
        # conv2/conv3: K-concatenated single-GEMM weights, rows ordered (tap, ic):
        "w2": conv_w(params["conv2"]["w"]).astype(bf16),
        "b2": params["conv2"]["b"].reshape(1, -1).astype(f32),
        "w3": conv_w(params["conv3"]["w"]).astype(bf16),
        "b3": params["conv3"]["b"].reshape(1, -1).astype(f32),
        # fc1: torch (out, c*h*w) -> (h*w*c, out) so it consumes the kernel's
        # NHWC flatten while matching torch's NCHW .view() semantics.
        "wf1": jnp.transpose(wf1.reshape(fo1, c3, h3, h3),
                             (2, 3, 1, 0)).reshape(h3 * h3 * c3, fo1).astype(bf16),
        "bf1": params["fc1"]["b"].reshape(1, -1).astype(f32),
        "wf2": params["fc2"]["w"].T.astype(bf16),
        "bf2": params["fc2"]["b"].reshape(1, -1).astype(f32),
    }


# ----------------------------------------------------------------------------
# Pure-JAX reference of DConv.forward (for a correctness check in __main__).
# ----------------------------------------------------------------------------
def dconv_reference(params, x_nchw):
    y = x_nchw
    for name, s in (("conv1", _S1), ("conv2", _S2), ("conv3", _S3)):
        w, b = params[name]["w"], params[name]["b"]
        dn = jax.lax.conv_dimension_numbers(y.shape, w.shape, ("NCHW", "OIHW", "NCHW"))
        y = jax.lax.conv_general_dilated(y, w, (s, s), "VALID", dimension_numbers=dn)
        y = jnp.maximum(y + b[None, :, None, None], 0.0)
    y = y.reshape(y.shape[0], -1)                         # NCHW channel-major flatten
    for name in ("fc1", "fc2"):
        w, b = params[name]["w"], params[name]["b"]
        y = jnp.maximum(y @ w.T + b, 0.0)
    return y


if __name__ == "__main__":
    INP_DIM = 36   # 36 -> 8 -> 3 -> 1 spatial (smallest clean size)
    OUT_DIM = 8
    BATCH = 2

    key = jax.random.PRNGKey(0)
    pkey, xkey = jax.random.split(key)
    params = init_dconv_params(pkey, INP_DIM, OUT_DIM)
    packed = pack_params(params, INP_DIM)
    x = jax.random.normal(xkey, (BATCH, 3, INP_DIM, INP_DIM), jnp.float32)

    out = jax.block_until_ready(dconv_forward(packed, x))
    assert out.shape == (BATCH, OUT_DIM), out.shape
    assert bool(jnp.all(out >= 0.0))                      # final ReLU (as in torch)

    ref = jax.block_until_ready(dconv_reference(params, x))
    # bf16 MXU operands -> ~1e-2 relative agreement with the f32 reference.
    assert jnp.allclose(out, ref, rtol=3e-2, atol=3e-2), \
        float(jnp.max(jnp.abs(out - ref)))

    print("KERNEL_OK")
</pallas_src>

<mosaic_0001>
module attributes {stable_mosaic.version = 11 : i64} {
  func.func @_dconv_fused_kernel(%arg0: i32, %arg1: memref<128x192xbf16, #tpu.memory_space<vmem>>, %arg2: memref<192x32xbf16, #tpu.memory_space<vmem>>, %arg3: memref<1x32xf32, #tpu.memory_space<vmem>>, %arg4: memref<512x64xbf16, #tpu.memory_space<vmem>>, %arg5: memref<1x64xf32, #tpu.memory_space<vmem>>, %arg6: memref<576x64xbf16, #tpu.memory_space<vmem>>, %arg7: memref<1x64xf32, #tpu.memory_space<vmem>>, %arg8: memref<64x16xbf16, #tpu.memory_space<vmem>>, %arg9: memref<1x16xf32, #tpu.memory_space<vmem>>, %arg10: memref<16x8xbf16, #tpu.memory_space<vmem>>, %arg11: memref<1x8xf32, #tpu.memory_space<vmem>>, %arg12: memref<2x8xf32, #tpu.memory_space<vmem>>) attributes {dimension_semantics = [#tpu.dimension_semantics<parallel>], iteration_bounds = array<i64: 1>, scalar_prefetch = 0 : i64, scratch_operands = 0 : i64, tpu.core_type = #tpu.core_type<tc>, window_params = [{transform_indices = @transform_0, window_bounds = array<i64: 128, 192>}, {pipeline_mode = #tpu.pipeline_mode<synchronous>, transform_indices = @transform_1, window_bounds = array<i64: 192, 32>}, {pipeline_mode = #tpu.pipeline_mode<synchronous>, transform_indices = @transform_2, window_bounds = array<i64: 1, 32>}, {pipeline_mode = #tpu.pipeline_mode<synchronous>, transform_indices = @transform_3, window_bounds = array<i64: 512, 64>}, {pipeline_mode = #tpu.pipeline_mode<synchronous>, transform_indices = @transform_4, window_bounds = array<i64: 1, 64>}, {pipeline_mode = #tpu.pipeline_mode<synchronous>, transform_indices = @transform_5, window_bounds = array<i64: 576, 64>}, {pipeline_mode = #tpu.pipeline_mode<synchronous>, transform_indices = @transform_6, window_bounds = array<i64: 1, 64>}, {pipeline_mode = #tpu.pipeline_mode<synchronous>, transform_indices = @transform_7, window_bounds = array<i64: 64, 16>}, {pipeline_mode = #tpu.pipeline_mode<synchronous>, transform_indices = @transform_8, window_bounds = array<i64: 1, 16>}, {pipeline_mode = #tpu.pipeline_mode<synchronous>, transform_indices = @transform_9, window_bounds = array<i64: 16, 8>}, {pipeline_mode = #tpu.pipeline_mode<synchronous>, transform_indices = @transform_10, window_bounds = array<i64: 1, 8>}, {transform_indices = @transform_11, window_bounds = array<i64: 2, 8>}]} {
    %c0 = arith.constant 0 : index
    %c0_0 = arith.constant 0 : index
    %0 = vector.load %arg1[%c0, %c0_0] : memref<128x192xbf16, #tpu.memory_space<vmem>>, vector<128x192xbf16>
    %c0_1 = arith.constant 0 : index
    %c0_2 = arith.constant 0 : index
    %1 = vector.load %arg2[%c0_1, %c0_2] : memref<192x32xbf16, #tpu.memory_space<vmem>>, vector<192x32xbf16>
    %cst = arith.constant dense<0.000000e+00> : vector<128x32xf32>
    %2 = tpu.matmul %0, %1, %cst {dimension_numbers = #tpu.dot_dimension_numbers<[1], [0], [0], [1], [0, 0, 1, 1], [], []>} : vector<128x192xbf16>, vector<192x32xbf16>, vector<128x32xf32> -> vector<128x32xf32>
    %c0_3 = arith.constant 0 : index
    %c0_4 = arith.constant 0 : index
    %3 = vector.load %arg3[%c0_3, %c0_4] : memref<1x32xf32, #tpu.memory_space<vmem>>, vector<1x32xf32>
    %4 = vector.broadcast %3 : vector<1x32xf32> to vector<128x32xf32>
    %5 = arith.addf %2, %4 : vector<128x32xf32>
    %cst_5 = arith.constant 0.000000e+00 : f32
    %6 = vector.broadcast %cst_5 : f32 to vector<128x32xf32>
    %7 = arith.maximumf %5, %6 : vector<128x32xf32>
    %8 = arith.truncf %7 : vector<128x32xf32> to vector<128x32xbf16>
    %9 = vector.shape_cast %8 : vector<128x32xbf16> to vector<2x4x2x8x32xbf16>
    %10 = vector.extract_strided_slice %9 {offsets = [0, 0, 0, 0, 0], sizes = [2, 4, 1, 8, 32], strides = [1, 1, 1, 1, 1]} : vector<2x4x2x8x32xbf16> to vector<2x4x1x8x32xbf16>
    %11 = vector.shape_cast %10 : vector<2x4x1x8x32xbf16> to vector<2x4x8x32xbf16>
    %12 = vector.shape_cast %11 : vector<2x4x8x32xbf16> to vector<2x4x4x2x32xbf16>
    %13 = vector.extract_strided_slice %12 {offsets = [0, 0, 0, 0, 0], sizes = [2, 4, 4, 1, 32], strides = [1, 1, 1, 1, 1]} : vector<2x4x4x2x32xbf16> to vector<2x4x4x1x32xbf16>
    %14 = vector.shape_cast %13 : vector<2x4x4x1x32xbf16> to vector<2x4x4x32xbf16>
    %15 = vector.extract_strided_slice %12 {offsets = [0, 0, 0, 1, 0], sizes = [2, 4, 4, 1, 32], strides = [1, 1, 1, 1, 1]} : vector<2x4x4x2x32xbf16> to vector<2x4x4x1x32xbf16>
    %16 = vector.shape_cast %15 : vector<2x4x4x1x32xbf16> to vector<2x4x4x32xbf16>
    %17 = vector.extract_strided_slice %9 {offsets = [0, 0, 1, 0, 0], sizes = [2, 4, 1, 8, 32], strides = [1, 1, 1, 1, 1]} : vector<2x4x2x8x32xbf16> to vector<2x4x1x8x32xbf16>
    %18 = vector.shape_cast %17 : vector<2x4x1x8x32xbf16> to vector<2x4x8x32xbf16>
    %19 = vector.shape_cast %18 : vector<2x4x8x32xbf16> to vector<2x4x4x2x32xbf16>
    %20 = vector.extract_strided_slice %19 {offsets = [0, 0, 0, 0, 0], sizes = [2, 4, 4, 1, 32], strides = [1, 1, 1, 1, 1]} : vector<2x4x4x2x32xbf16> to vector<2x4x4x1x32xbf16>
    %21 = vector.shape_cast %20 : vector<2x4x4x1x32xbf16> to vector<2x4x4x32xbf16>
    %22 = vector.extract_strided_slice %19 {offsets = [0, 0, 0, 1, 0], sizes = [2, 4, 4, 1, 32], strides = [1, 1, 1, 1, 1]} : vector<2x4x4x2x32xbf16> to vector<2x4x4x1x32xbf16>
    %23 = vector.shape_cast %22 : vector<2x4x4x1x32xbf16> to vector<2x4x4x32xbf16>
    %24 = vector.extract_strided_slice %14 {offsets = [0, 0, 0, 0], sizes = [2, 3, 3, 32], strides = [1, 1, 1, 1]} : vector<2x4x4x32xbf16> to vector<2x3x3x32xbf16>
    %25 = vector.extract_strided_slice %16 {offsets = [0, 0, 0, 0], sizes = [2, 3, 3, 32], strides = [1, 1, 1, 1]} : vector<2x4x4x32xbf16> to vector<2x3x3x32xbf16>
    %26 = vector.extract_strided_slice %14 {offsets = [0, 0, 1, 0], sizes = [2, 3, 3, 32], strides = [1, 1, 1, 1]} : vector<2x4x4x32xbf16> to vector<2x3x3x32xbf16>
    %27 = vector.extract_strided_slice %16 {offsets = [0, 0, 1, 0], sizes = [2, 3, 3, 32], strides = [1, 1, 1, 1]} : vector<2x4x4x32xbf16> to vector<2x3x3x32xbf16>
    %28 = vector.extract_strided_slice %21 {offsets = [0, 0, 0, 0], sizes = [2, 3, 3, 32], strides = [1, 1, 1, 1]} : vector<2x4x4x32xbf16> to vector<2x3x3x32xbf16>
    %29 = vector.extract_strided_slice %23 {offsets = [0, 0, 0, 0], sizes = [2, 3, 3, 32], strides = [1, 1, 1, 1]} : vector<2x4x4x32xbf16> to vector<2x3x3x32xbf16>
    %30 = vector.extract_strided_slice %21 {offsets = [0, 0, 1, 0], sizes = [2, 3, 3, 32], strides = [1, 1, 1, 1]} : vector<2x4x4x32xbf16> to vector<2x3x3x32xbf16>
    %31 = vector.extract_strided_slice %23 {offsets = [0, 0, 1, 0], sizes = [2, 3, 3, 32], strides = [1, 1, 1, 1]} : vector<2x4x4x32xbf16> to vector<2x3x3x32xbf16>
    %32 = vector.extract_strided_slice %14 {offsets = [0, 1, 0, 0], sizes = [2, 3, 3, 32], strides = [1, 1, 1, 1]} : vector<2x4x4x32xbf16> to vector<2x3x3x32xbf16>
    %33 = vector.extract_strided_slice %16 {offsets = [0, 1, 0, 0], sizes = [2, 3, 3, 32], strides = [1, 1, 1, 1]} : vector<2x4x4x32xbf16> to vector<2x3x3x32xbf16>
    %34 = vector.extract_strided_slice %14 {offsets = [0, 1, 1, 0], sizes = [2, 3, 3, 32], strides = [1, 1, 1, 1]} : vector<2x4x4x32xbf16> to vector<2x3x3x32xbf16>
    %35 = vector.extract_strided_slice %16 {offsets = [0, 1, 1, 0], sizes = [2, 3, 3, 32], strides = [1, 1, 1, 1]} : vector<2x4x4x32xbf16> to vector<2x3x3x32xbf16>
    %36 = vector.extract_strided_slice %21 {offsets = [0, 1, 0, 0], sizes = [2, 3, 3, 32], strides = [1, 1, 1, 1]} : vector<2x4x4x32xbf16> to vector<2x3x3x32xbf16>
    %37 = vector.extract_strided_slice %23 {offsets = [0, 1, 0, 0], sizes = [2, 3, 3, 32], strides = [1, 1, 1, 1]} : vector<2x4x4x32xbf16> to vector<2x3x3x32xbf16>
    %38 = vector.extract_strided_slice %21 {offsets = [0, 1, 1, 0], sizes = [2, 3, 3, 32], strides = [1, 1, 1, 1]} : vector<2x4x4x32xbf16> to vector<2x3x3x32xbf16>
    %39 = vector.extract_strided_slice %23 {offsets = [0, 1, 1, 0], sizes = [2, 3, 3, 32], strides = [1, 1, 1, 1]} : vector<2x4x4x32xbf16> to vector<2x3x3x32xbf16>
    %40 = tpu.concatenate %24, %25, %26, %27, %28, %29, %30, %31, %32, %33, %34, %35, %36, %37, %38, %39 in 3 : vector<2x3x3x32xbf16>, vector<2x3x3x32xbf16>, vector<2x3x3x32xbf16>, vector<2x3x3x32xbf16>, vector<2x3x3x32xbf16>, vector<2x3x3x32xbf16>, vector<2x3x3x32xbf16>, vector<2x3x3x32xbf16>, vector<2x3x3x32xbf16>, vector<2x3x3x32xbf16>, vector<2x3x3x32xbf16>, vector<2x3x3x32xbf16>, vector<2x3x3x32xbf16>, vector<2x3x3x32xbf16>, vector<2x3x3x32xbf16>, vector<2x3x3x32xbf16> -> vector<2x3x3x512xbf16>
    %41 = vector.shape_cast %40 : vector<2x3x3x512xbf16> to vector<18x512xbf16>
    %c0_6 = arith.constant 0 : index
    %c0_7 = arith.constant 0 : index
    %42 = vector.load %arg4[%c0_6, %c0_7] : memref<512x64xbf16, #tpu.memory_space<vmem>>, vector<512x64xbf16>
    %cst_8 = arith.constant dense<0.000000e+00> : vector<18x64xf32>
    %43 = tpu.matmul %41, %42, %cst_8 {dimension_numbers = #tpu.dot_dimension_numbers<[1], [0], [0], [1], [0, 0, 1, 1], [], []>} : vector<18x512xbf16>, vector<512x64xbf16>, vector<18x64xf32> -> vector<18x64xf32>
    %c0_9 = arith.constant 0 : index
    %c0_10 = arith.constant 0 : index
    %44 = vector.load %arg5[%c0_9, %c0_10] : memref<1x64xf32, #tpu.memory_space<vmem>>, vector<1x64xf32>
    %45 = vector.broadcast %44 : vector<1x64xf32> to vector<18x64xf32>
    %46 = arith.addf %43, %45 : vector<18x64xf32>
    %cst_11 = arith.constant 0.000000e+00 : f32
    %47 = vector.broadcast %cst_11 : f32 to vector<18x64xf32>
    %48 = arith.maximumf %46, %47 : vector<18x64xf32>
    %49 = arith.truncf %48 : vector<18x64xf32> to vector<18x64xbf16>
    %50 = vector.shape_cast %49 : vector<18x64xbf16> to vector<2x3x3x64xbf16>
    %51 = vector.extract_strided_slice %50 {offsets = [0, 0, 0, 0], sizes = [2, 1, 1, 64], strides = [1, 1, 1, 1]} : vector<2x3x3x64xbf16> to vector<2x1x1x64xbf16>
    %52 = vector.extract_strided_slice %50 {offsets = [0, 0, 1, 0], sizes = [2, 1, 1, 64], strides = [1, 1, 1, 1]} : vector<2x3x3x64xbf16> to vector<2x1x1x64xbf16>
    %53 = vector.extract_strided_slice %50 {offsets = [0, 0, 2, 0], sizes = [2, 1, 1, 64], strides = [1, 1, 1, 1]} : vector<2x3x3x64xbf16> to vector<2x1x1x64xbf16>
    %54 = vector.extract_strided_slice %50 {offsets = [0, 1, 0, 0], sizes = [2, 1, 1, 64], strides = [1, 1, 1, 1]} : vector<2x3x3x64xbf16> to vector<2x1x1x64xbf16>
    %55 = vector.extract_strided_slice %50 {offsets = [0, 1, 1, 0], sizes = [2, 1, 1, 64], strides = [1, 1, 1, 1]} : vector<2x3x3x64xbf16> to vector<2x1x1x64xbf16>
    %56 = vector.extract_strided_slice %50 {offsets = [0, 1, 2, 0], sizes = [2, 1, 1, 64], strides = [1, 1, 1, 1]} : vector<2x3x3x64xbf16> to vector<2x1x1x64xbf16>
    %57 = vector.extract_strided_slice %50 {offsets = [0, 2, 0, 0], sizes = [2, 1, 1, 64], strides = [1, 1, 1, 1]} : vector<2x3x3x64xbf16> to vector<2x1x1x64xbf16>
    %58 = vector.extract_strided_slice %50 {offsets = [0, 2, 1, 0], sizes = [2, 1, 1, 64], strides = [1, 1, 1, 1]} : vector<2x3x3x64xbf16> to vector<2x1x1x64xbf16>
    %59 = vector.extract_strided_slice %50 {offsets = [0, 2, 2, 0], sizes = [2, 1, 1, 64], strides = [1, 1, 1, 1]} : vector<2x3x3x64xbf16> to vector<2x1x1x64xbf16>
    %60 = tpu.concatenate %51, %52, %53, %54, %55, %56, %57, %58, %59 in 3 : vector<2x1x1x64xbf16>, vector<2x1x1x64xbf16>, vector<2x1x1x64xbf16>, vector<2x1x1x64xbf16>, vector<2x1x1x64xbf16>, vector<2x1x1x64xbf16>, vector<2x1x1x64xbf16>, vector<2x1x1x64xbf16>, vector<2x1x1x64xbf16> -> vector<2x1x1x576xbf16>
    %61 = vector.shape_cast %60 : vector<2x1x1x576xbf16> to vector<2x576xbf16>
    %c0_12 = arith.constant 0 : index
    %c0_13 = arith.constant 0 : index
    %62 = vector.load %arg6[%c0_12, %c0_13] : memref<576x64xbf16, #tpu.memory_space<vmem>>, vector<576x64xbf16>
    %cst_14 = arith.constant dense<0.000000e+00> : vector<2x64xf32>
    %63 = tpu.matmul %61, %62, %cst_14 {dimension_numbers = #tpu.dot_dimension_numbers<[1], [0], [0], [1], [0, 0, 1, 1], [], []>} : vector<2x576xbf16>, vector<576x64xbf16>, vector<2x64xf32> -> vector<2x64xf32>
    %c0_15 = arith.constant 0 : index
    %c0_16 = arith.constant 0 : index
    %64 = vector.load %arg7[%c0_15, %c0_16] : memref<1x64xf32, #tpu.memory_space<vmem>>, vector<1x64xf32>
    %65 = vector.broadcast %64 : vector<1x64xf32> to vector<2x64xf32>
    %66 = arith.addf %63, %65 : vector<2x64xf32>
    %cst_17 = arith.constant 0.000000e+00 : f32
    %67 = vector.broadcast %cst_17 : f32 to vector<2x64xf32>
    %68 = arith.maximumf %66, %67 : vector<2x64xf32>
    %69 = arith.truncf %68 : vector<2x64xf32> to vector<2x64xbf16>
    %c0_18 = arith.constant 0 : index
    %c0_19 = arith.constant 0 : index
    %70 = vector.load %arg8[%c0_18, %c0_19] : memref<64x16xbf16, #tpu.memory_space<vmem>>, vector<64x16xbf16>
    %cst_20 = arith.constant dense<0.000000e+00> : vector<2x16xf32>
    %71 = tpu.matmul %69, %70, %cst_20 {dimension_numbers = #tpu.dot_dimension_numbers<[1], [0], [0], [1], [0, 0, 1, 1], [], []>} : vector<2x64xbf16>, vector<64x16xbf16>, vector<2x16xf32> -> vector<2x16xf32>
    %c0_21 = arith.constant 0 : index
    %c0_22 = arith.constant 0 : index
    %72 = vector.load %arg9[%c0_21, %c0_22] : memref<1x16xf32, #tpu.memory_space<vmem>>, vector<1x16xf32>
    %73 = vector.broadcast %72 : vector<1x16xf32> to vector<2x16xf32>
    %74 = arith.addf %71, %73 : vector<2x16xf32>
    %cst_23 = arith.constant 0.000000e+00 : f32
    %75 = vector.broadcast %cst_23 : f32 to vector<2x16xf32>
    %76 = arith.maximumf %74, %75 : vector<2x16xf32>
    %77 = arith.truncf %76 : vector<2x16xf32> to vector<2x16xbf16>
    %c0_24 = arith.constant 0 : index
    %c0_25 = arith.constant 0 : index
    %78 = vector.load %arg10[%c0_24, %c0_25] : memref<16x8xbf16, #tpu.memory_space<vmem>>, vector<16x8xbf16>
    %cst_26 = arith.constant dense<0.000000e+00> : vector<2x8xf32>
    %79 = tpu.matmul %77, %78, %cst_26 {dimension_numbers = #tpu.dot_dimension_numbers<[1], [0], [0], [1], [0, 0, 1, 1], [], []>} : vector<2x16xbf16>, vector<16x8xbf16>, vector<2x8xf32> -> vector<2x8xf32>
    %c0_27 = arith.constant 0 : index
    %c0_28 = arith.constant 0 : index
    %80 = vector.load %arg11[%c0_27, %c0_28] : memref<1x8xf32, #tpu.memory_space<vmem>>, vector<1x8xf32>
    %81 = vector.broadcast %80 : vector<1x8xf32> to vector<2x8xf32>
    %82 = arith.addf %79, %81 : vector<2x8xf32>
    %cst_29 = arith.constant 0.000000e+00 : f32
    %83 = vector.broadcast %cst_29 : f32 to vector<2x8xf32>
    %84 = arith.maximumf %82, %83 : vector<2x8xf32>
    %c0_30 = arith.constant 0 : index
    %c0_31 = arith.constant 0 : index
    %85 = vector.load %arg12[%c0_30, %c0_31] : memref<2x8xf32, #tpu.memory_space<vmem>>, vector<2x8xf32>
    tpu.vector_store %arg12[%c0_30, %c0_31], %84 {strides = array<i32>} : memref<2x8xf32, #tpu.memory_space<vmem>>, vector<2x8xf32>,
    return
  }
  func.func @transform_0(%arg0: i32) -> (i32, i32) {
    %c0_i32 = arith.constant 0 : i32
    %c0_i32_0 = arith.constant 0 : i32
    return %arg0, %c0_i32 : i32, i32
  }
  func.func @transform_1(%arg0: i32) -> (i32, i32) {
    %c0_i32 = arith.constant 0 : i32
    %c0_i32_0 = arith.constant 0 : i32
    %c0_i32_1 = arith.constant 0 : i32
    return %c0_i32, %c0_i32_0 : i32, i32
  }
  func.func @transform_2(%arg0: i32) -> (i32, i32) {
    %c0_i32 = arith.constant 0 : i32
    %c0_i32_0 = arith.constant 0 : i32
    %c0_i32_1 = arith.constant 0 : i32
    return %c0_i32, %c0_i32_0 : i32, i32
  }
  func.func @transform_3(%arg0: i32) -> (i32, i32) {
    %c0_i32 = arith.constant 0 : i32
    %c0_i32_0 = arith.constant 0 : i32
    %c0_i32_1 = arith.constant 0 : i32
    return %c0_i32, %c0_i32_0 : i32, i32
  }
  func.func @transform_4(%arg0: i32) -> (i32, i32) {
    %c0_i32 = arith.constant 0 : i32
    %c0_i32_0 = arith.constant 0 : i32
    %c0_i32_1 = arith.constant 0 : i32
    return %c0_i32, %c0_i32_0 : i32, i32
  }
  func.func @transform_5(%arg0: i32) -> (i32, i32) {
    %c0_i32 = arith.constant 0 : i32
    %c0_i32_0 = arith.constant 0 : i32
    %c0_i32_1 = arith.constant 0 : i32
    return %c0_i32, %c0_i32_0 : i32, i32
  }
  func.func @transform_6(%arg0: i32) -> (i32, i32) {
    %c0_i32 = arith.constant 0 : i32
    %c0_i32_0 = arith.constant 0 : i32
    %c0_i32_1 = arith.constant 0 : i32
    return %c0_i32, %c0_i32_0 : i32, i32
  }
  func.func @transform_7(%arg0: i32) -> (i32, i32) {
    %c0_i32 = arith.constant 0 : i32
    %c0_i32_0 = arith.constant 0 : i32
    %c0_i32_1 = arith.constant 0 : i32
    return %c0_i32, %c0_i32_0 : i32, i32
  }
  func.func @transform_8(%arg0: i32) -> (i32, i32) {
    %c0_i32 = arith.constant 0 : i32
    %c0_i32_0 = arith.constant 0 : i32
    %c0_i32_1 = arith.constant 0 : i32
    return %c0_i32, %c0_i32_0 : i32, i32
  }
  func.func @transform_9(%arg0: i32) -> (i32, i32) {
    %c0_i32 = arith.constant 0 : i32
    %c0_i32_0 = arith.constant 0 : i32
    %c0_i32_1 = arith.constant 0 : i32
    return %c0_i32, %c0_i32_0 : i32, i32
  }
  func.func @transform_10(%arg0: i32) -> (i32, i32) {
    %c0_i32 = arith.constant 0 : i32
    %c0_i32_0 = arith.constant 0 : i32
    %c0_i32_1 = arith.constant 0 : i32
    return %c0_i32, %c0_i32_0 : i32, i32
  }
  func.func @transform_11(%arg0: i32) -> (i32, i32) {
    %c0_i32 = arith.constant 0 : i32
    %c0_i32_0 = arith.constant 0 : i32
    return %arg0, %c0_i32 : i32, i32
  }
}

</mosaic_0001>

<llo_original>
// kernel: dconv_forward.1
$region0: #{dconv_forward.1}
  #allocation0 [shape = 'u32[]', space=smem, size = 0x4, offset = 0x4, fixed_abs, tag = 'smem constant byte address 0x4 - core index']
  #allocation1 [shape = 'u32[144,128]{1,0:T(1,128)}', space=vmem, size = 0x12000, scoped, tag = 'internal scratch']
  %s0 = inlined_call_operand.vmem [shape: bf16[128,192], index: 0, kind: input, shape index: {}]
  %s1 = inlined_call_operand.vmem [shape: bf16[192,32], index: 1, kind: input, shape index: {}]
  %s2 = inlined_call_operand.vmem [shape: f32[1,32], index: 2, kind: input, shape index: {}]
  %s3 = inlined_call_operand.vmem [shape: bf16[512,64], index: 3, kind: input, shape index: {}]
  %s4 = inlined_call_operand.vmem [shape: f32[1,64], index: 4, kind: input, shape index: {}]
  %s5 = inlined_call_operand.vmem [shape: bf16[576,64], index: 5, kind: input, shape index: {}]
  %s6 = inlined_call_operand.vmem [shape: f32[1,64], index: 6, kind: input, shape index: {}]
  %s7 = inlined_call_operand.vmem [shape: bf16[64,16], index: 7, kind: input, shape index: {}]
  %s8 = inlined_call_operand.vmem [shape: f32[1,16], index: 8, kind: input, shape index: {}]
  %s9 = inlined_call_operand.vmem [shape: bf16[16,8], index: 9, kind: input, shape index: {}]
  %s10 = inlined_call_operand.vmem [shape: f32[1,8], index: 10, kind: input, shape index: {}]
  %s11 = inlined_call_operand.hbm [shape: f32[2,8], index: 11, kind: output, shape index: {}]
  %s12 = sld [smem:[#allocation0]]
  $region54: #{dconv_forward.1} parent=0
    _
  %s14 = ssub.s32 1, %s12
  %s15 = scalar_select 0, %s14, %s12
  $region1: #{dconv_forward.1} parent=0
    #allocation2 [shape = 'u8[1024]{0}', space=vmem, size = 0x400, scoped, tag = 'output window, operand 0, single buffered']
    #allocation3 [shape = 's32[1]{0}', space=sflag, size = 0x4, scoped, tag = 'scoped memory for dconv_forward.1']
    %16 = vsyncpa [#allocation3], 0
    // Predicated region
    $region2: #{dconv_forward.1} parent=1 // pred_check
      _
    $region3: #{dconv_forward.1} parent=1 // pred_check_branch
      %18 = sbr.rel (0) target = $region5
    $region4: #{dconv_forward.1} parent=1 // pred_region
      _
    $region5: #{dconv_forward.1} parent=1 // pred_fallthru
      _
    // Predicated region
    $region6: #{dconv_forward.1} parent=1 // pred_check
      _
    $region7: #{dconv_forward.1} parent=1 // pred_check_branch
      %20 = sbr.rel (0) target = $region9
    $region8: #{dconv_forward.1} parent=1 // pred_region
      _
    $region9: #{dconv_forward.1} parent=1 // pred_fallthru
      _
    // Predicated region
    $region10: #{dconv_forward.1} parent=1 // pred_check
      _
    $region11: #{dconv_forward.1} parent=1 // pred_check_branch
      %22 = sbr.rel (0) target = $region13
    $region12: #{dconv_forward.1} parent=1 // pred_region
      _
    $region13: #{dconv_forward.1} parent=1 // pred_fallthru
      _
    // Predicated region
    $region14: #{dconv_forward.1} parent=1 // pred_check
      _
    $region15: #{dconv_forward.1} parent=1 // pred_check_branch
      %24 = sbr.rel (0) target = $region17
    $region16: #{dconv_forward.1} parent=1 // pred_region
      _
    $region17: #{dconv_forward.1} parent=1 // pred_fallthru
      _
    // Predicated region
    $region18: #{dconv_forward.1} parent=1 // pred_check
      _
    $region19: #{dconv_forward.1} parent=1 // pred_check_branch
      %26 = sbr.rel (0) target = $region21
    $region20: #{dconv_forward.1} parent=1 // pred_region
      _
    $region21: #{dconv_forward.1} parent=1 // pred_fallthru
      _
    // Predicated region
    $region22: #{dconv_forward.1} parent=1 // pred_check
      _
    $region23: #{dconv_forward.1} parent=1 // pred_check_branch
      %28 = sbr.rel (0) target = $region25
    $region24: #{dconv_forward.1} parent=1 // pred_region
      _
    $region25: #{dconv_forward.1} parent=1 // pred_fallthru
      _
    // Predicated region
    $region26: #{dconv_forward.1} parent=1 // pred_check
      _
    $region27: #{dconv_forward.1} parent=1 // pred_check_branch
      %30 = sbr.rel (0) target = $region29
    $region28: #{dconv_forward.1} parent=1 // pred_region
      _
    $region29: #{dconv_forward.1} parent=1 // pred_fallthru
      _
    // Predicated region
    $region30: #{dconv_forward.1} parent=1 // pred_check
      _
    $region31: #{dconv_forward.1} parent=1 // pred_check_branch
      %32 = sbr.rel (0) target = $region33
    $region32: #{dconv_forward.1} parent=1 // pred_region
      _
    $region33: #{dconv_forward.1} parent=1 // pred_fallthru
      _
    // Predicated region
    $region34: #{dconv_forward.1} parent=1 // pred_check
      _
    $region35: #{dconv_forward.1} parent=1 // pred_check_branch
      %34 = sbr.rel (0) target = $region37
    $region36: #{dconv_forward.1} parent=1 // pred_region
      _
    $region37: #{dconv_forward.1} parent=1 // pred_fallthru
      _
    // Predicated region
    $region38: #{dconv_forward.1} parent=1 // pred_check
      _
    $region39: #{dconv_forward.1} parent=1 // pred_check_branch
      %36 = sbr.rel (0) target = $region41
    $region40: #{dconv_forward.1} parent=1 // pred_region
      _
    $region41: #{dconv_forward.1} parent=1 // pred_fallthru
      _
    // Predicated region
    $region42: #{dconv_forward.1} parent=1 // pred_check
      _
    $region43: #{dconv_forward.1} parent=1 // pred_check_branch
      %38 = sbr.rel (0) target = $region45
    $region44: #{dconv_forward.1} parent=1 // pred_region
      _
    $region45: #{dconv_forward.1} parent=1 // pred_fallthru
      _
    %v40 = vld [vmem:[%s0] sm:$0xff]
    %v41 = vld [vmem:[%s0 + $0x8] sm:$0xff]
    %v42 = vld [vmem:[%s0 + $0x10] sm:$0xff]
    %v43 = vld [vmem:[%s0 + $0x18] sm:$0xff]
    %v44 = vld [vmem:[%s0 + $0x20] sm:$0xff]
    %v45 = vld [vmem:[%s0 + $0x28] sm:$0xff]
    %v46 = vld [vmem:[%s0 + $0x30] sm:$0xff]
    %v47 = vld [vmem:[%s0 + $0x38] sm:$0xff]
    %v48 = vld [vmem:[%s0 + $0x40] sm:$0xff]
    %v49 = vld [vmem:[%s0 + $0x48] sm:$0xff]
    %v50 = vld [vmem:[%s0 + $0x50] sm:$0xff]
    %v51 = vld [vmem:[%s0 + $0x58] sm:$0xff]
    %v52 = vld [vmem:[%s0 + $0x60] sm:$0xff]
    %v53 = vld [vmem:[%s0 + $0x68] sm:$0xff]
    %v54 = vld [vmem:[%s0 + $0x70] sm:$0xff]
    %v55 = vld [vmem:[%s0 + $0x78] sm:$0xff]
    %v56 = vld [vmem:[%s1] sm:$0xf]
    %v57 = vld [vmem:[%s1 + $0x4] sm:$0xf]
    %v58 = vld [vmem:[%s1 + $0x8] sm:$0xf]
    %v59 = vld [vmem:[%s1 + $0xc] sm:$0xf]
    %v60 = vld [vmem:[%s1 + $0x10] sm:$0xf]
    %v61 = vld [vmem:[%s1 + $0x14] sm:$0xf]
    %v62 = vld [vmem:[%s1 + $0x18] sm:$0xf]
    %v63 = vld [vmem:[%s1 + $0x1c] sm:$0xf]
    %v64 = vld [vmem:[%s1 + $0x20] sm:$0xf]
    %v65 = vld [vmem:[%s1 + $0x24] sm:$0xf]
    %v66 = vld [vmem:[%s1 + $0x28] sm:$0xf]
    %v67 = vld [vmem:[%s1 + $0x2c] sm:$0xf]
    %v68 = vld [vmem:[%s1 + $0x30] sm:$0xf]
    %v69 = vld [vmem:[%s1 + $0x34] sm:$0xf]
    %v70 = vld [vmem:[%s1 + $0x38] sm:$0xf]
    %v71 = vld [vmem:[%s1 + $0x3c] sm:$0xf]
    %v72 = vld [vmem:[%s1 + $0x40] sm:$0xf]
    %v73 = vld [vmem:[%s1 + $0x44] sm:$0xf]
    %v74 = vld [vmem:[%s1 + $0x48] sm:$0xf]
    %v75 = vld [vmem:[%s1 + $0x4c] sm:$0xf]
    %v76 = vld [vmem:[%s1 + $0x50] sm:$0xf]
    %v77 = vld [vmem:[%s1 + $0x54] sm:$0xf]
    %v78 = vld [vmem:[%s1 + $0x58] sm:$0xf]
    %v79 = vld [vmem:[%s1 + $0x5c] sm:$0xf]
    %v80 = vld [vmem:[%s2] sm:$0x1]
    %v82 = vlaneseq
    %v83 = vshrl.u32 %v82, 7
    %v84 = vsub.s32 0, %v83
    %v85 = vrot.slane %v80, %v84
    %v103 = vunpack.c.l.b16 %v40
    %v104 = vunpack.c.h.b16 %v40
    %v105 = vunpack.c.l.b16 %v41
    %v106 = vunpack.c.h.b16 %v41
    %v107 = vunpack.c.l.b16 %v42
    %v108 = vunpack.c.h.b16 %v42
    %v109 = vunpack.c.l.b16 %v43
    %v110 = vunpack.c.h.b16 %v43
    %v111 = vunpack.c.l.b16 %v44
    %v112 = vunpack.c.h.b16 %v44
    %v113 = vunpack.c.l.b16 %v45
    %v114 = vunpack.c.h.b16 %v45
    %v115 = vunpack.c.l.b16 %v46
    %v116 = vunpack.c.h.b16 %v46
    %v117 = vunpack.c.l.b16 %v47
    %v118 = vunpack.c.h.b16 %v47
    %v119 = vunpack.c.l.b16 %v48
    %v120 = vunpack.c.h.b16 %v48
    %v121 = vunpack.c.l.b16 %v49
    %v122 = vunpack.c.h.b16 %v49
    %v123 = vunpack.c.l.b16 %v50
    %v124 = vunpack.c.h.b16 %v50
    %v125 = vunpack.c.l.b16 %v51
    %v126 = vunpack.c.h.b16 %v51
    %v127 = vunpack.c.l.b16 %v52
    %v128 = vunpack.c.h.b16 %v52
    %v129 = vunpack.c.l.b16 %v53
    %v130 = vunpack.c.h.b16 %v53
    %v131 = vunpack.c.l.b16 %v54
    %v132 = vunpack.c.h.b16 %v54
    %v133 = vunpack.c.l.b16 %v55
    %v134 = vunpack.c.h.b16 %v55
    %v135 = vpack.c.b16 %v105, %v103
    %v136 = vpack.c.b16 %v106, %v104
    %v137 = vpack.c.b16 %v109, %v107
    %v138 = vpack.c.b16 %v110, %v108
    %v139 = vpack.c.b16 %v113, %v111
    %v140 = vpack.c.b16 %v114, %v112
    %v141 = vpack.c.b16 %v117, %v115
    %v142 = vpack.c.b16 %v118, %v116
    %v143 = vpack.c.b16 %v121, %v119
    %v144 = vpack.c.b16 %v122, %v120
    %v145 = vpack.c.b16 %v125, %v123
    %v146 = vpack.c.b16 %v126, %v124
    %v147 = vpack.c.b16 %v129, %v127
    %v148 = vpack.c.b16 %v130, %v128
    %v149 = vpack.c.b16 %v133, %v131
    %v150 = vpack.c.b16 %v134, %v132
    %v183 = vunpack.c.l.b16 %v56
    %v184 = vunpack.c.l.b16 %v57
    %v185 = vunpack.c.l.b16 %v58
    %v186 = vunpack.c.l.b16 %v59
    %v187 = vunpack.c.l.b16 %v60
    %v188 = vunpack.c.l.b16 %v61
    %v189 = vunpack.c.l.b16 %v62
    %v190 = vunpack.c.l.b16 %v63
    %v191 = vunpack.c.l.b16 %v64
    %v192 = vunpack.c.l.b16 %v65
    %v193 = vunpack.c.l.b16 %v66
    %v194 = vunpack.c.l.b16 %v67
    %v195 = vunpack.c.l.b16 %v68
    %v196 = vunpack.c.l.b16 %v69
    %v197 = vunpack.c.l.b16 %v70
    %v198 = vunpack.c.l.b16 %v71
    %v199 = vunpack.c.l.b16 %v72
    %v200 = vunpack.c.l.b16 %v73
    %v201 = vunpack.c.l.b16 %v74
    %v202 = vunpack.c.l.b16 %v75
    %v203 = vunpack.c.l.b16 %v76
    %v204 = vunpack.c.l.b16 %v77
    %v205 = vunpack.c.l.b16 %v78
    %v206 = vunpack.c.l.b16 %v79
    %v207 = vpack.c.b16 %v184, %v183
    %v208 = vpack.c.b16 %v186, %v185
    %v209 = vpack.c.b16 %v188, %v187
    %v210 = vpack.c.b16 %v190, %v189
    %v211 = vpack.c.b16 %v192, %v191
    %v212 = vpack.c.b16 %v194, %v193
    %v213 = vpack.c.b16 %v196, %v195
    %v214 = vpack.c.b16 %v198, %v197
    %v215 = vpack.c.b16 %v200, %v199
    %v216 = vpack.c.b16 %v202, %v201
    %v217 = vpack.c.b16 %v204, %v203
    %v218 = vpack.c.b16 %v206, %v205
    %vm231 = vcmask 523264
    %v233 = vsel %vm231, %v136, 0
    %v236 = vsel %vm231, %v138, 0
    %v239 = vsel %vm231, %v140, 0
    %v242 = vsel %vm231, %v142, 0
    %v245 = vsel %vm231, %v144, 0
    %v248 = vsel %vm231, %v146, 0
    %v251 = vsel %vm231, %v148, 0
    %v254 = vsel %vm231, %v150, 0
    %256 = vmatprep.subr.bf16.mxu0 0
    %257 = vmatpush1.bf16.msra.mxu0 %v207
    %258 = vmatprep.subr.bf16.mxu0 0
    %259 = vmatpush1.bf16.msra.mxu0 %v208
    %260 = vmatprep.subr.bf16.mxu0 0
    %261 = vmatpush1.bf16.msra.mxu0 %v209
    %262 = vmatprep.subr.bf16.mxu0 0
    %263 = vmatpush1.bf16.msra.mxu0 %v210
    %264 = vmatprep.subr.bf16.mxu0 0
    %265 = vmatpush1.bf16.msra.mxu0 %v211
    %266 = vmatprep.subr.bf16.mxu0 0
    %267 = vmatpush1.bf16.msra.mxu0 %v212
    %268 = vmatprep.subr.bf16.mxu0 0
    %269 = vmatpush1.bf16.msra.mxu0 %v213
    %270 = vmatprep.subr.bf16.mxu0 0
    %271 = vmatpush1.bf16.msra.mxu0 %v214
    %272 = vmatprep.subr.bf16.mxu0 0
    %273 = vmatpush1.bf16.msra.mxu0 %v215
    %274 = vmatprep.subr.bf16.mxu0 0
    %275 = vmatpush1.bf16.msra.mxu0 %v216
    %276 = vmatprep.subr.bf16.mxu0 0
    %277 = vmatpush1.bf16.msra.mxu0 %v217
    %278 = vmatprep.subr.bf16.mxu0 0
    %279 = vmatpush1.bf16.msra.mxu0 %v218
    %280 = vmatprep.subr.bf16.mxu0 0
    %281 = vmatpush1.bf16.msra.mxu0 0
    %282 = vmatprep.subr.bf16.mxu0 0
    %283 = vmatpush1.bf16.msra.mxu0 0
    %284 = vmatprep.subr.bf16.mxu0 0
    %285 = vmatpush1.bf16.msra.mxu0 0
    %286 = vmatprep.subr.bf16.mxu0 0
    %287 = vmatpush1.bf16.msra.mxu0 0
    %288 = vmatprep.mubr.bf16.mxu0 %v233
    %289 = vmatmul.mubr.bf16.gmra.mrb[0].mxu0 %v135
    %v290 = vpop.f32.mrb[0].mxu0
    %v291 = vadd.f32 %v85, %v290
    %v292 = vpop.f32.mrb[0].mxu0
    %v293 = vpop.f32.mrb[0].mxu0
    %v294 = vadd.f32 %v85, %v293
    %v295 = vpop.f32.mrb[0].mxu0
    %296 = vmatprep.mubr.bf16.mxu0 %v236
    %297 = vmatmul.mubr.bf16.gmra.mrb[0].mxu0 %v137
    %v298 = vpop.f32.mrb[0].mxu0
    %v299 = vadd.f32 %v85, %v298
    %v300 = vpop.f32.mrb[0].mxu0
    %v301 = vpop.f32.mrb[0].mxu0
    %v302 = vadd.f32 %v85, %v301
    %v303 = vpop.f32.mrb[0].mxu0
    %304 = vmatprep.mubr.bf16.mxu0 %v239
    %305 = vmatmul.mubr.bf16.gmra.mrb[0].mxu0 %v139
    %v306 = vpop.f32.mrb[0].mxu0
    %v307 = vadd.f32 %v85, %v306
    %v308 = vpop.f32.mrb[0].mxu0
    %v309 = vpop.f32.mrb[0].mxu0
    %v310 = vadd.f32 %v85, %v309
    %v311 = vpop.f32.mrb[0].mxu0
    %312 = vmatprep.mubr.bf16.mxu0 %v242
    %313 = vmatmul.mubr.bf16.gmra.mrb[0].mxu0 %v141
    %v314 = vpop.f32.mrb[0].mxu0
    %v315 = vadd.f32 %v85, %v314
    %v316 = vpop.f32.mrb[0].mxu0
    %v317 = vpop.f32.mrb[0].mxu0
    %v318 = vadd.f32 %v85, %v317
    %v319 = vpop.f32.mrb[0].mxu0
    %320 = vmatprep.mubr.bf16.mxu0 %v245
    %321 = vmatmul.mubr.bf16.gmra.mrb[0].mxu0 %v143
    %v322 = vpop.f32.mrb[0].mxu0
    %v323 = vadd.f32 %v85, %v322
    %v324 = vpop.f32.mrb[0].mxu0
    %v325 = vpop.f32.mrb[0].mxu0
    %v326 = vadd.f32 %v85, %v325
    %v327 = vpop.f32.mrb[0].mxu0
    %328 = vmatprep.mubr.bf16.mxu0 %v248
    %329 = vmatmul.mubr.bf16.gmra.mrb[0].mxu0 %v145
    %v330 = vpop.f32.mrb[0].mxu0
    %v331 = vadd.f32 %v85, %v330
    %v332 = vpop.f32.mrb[0].mxu0
    %v333 = vpop.f32.mrb[0].mxu0
    %v334 = vadd.f32 %v85, %v333
    %v335 = vpop.f32.mrb[0].mxu0
    %336 = vmatprep.mubr.bf16.mxu0 %v251
    %337 = vmatmul.mubr.bf16.gmra.mrb[0].mxu0 %v147
    %v338 = vpop.f32.mrb[0].mxu0
    %v339 = vadd.f32 %v85, %v338
    %v340 = vpop.f32.mrb[0].mxu0
    %v341 = vpop.f32.mrb[0].mxu0
    %v342 = vadd.f32 %v85, %v341
    %v343 = vpop.f32.mrb[0].mxu0
    %344 = vmatprep.mubr.bf16.mxu0 %v254
    %345 = vmatmul.mubr.bf16.gmra.mrb[0].mxu0 %v149
    %v346 = vpop.f32.mrb[0].mxu0
    %v347 = vadd.f32 %v85, %v346
    %v348 = vpop.f32.mrb[0].mxu0
    %v349 = vpop.f32.mrb[0].mxu0
    %v350 = vadd.f32 %v85, %v349
    %v351 = vpop.f32.mrb[0].mxu0
    %352 = vdwg.mxu0
    %v353 = vmax.f32 %v291, 0.0
    %v354 = vmax.f32 %v294, 0.0
    %v355 = vmax.f32 %v299, 0.0
    %v356 = vmax.f32 %v302, 0.0
    %v357 = vmax.f32 %v307, 0.0
    %v358 = vmax.f32 %v310, 0.0
    %v359 = vmax.f32 %v315, 0.0
    %v360 = vmax.f32 %v318, 0.0
    %v361 = vmax.f32 %v323, 0.0
    %v362 = vmax.f32 %v326, 0.0
    %v363 = vmax.f32 %v331, 0.0
    %v364 = vmax.f32 %v334, 0.0
    %v365 = vmax.f32 %v339, 0.0
    %v366 = vmax.f32 %v342, 0.0
    %v367 = vmax.f32 %v347, 0.0
    %v368 = vmax.f32 %v350, 0.0
    %v369 = vpack.c.bf16 %v354, %v353
    %v370 = vpack.c.bf16 %v356, %v355
    %v371 = vpack.c.bf16 %v358, %v357
    %v372 = vpack.c.bf16 %v360, %v359
    %v373 = vpack.c.bf16 %v362, %v361
    %v374 = vpack.c.bf16 %v364, %v363
    %v375 = vpack.c.bf16 %v366, %v365
    %v376 = vpack.c.bf16 %v368, %v367
    %v385 = vunpack.c.l.b16 %v369
    %v386 = vunpack.c.h.b16 %v369
    %v387 = vunpack.c.l.b16 %v370
    %v388 = vunpack.c.h.b16 %v370
    %v389 = vunpack.c.l.b16 %v371
    %v390 = vunpack.c.h.b16 %v371
    %v391 = vunpack.c.l.b16 %v372
    %v392 = vunpack.c.h.b16 %v372
    %v393 = vunpack.c.l.b16 %v373
    %v394 = vunpack.c.h.b16 %v373
    %v395 = vunpack.c.l.b16 %v374
    %v396 = vunpack.c.h.b16 %v374
    %v397 = vunpack.c.l.b16 %v375
    %v398 = vunpack.c.h.b16 %v375
    %v399 = vunpack.c.l.b16 %v376
    %v400 = vunpack.c.h.b16 %v376
    %v401 = vpack.c.b16 %v385, %v385
    %v402 = vpack.c.b16 %v386, %v386
    %v403 = vpack.c.b16 %v387, %v387
    %v404 = vpack.c.b16 %v388, %v388
    %v405 = vpack.c.b16 %v389, %v389
    %v406 = vpack.c.b16 %v390, %v390
    %v407 = vpack.c.b16 %v391, %v391
    %v408 = vpack.c.b16 %v392, %v392
    %v409 = vpack.c.b16 %v393, %v393
    %v410 = vpack.c.b16 %v394, %v394
    %v411 = vpack.c.b16 %v395, %v395
    %v412 = vpack.c.b16 %v396, %v396
    %v413 = vpack.c.b16 %v397, %v397
    %v414 = vpack.c.b16 %v398, %v398
    %v415 = vpack.c.b16 %v399, %v399
    %v416 = vpack.c.b16 %v400, %v400
    %v418 = vunpack.c.l.s4 1966171168
    %v419 = vunpack.c.0.s8 %v418
    %v420 = vlaneseq
    %v421 = vshrl.u32 %v420, 7
    %v422 = vsub.s32 %v419, %v421
    %v423 = vrot.slane %v401, %v422
    %v424 = vcombine.high %v423, %v423
    %v426 = vunpack.c.l.s4 1966171168
    %v427 = vunpack.c.0.s8 %v426
    %v428 = vlaneseq
    %v429 = vshrl.u32 %v428, 7
    %v430 = vsub.s32 %v427, %v429
    %v431 = vrot.slane %v423, %v430
    %v433 = vunpack.c.l.s4 1966171168
    %v434 = vunpack.c.0.s8 %v433
    %v435 = vlaneseq
    %v436 = vshrl.u32 %v435, 7
    %v437 = vsub.s32 %v434, %v436
    %v438 = vrot.slane %v424, %v437
    %v439 = vcombine.high %v431, %v431
    %v440 = vcombine.high %v438, %v438
    %v442 = vunpack.c.l.s4 1966171168
    %v443 = vunpack.c.0.s8 %v442
    %v444 = vlaneseq
    %v445 = vshrl.u32 %v444, 7
    %v446 = vsub.s32 %v443, %v445
    %v447 = vrot.slane %v403, %v446
    %v448 = vcombine.high %v447, %v447
    %v450 = vunpack.c.l.s4 1966171168
    %v451 = vunpack.c.0.s8 %v450
    %v452 = vlaneseq
    %v453 = vshrl.u32 %v452, 7
    %v454 = vsub.s32 %v451, %v453
    %v455 = vrot.slane %v447, %v454
    %v457 = vunpack.c.l.s4 1966171168
    %v458 = vunpack.c.0.s8 %v457
    %v459 = vlaneseq
    %v460 = vshrl.u32 %v459, 7
    %v461 = vsub.s32 %v458, %v460
    %v462 = vrot.slane %v448, %v461
    %v463 = vcombine.high %v455, %v455
    %v464 = vcombine.high %v462, %v462
    %v466 = vunpack.c.l.s4 1966171168
    %v467 = vunpack.c.0.s8 %v466
    %v468 = vlaneseq
    %v469 = vshrl.u32 %v468, 7
    %v470 = vsub.s32 %v467, %v469
    %v471 = vrot.slane %v405, %v470
    %v472 = vcombine.high %v471, %v471
    %v474 = vunpack.c.l.s4 1966171168
    %v475 = vunpack.c.0.s8 %v474
    %v476 = vlaneseq
    %v477 = vshrl.u32 %v476, 7
    %v478 = vsub.s32 %v475, %v477
    %v479 = vrot.slane %v471, %v478
    %v481 = vunpack.c.l.s4 1966171168
    %v482 = vunpack.c.0.s8 %v481
    %v483 = vlaneseq
    %v484 = vshrl.u32 %v483, 7
    %v485 = vsub.s32 %v482, %v484
    %v486 = vrot.slane %v472, %v485
    %v487 = vcombine.high %v479, %v479
    %v488 = vcombine.high %v486, %v486
    %v490 = vunpack.c.l.s4 1966171168
    %v491 = vunpack.c.0.s8 %v490
    %v492 = vlaneseq
    %v493 = vshrl.u32 %v492, 7
    %v494 = vsub.s32 %v491, %v493
    %v495 = vrot.slane %v407, %v494
    %v496 = vcombine.high %v495, %v495
    %v498 = vunpack.c.l.s4 1966171168
    %v499 = vunpack.c.0.s8 %v498
    %v500 = vlaneseq
    %v501 = vshrl.u32 %v500, 7
    %v502 = vsub.s32 %v499, %v501
    %v503 = vrot.slane %v495, %v502
    %v505 = vunpack.c.l.s4 1966171168
    %v506 = vunpack.c.0.s8 %v505
    %v507 = vlaneseq
    %v508 = vshrl.u32 %v507, 7
    %v509 = vsub.s32 %v506, %v508
    %v510 = vrot.slane %v496, %v509
    %v511 = vcombine.high %v503, %v503
    %v512 = vcombine.high %v510, %v510
    %v514 = vunpack.c.l.s4 1966171168
    %v515 = vunpack.c.0.s8 %v514
    %v516 = vlaneseq
    %v517 = vshrl.u32 %v516, 7
    %v518 = vsub.s32 %v515, %v517
    %v519 = vrot.slane %v409, %v518
    %v520 = vcombine.high %v519, %v519
    %v522 = vunpack.c.l.s4 1966171168
    %v523 = vunpack.c.0.s8 %v522
    %v524 = vlaneseq
    %v525 = vshrl.u32 %v524, 7
    %v526 = vsub.s32 %v523, %v525
    %v527 = vrot.slane %v519, %v526
    %v529 = vunpack.c.l.s4 1966171168
    %v530 = vunpack.c.0.s8 %v529
    %v531 = vlaneseq
    %v532 = vshrl.u32 %v531, 7
    %v533 = vsub.s32 %v530, %v532
    %v534 = vrot.slane %v520, %v533
    %v535 = vcombine.high %v527, %v527
    %v536 = vcombine.high %v534, %v534
    %v538 = vunpack.c.l.s4 1966171168
    %v539 = vunpack.c.0.s8 %v538
    %v540 = vlaneseq
    %v541 = vshrl.u32 %v540, 7
    %v542 = vsub.s32 %v539, %v541
    %v543 = vrot.slane %v411, %v542
    %v544 = vcombine.high %v543, %v543
    %v546 = vunpack.c.l.s4 1966171168
    %v547 = vunpack.c.0.s8 %v546
    %v548 = vlaneseq
    %v549 = vshrl.u32 %v548, 7
    %v550 = vsub.s32 %v547, %v549
    %v551 = vrot.slane %v543, %v550
    %v553 = vunpack.c.l.s4 1966171168
    %v554 = vunpack.c.0.s8 %v553
    %v555 = vlaneseq
    %v556 = vshrl.u32 %v555, 7
    %v557 = vsub.s32 %v554, %v556
    %v558 = vrot.slane %v544, %v557
    %v559 = vcombine.high %v551, %v551
    %v560 = vcombine.high %v558, %v558
    %v562 = vunpack.c.l.s4 1966171168
    %v563 = vunpack.c.0.s8 %v562
    %v564 = vlaneseq
    %v565 = vshrl.u32 %v564, 7
    %v566 = vsub.s32 %v563, %v565
    %v567 = vrot.slane %v413, %v566
    %v568 = vcombine.high %v567, %v567
    %v570 = vunpack.c.l.s4 1966171168
    %v571 = vunpack.c.0.s8 %v570
    %v572 = vlaneseq
    %v573 = vshrl.u32 %v572, 7
    %v574 = vsub.s32 %v571, %v573
    %v575 = vrot.slane %v567, %v574
    %v577 = vunpack.c.l.s4 1966171168
    %v578 = vunpack.c.0.s8 %v577
    %v579 = vlaneseq
    %v580 = vshrl.u32 %v579, 7
    %v581 = vsub.s32 %v578, %v580
    %v582 = vrot.slane %v568, %v581
    %v583 = vcombine.high %v575, %v575
    %v584 = vcombine.high %v582, %v582
    %v586 = vunpack.c.l.s4 1966171168
    %v587 = vunpack.c.0.s8 %v586
    %v588 = vlaneseq
    %v589 = vshrl.u32 %v588, 7
    %v590 = vsub.s32 %v587, %v589
    %v591 = vrot.slane %v415, %v590
    %v592 = vcombine.high %v591, %v591
    %v594 = vunpack.c.l.s4 1966171168
    %v595 = vunpack.c.0.s8 %v594
    %v596 = vlaneseq
    %v597 = vshrl.u32 %v596, 7
    %v598 = vsub.s32 %v595, %v597
    %v599 = vrot.slane %v591, %v598
    %v601 = vunpack.c.l.s4 1966171168
    %v602 = vunpack.c.0.s8 %v601
    %v603 = vlaneseq
    %v604 = vshrl.u32 %v603, 7
    %v605 = vsub.s32 %v602, %v604
    %v606 = vrot.slane %v592, %v605
    %v607 = vcombine.high %v599, %v599
    %v608 = vcombine.high %v606, %v606
    %v610 = vunpack.c.l.s4 1966171168
    %v611 = vunpack.c.0.s8 %v610
    %v612 = vlaneseq
    %v613 = vshrl.u32 %v612, 7
    %v614 = vsub.s32 %v611, %v613
    %v615 = vrot.slane %v402, %v614
    %v616 = vcombine.high %v615, %v615
    %v618 = vunpack.c.l.s4 1966171168
    %v619 = vunpack.c.0.s8 %v618
    %v620 = vlaneseq
    %v621 = vshrl.u32 %v620, 7
    %v622 = vsub.s32 %v619, %v621
    %v623 = vrot.slane %v615, %v622
    %v625 = vunpack.c.l.s4 1966171168
    %v626 = vunpack.c.0.s8 %v625
    %v627 = vlaneseq
    %v628 = vshrl.u32 %v627, 7
    %v629 = vsub.s32 %v626, %v628
    %v630 = vrot.slane %v616, %v629
    %v631 = vcombine.high %v623, %v623
    %v632 = vcombine.high %v630, %v630
    %v634 = vunpack.c.l.s4 1966171168
    %v635 = vunpack.c.0.s8 %v634
    %v636 = vlaneseq
    %v637 = vshrl.u32 %v636, 7
    %v638 = vsub.s32 %v635, %v637
    %v639 = vrot.slane %v404, %v638
    %v640 = vcombine.high %v639, %v639
    %v642 = vunpack.c.l.s4 1966171168
    %v643 = vunpack.c.0.s8 %v642
    %v644 = vlaneseq
    %v645 = vshrl.u32 %v644, 7
    %v646 = vsub.s32 %v643, %v645
    %v647 = vrot.slane %v639, %v646
    %v649 = vunpack.c.l.s4 1966171168
    %v650 = vunpack.c.0.s8 %v649
    %v651 = vlaneseq
    %v652 = vshrl.u32 %v651, 7
    %v653 = vsub.s32 %v650, %v652
    %v654 = vrot.slane %v640, %v653
    %v655 = vcombine.high %v647, %v647
    %v656 = vcombine.high %v654, %v654
    %v658 = vunpack.c.l.s4 1966171168
    %v659 = vunpack.c.0.s8 %v658
    %v660 = vlaneseq
    %v661 = vshrl.u32 %v660, 7
    %v662 = vsub.s32 %v659, %v661
    %v663 = vrot.slane %v406, %v662
    %v664 = vcombine.high %v663, %v663
    %v666 = vunpack.c.l.s4 1966171168
    %v667 = vunpack.c.0.s8 %v666
    %v668 = vlaneseq
    %v669 = vshrl.u32 %v668, 7
    %v670 = vsub.s32 %v667, %v669
    %v671 = vrot.slane %v663, %v670
    %v673 = vunpack.c.l.s4 1966171168
    %v674 = vunpack.c.0.s8 %v673
    %v675 = vlaneseq
    %v676 = vshrl.u32 %v675, 7
    %v677 = vsub.s32 %v674, %v676
    %v678 = vrot.slane %v664, %v677
    %v679 = vcombine.high %v671, %v671
    %v680 = vcombine.high %v678, %v678
    %v682 = vunpack.c.l.s4 1966171168
    %v683 = vunpack.c.0.s8 %v682
    %v684 = vlaneseq
    %v685 = vshrl.u32 %v684, 7
    %v686 = vsub.s32 %v683, %v685
    %v687 = vrot.slane %v408, %v686
    %v688 = vcombine.high %v687, %v687
    %v690 = vunpack.c.l.s4 1966171168
    %v691 = vunpack.c.0.s8 %v690
    %v692 = vlaneseq
    %v693 = vshrl.u32 %v692, 7
    %v694 = vsub.s32 %v691, %v693
    %v695 = vrot.slane %v687, %v694
    %v697 = vunpack.c.l.s4 1966171168
    %v698 = vunpack.c.0.s8 %v697
    %v699 = vlaneseq
    %v700 = vshrl.u32 %v699, 7
    %v701 = vsub.s32 %v698, %v700
    %v702 = vrot.slane %v688, %v701
    %v703 = vcombine.high %v695, %v695
    %v704 = vcombine.high %v702, %v702
    %v706 = vunpack.c.l.s4 1966171168
    %v707 = vunpack.c.0.s8 %v706
    %v708 = vlaneseq
    %v709 = vshrl.u32 %v708, 7
    %v710 = vsub.s32 %v707, %v709
    %v711 = vrot.slane %v410, %v710
    %v712 = vcombine.high %v711, %v711
    %v714 = vunpack.c.l.s4 1966171168
    %v715 = vunpack.c.0.s8 %v714
    %v716 = vlaneseq
    %v717 = vshrl.u32 %v716, 7
    %v718 = vsub.s32 %v715, %v717
    %v719 = vrot.slane %v711, %v718
    %v721 = vunpack.c.l.s4 1966171168
    %v722 = vunpack.c.0.s8 %v721
    %v723 = vlaneseq
    %v724 = vshrl.u32 %v723, 7
    %v725 = vsub.s32 %v722, %v724
    %v726 = vrot.slane %v712, %v725
    %v727 = vcombine.high %v719, %v719
    %v728 = vcombine.high %v726, %v726
    %v730 = vunpack.c.l.s4 1966171168
    %v731 = vunpack.c.0.s8 %v730
    %v732 = vlaneseq
    %v733 = vshrl.u32 %v732, 7
    %v734 = vsub.s32 %v731, %v733
    %v735 = vrot.slane %v412, %v734
    %v736 = vcombine.high %v735, %v735
    %v738 = vunpack.c.l.s4 1966171168
    %v739 = vunpack.c.0.s8 %v738
    %v740 = vlaneseq
    %v741 = vshrl.u32 %v740, 7
    %v742 = vsub.s32 %v739, %v741
    %v743 = vrot.slane %v735, %v742
    %v745 = vunpack.c.l.s4 1966171168
    %v746 = vunpack.c.0.s8 %v745
    %v747 = vlaneseq
    %v748 = vshrl.u32 %v747, 7
    %v749 = vsub.s32 %v746, %v748
    %v750 = vrot.slane %v736, %v749
    %v751 = vcombine.high %v743, %v743
    %v752 = vcombine.high %v750, %v750
    %v754 = vunpack.c.l.s4 1966171168
    %v755 = vunpack.c.0.s8 %v754
    %v756 = vlaneseq
    %v757 = vshrl.u32 %v756, 7
    %v758 = vsub.s32 %v755, %v757
    %v759 = vrot.slane %v414, %v758
    %v760 = vcombine.high %v759, %v759
    %v762 = vunpack.c.l.s4 1966171168
    %v763 = vunpack.c.0.s8 %v762
    %v764 = vlaneseq
    %v765 = vshrl.u32 %v764, 7
    %v766 = vsub.s32 %v763, %v765
    %v767 = vrot.slane %v759, %v766
    %v769 = vunpack.c.l.s4 1966171168
    %v770 = vunpack.c.0.s8 %v769
    %v771 = vlaneseq
    %v772 = vshrl.u32 %v771, 7
    %v773 = vsub.s32 %v770, %v772
    %v774 = vrot.slane %v760, %v773
    %v775 = vcombine.high %v767, %v767
    %v776 = vcombine.high %v774, %v774
    %v778 = vunpack.c.l.s4 1966171168
    %v779 = vunpack.c.0.s8 %v778
    %v780 = vlaneseq
    %v781 = vshrl.u32 %v780, 7
    %v782 = vsub.s32 %v779, %v781
    %v783 = vrot.slane %v416, %v782
    %v784 = vcombine.high %v783, %v783
    %v786 = vunpack.c.l.s4 1966171168
    %v787 = vunpack.c.0.s8 %v786
    %v788 = vlaneseq
    %v789 = vshrl.u32 %v788, 7
    %v790 = vsub.s32 %v787, %v789
    %v791 = vrot.slane %v783, %v790
    %v793 = vunpack.c.l.s4 1966171168
    %v794 = vunpack.c.0.s8 %v793
    %v795 = vlaneseq
    %v796 = vshrl.u32 %v795, 7
    %v797 = vsub.s32 %v794, %v796
    %v798 = vrot.slane %v784, %v797
    %v799 = vcombine.high %v791, %v791
    %v800 = vcombine.high %v798, %v798
    %v802 = vunpack.c.l.s4 1966171168
    %v803 = vunpack.c.0.s8 %v802
    %v804 = vlaneseq
    %v805 = vshrl.u32 %v804, 7
    %v806 = vsub.s32 %v803, %v805
    %v807 = vrot.slane %v431, %v806
    %v809 = vunpack.c.l.s4 1966171168
    %v810 = vunpack.c.0.s8 %v809
    %v811 = vlaneseq
    %v812 = vshrl.u32 %v811, 7
    %v813 = vsub.s32 %v810, %v812
    %v814 = vrot.slane %v807, %v813
    %v816 = vunpack.c.l.s4 1966171168
    %v817 = vunpack.c.0.s8 %v816
    %v818 = vlaneseq
    %v819 = vshrl.u32 %v818, 7
    %v820 = vsub.s32 %v817, %v819
    %v821 = vrot.slane %v438, %v820
    %v823 = vunpack.c.l.s4 1966171168
    %v824 = vunpack.c.0.s8 %v823
    %v825 = vlaneseq
    %v826 = vshrl.u32 %v825, 7
    %v827 = vsub.s32 %v824, %v826
    %v828 = vrot.slane %v821, %v827
    %v830 = vunpack.c.l.s4 1966171168
    %v831 = vunpack.c.0.s8 %v830
    %v832 = vlaneseq
    %v833 = vshrl.u32 %v832, 7
    %v834 = vsub.s32 %v831, %v833
    %v835 = vrot.slane %v439, %v834
    %v837 = vunpack.c.l.s4 1966171168
    %v838 = vunpack.c.0.s8 %v837
    %v839 = vlaneseq
    %v840 = vshrl.u32 %v839, 7
    %v841 = vsub.s32 %v838, %v840
    %v842 = vrot.slane %v835, %v841
    %v844 = vunpack.c.l.s4 1966171168
    %v845 = vunpack.c.0.s8 %v844
    %v846 = vlaneseq
    %v847 = vshrl.u32 %v846, 7
    %v848 = vsub.s32 %v845, %v847
    %v849 = vrot.slane %v455, %v848
    %v851 = vunpack.c.l.s4 1966171168
    %v852 = vunpack.c.0.s8 %v851
    %v853 = vlaneseq
    %v854 = vshrl.u32 %v853, 7
    %v855 = vsub.s32 %v852, %v854
    %v856 = vrot.slane %v849, %v855
    %v858 = vunpack.c.l.s4 1966171168
    %v859 = vunpack.c.0.s8 %v858
    %v860 = vlaneseq
    %v861 = vshrl.u32 %v860, 7
    %v862 = vsub.s32 %v859, %v861
    %v863 = vrot.slane %v462, %v862
    %v865 = vunpack.c.l.s4 1966171168
    %v866 = vunpack.c.0.s8 %v865
    %v867 = vlaneseq
    %v868 = vshrl.u32 %v867, 7
    %v869 = vsub.s32 %v866, %v868
    %v870 = vrot.slane %v863, %v869
    %v872 = vunpack.c.l.s4 1966171168
    %v873 = vunpack.c.0.s8 %v872
    %v874 = vlaneseq
    %v875 = vshrl.u32 %v874, 7
    %v876 = vsub.s32 %v873, %v875
    %v877 = vrot.slane %v463, %v876
    %v879 = vunpack.c.l.s4 1966171168
    %v880 = vunpack.c.0.s8 %v879
    %v881 = vlaneseq
    %v882 = vshrl.u32 %v881, 7
    %v883 = vsub.s32 %v880, %v882
    %v884 = vrot.slane %v877, %v883
    %v886 = vunpack.c.l.s4 1966171168
    %v887 = vunpack.c.0.s8 %v886
    %v888 = vlaneseq
    %v889 = vshrl.u32 %v888, 7
    %v890 = vsub.s32 %v887, %v889
    %v891 = vrot.slane %v479, %v890
    %v893 = vunpack.c.l.s4 1966171168
    %v894 = vunpack.c.0.s8 %v893
    %v895 = vlaneseq
    %v896 = vshrl.u32 %v895, 7
    %v897 = vsub.s32 %v894, %v896
    %v898 = vrot.slane %v891, %v897
    %v900 = vunpack.c.l.s4 1966171168
    %v901 = vunpack.c.0.s8 %v900
    %v902 = vlaneseq
    %v903 = vshrl.u32 %v902, 7
    %v904 = vsub.s32 %v901, %v903
    %v905 = vrot.slane %v486, %v904
    %v907 = vunpack.c.l.s4 1966171168
    %v908 = vunpack.c.0.s8 %v907
    %v909 = vlaneseq
    %v910 = vshrl.u32 %v909, 7
    %v911 = vsub.s32 %v908, %v910
    %v912 = vrot.slane %v905, %v911
    %v914 = vunpack.c.l.s4 1966171168
    %v915 = vunpack.c.0.s8 %v914
    %v916 = vlaneseq
    %v917 = vshrl.u32 %v916, 7
    %v918 = vsub.s32 %v915, %v917
    %v919 = vrot.slane %v487, %v918
    %v921 = vunpack.c.l.s4 1966171168
    %v922 = vunpack.c.0.s8 %v921
    %v923 = vlaneseq
    %v924 = vshrl.u32 %v923, 7
    %v925 = vsub.s32 %v922, %v924
    %v926 = vrot.slane %v919, %v925
    %v928 = vunpack.c.l.s4 1966171168
    %v929 = vunpack.c.0.s8 %v928
    %v930 = vlaneseq
    %v931 = vshrl.u32 %v930, 7
    %v932 = vsub.s32 %v929, %v931
    %v933 = vrot.slane %v527, %v932
    %v935 = vunpack.c.l.s4 1966171168
    %v936 = vunpack.c.0.s8 %v935
    %v937 = vlaneseq
    %v938 = vshrl.u32 %v937, 7
    %v939 = vsub.s32 %v936, %v938
    %v940 = vrot.slane %v933, %v939
    %v942 = vunpack.c.l.s4 1966171168
    %v943 = vunpack.c.0.s8 %v942
    %v944 = vlaneseq
    %v945 = vshrl.u32 %v944, 7
    %v946 = vsub.s32 %v943, %v945
    %v947 = vrot.slane %v534, %v946
    %v949 = vunpack.c.l.s4 1966171168
    %v950 = vunpack.c.0.s8 %v949
    %v951 = vlaneseq
    %v952 = vshrl.u32 %v951, 7
    %v953 = vsub.s32 %v950, %v952
    %v954 = vrot.slane %v947, %v953
    %v956 = vunpack.c.l.s4 1966171168
    %v957 = vunpack.c.0.s8 %v956
    %v958 = vlaneseq
    %v959 = vshrl.u32 %v958, 7
    %v960 = vsub.s32 %v957, %v959
    %v961 = vrot.slane %v535, %v960
    %v963 = vunpack.c.l.s4 1966171168
    %v964 = vunpack.c.0.s8 %v963
    %v965 = vlaneseq
    %v966 = vshrl.u32 %v965, 7
    %v967 = vsub.s32 %v964, %v966
    %v968 = vrot.slane %v961, %v967
    %v970 = vunpack.c.l.s4 1966171168
    %v971 = vunpack.c.0.s8 %v970
    %v972 = vlaneseq
    %v973 = vshrl.u32 %v972, 7
    %v974 = vsub.s32 %v971, %v973
    %v975 = vrot.slane %v551, %v974
    %v977 = vunpack.c.l.s4 1966171168
    %v978 = vunpack.c.0.s8 %v977
    %v979 = vlaneseq
    %v980 = vshrl.u32 %v979, 7
    %v981 = vsub.s32 %v978, %v980
    %v982 = vrot.slane %v975, %v981
    %v984 = vunpack.c.l.s4 1966171168
    %v985 = vunpack.c.0.s8 %v984
    %v986 = vlaneseq
    %v987 = vshrl.u32 %v986, 7
    %v988 = vsub.s32 %v985, %v987
    %v989 = vrot.slane %v558, %v988
    %v991 = vunpack.c.l.s4 1966171168
    %v992 = vunpack.c.0.s8 %v991
    %v993 = vlaneseq
    %v994 = vshrl.u32 %v993, 7
    %v995 = vsub.s32 %v992, %v994
    %v996 = vrot.slane %v989, %v995
    %v998 = vunpack.c.l.s4 1966171168
    %v999 = vunpack.c.0.s8 %v998
    %v1000 = vlaneseq
    %v1001 = vshrl.u32 %v1000, 7
    %v1002 = vsub.s32 %v999, %v1001
    %v1003 = vrot.slane %v559, %v1002
    %v1005 = vunpack.c.l.s4 1966171168
    %v1006 = vunpack.c.0.s8 %v1005
    %v1007 = vlaneseq
    %v1008 = vshrl.u32 %v1007, 7
    %v1009 = vsub.s32 %v1006, %v1008
    %v1010 = vrot.slane %v1003, %v1009
    %v1012 = vunpack.c.l.s4 1966171168
    %v1013 = vunpack.c.0.s8 %v1012
    %v1014 = vlaneseq
    %v1015 = vshrl.u32 %v1014, 7
    %v1016 = vsub.s32 %v1013, %v1015
    %v1017 = vrot.slane %v575, %v1016
    %v1019 = vunpack.c.l.s4 1966171168
    %v1020 = vunpack.c.0.s8 %v1019
    %v1021 = vlaneseq
    %v1022 = vshrl.u32 %v1021, 7
    %v1023 = vsub.s32 %v1020, %v1022
    %v1024 = vrot.slane %v1017, %v1023
    %v1026 = vunpack.c.l.s4 1966171168
    %v1027 = vunpack.c.0.s8 %v1026
    %v1028 = vlaneseq
    %v1029 = vshrl.u32 %v1028, 7
    %v1030 = vsub.s32 %v1027, %v1029
    %v1031 = vrot.slane %v582, %v1030
    %v1033 = vunpack.c.l.s4 1966171168
    %v1034 = vunpack.c.0.s8 %v1033
    %v1035 = vlaneseq
    %v1036 = vshrl.u32 %v1035, 7
    %v1037 = vsub.s32 %v1034, %v1036
    %v1038 = vrot.slane %v1031, %v1037
    %v1040 = vunpack.c.l.s4 1966171168
    %v1041 = vunpack.c.0.s8 %v1040
    %v1042 = vlaneseq
    %v1043 = vshrl.u32 %v1042, 7
    %v1044 = vsub.s32 %v1041, %v1043
    %v1045 = vrot.slane %v583, %v1044
    %v1047 = vunpack.c.l.s4 1966171168
    %v1048 = vunpack.c.0.s8 %v1047
    %v1049 = vlaneseq
    %v1050 = vshrl.u32 %v1049, 7
    %v1051 = vsub.s32 %v1048, %v1050
    %v1052 = vrot.slane %v1045, %v1051
    %v1053 = vunpack.c.l.b16 %v814
    %v1054 = vunpack.c.l.b16 %v828
    %v1055 = vunpack.c.l.b16 %v842
    %v1056 = vunpack.c.l.b16 %v856
    %v1057 = vunpack.c.l.b16 %v870
    %v1058 = vunpack.c.l.b16 %v884
    %v1059 = vunpack.c.l.b16 %v898
    %v1060 = vunpack.c.l.b16 %v912
    %v1061 = vunpack.c.l.b16 %v926
    %v1062 = vunpack.c.l.b16 %v940
    %v1063 = vunpack.c.l.b16 %v954
    %v1064 = vunpack.c.l.b16 %v968
    %v1065 = vunpack.c.l.b16 %v982
    %v1066 = vunpack.c.l.b16 %v996
    %v1067 = vunpack.c.l.b16 %v1010
    %v1068 = vunpack.c.l.b16 %v1024
    %v1069 = vunpack.c.l.b16 %v1038
    %v1070 = vunpack.c.l.b16 %v1052
    %v1071 = vrot.slane %v1054, 7
    %vm1072 = vcmask 1041409
    %v1073 = vsel %vm1072, %v1071, %v1053
    %v1074 = vrot.slane %v1055, 6
    %vm1075 = vcmask 1042434
    %v1076 = vsel %vm1075, %v1074, %v1073
    %v1077 = vrot.slane %v1057, 7
    %v1078 = vsel %vm1072, %v1077, %v1056
    %v1079 = vrot.slane %v1058, 6
    %v1080 = vsel %vm1075, %v1079, %v1078
    %v1081 = vrot.slane %v1060, 7
    %v1082 = vsel %vm1072, %v1081, %v1059
    %v1083 = vrot.slane %v1061, 6
    %v1084 = vsel %vm1075, %v1083, %v1082
    %v1085 = vrot.slane %v1063, 7
    %v1086 = vsel %vm1072, %v1085, %v1062
    %v1087 = vrot.slane %v1064, 6
    %v1088 = vsel %vm1075, %v1087, %v1086
    %v1089 = vrot.slane %v1066, 7
    %v1090 = vsel %vm1072, %v1089, %v1065
    %v1091 = vrot.slane %v1067, 6
    %v1092 = vsel %vm1075, %v1091, %v1090
    %v1093 = vrot.slane %v1069, 7
    %v1094 = vsel %vm1072, %v1093, %v1068
    %v1095 = vrot.slane %v1070, 6
    %v1096 = vsel %vm1075, %v1095, %v1094
    %v1097 = vpack.c.b16 %v1076, %v1076
    %v1098 = vpack.c.b16 %v1080, %v1080
    %v1099 = vpack.c.b16 %v1084, %v1084
    %v1100 = vpack.c.b16 %v1088, %v1088
    %v1101 = vpack.c.b16 %v1092, %v1092
    %v1102 = vpack.c.b16 %v1096, %v1096
    %v1103 = vrot.slane %v1053, 1
    %v1104 = vsel %vm1072, %v1054, %v1103
    %v1105 = vrot.slane %v1055, 7
    %v1106 = vsel %vm1075, %v1105, %v1104
    %v1107 = vrot.slane %v1056, 1
    %v1108 = vsel %vm1072, %v1057, %v1107
    %v1109 = vrot.slane %v1058, 7
    %v1110 = vsel %vm1075, %v1109, %v1108
    %v1111 = vrot.slane %v1059, 1
    %v1112 = vsel %vm1072, %v1060, %v1111
    %v1113 = vrot.slane %v1061, 7
    %v1114 = vsel %vm1075, %v1113, %v1112
    %v1115 = vrot.slane %v1062, 1
    %v1116 = vsel %vm1072, %v1063, %v1115
    %v1117 = vrot.slane %v1064, 7
    %v1118 = vsel %vm1075, %v1117, %v1116
    %v1119 = vrot.slane %v1065, 1
    %v1120 = vsel %vm1072, %v1066, %v1119
    %v1121 = vrot.slane %v1067, 7
    %v1122 = vsel %vm1075, %v1121, %v1120
    %v1123 = vrot.slane %v1068, 1
    %v1124 = vsel %vm1072, %v1069, %v1123
    %v1125 = vrot.slane %v1070, 7
    %v1126 = vsel %vm1075, %v1125, %v1124
    %v1127 = vpack.c.b16 %v1106, %v1106
    %v1128 = vpack.c.b16 %v1110, %v1110
    %v1129 = vpack.c.b16 %v1114, %v1114
    %v1130 = vpack.c.b16 %v1118, %v1118
    %v1131 = vpack.c.b16 %v1122, %v1122
    %v1132 = vpack.c.b16 %v1126, %v1126
    %1133 = vrot.lane.b32.xlu0 %v1127, 32
    %v1134 = vpop.permute.xlu0 %1133
    %1135 = vrot.lane.b32.xlu0 %v1128, 32
    %v1136 = vpop.permute.xlu0 %1135
    %1137 = vrot.lane.b32.xlu0 %v1129, 32
    %v1138 = vpop.permute.xlu0 %1137
    %1139 = vrot.lane.b32.xlu0 %v1130, 32
    %v1140 = vpop.permute.xlu0 %1139
    %1141 = vrot.lane.b32.xlu0 %v1131, 32
    %v1142 = vpop.permute.xlu0 %1141
    %1143 = vrot.lane.b32.xlu0 %v1132, 32
    %v1144 = vpop.permute.xlu0 %1143
    %v1146 = vunpack.c.l.s4 1966171168
    %v1147 = vunpack.c.0.s8 %v1146
    %v1148 = vlaneseq
    %v1149 = vshrl.u32 %v1148, 7
    %v1150 = vsub.s32 %v1147, %v1149
    %v1151 = vrot.slane %v440, %v1150
    %v1153 = vunpack.c.l.s4 1966171168
    %v1154 = vunpack.c.0.s8 %v1153
    %v1155 = vlaneseq
    %v1156 = vshrl.u32 %v1155, 7
    %v1157 = vsub.s32 %v1154, %v1156
    %v1158 = vrot.slane %v1151, %v1157
    %v1160 = vunpack.c.l.s4 1966171168
    %v1161 = vunpack.c.0.s8 %v1160
    %v1162 = vlaneseq
    %v1163 = vshrl.u32 %v1162, 7
    %v1164 = vsub.s32 %v1161, %v1163
    %v1165 = vrot.slane %v464, %v1164
    %v1167 = vunpack.c.l.s4 1966171168
    %v1168 = vunpack.c.0.s8 %v1167
    %v1169 = vlaneseq
    %v1170 = vshrl.u32 %v1169, 7
    %v1171 = vsub.s32 %v1168, %v1170
    %v1172 = vrot.slane %v1165, %v1171
    %v1174 = vunpack.c.l.s4 1966171168
    %v1175 = vunpack.c.0.s8 %v1174
    %v1176 = vlaneseq
    %v1177 = vshrl.u32 %v1176, 7
    %v1178 = vsub.s32 %v1175, %v1177
    %v1179 = vrot.slane %v488, %v1178
    %v1181 = vunpack.c.l.s4 1966171168
    %v1182 = vunpack.c.0.s8 %v1181
    %v1183 = vlaneseq
    %v1184 = vshrl.u32 %v1183, 7
    %v1185 = vsub.s32 %v1182, %v1184
    %v1186 = vrot.slane %v1179, %v1185
    %v1188 = vunpack.c.l.s4 1966171168
    %v1189 = vunpack.c.0.s8 %v1188
    %v1190 = vlaneseq
    %v1191 = vshrl.u32 %v1190, 7
    %v1192 = vsub.s32 %v1189, %v1191
    %v1193 = vrot.slane %v536, %v1192
    %v1195 = vunpack.c.l.s4 1966171168
    %v1196 = vunpack.c.0.s8 %v1195
    %v1197 = vlaneseq
    %v1198 = vshrl.u32 %v1197, 7
    %v1199 = vsub.s32 %v1196, %v1198
    %v1200 = vrot.slane %v1193, %v1199
    %v1202 = vunpack.c.l.s4 1966171168
    %v1203 = vunpack.c.0.s8 %v1202
    %v1204 = vlaneseq
    %v1205 = vshrl.u32 %v1204, 7
    %v1206 = vsub.s32 %v1203, %v1205
    %v1207 = vrot.slane %v560, %v1206
    %v1209 = vunpack.c.l.s4 1966171168
    %v1210 = vunpack.c.0.s8 %v1209
    %v1211 = vlaneseq
    %v1212 = vshrl.u32 %v1211, 7
    %v1213 = vsub.s32 %v1210, %v1212
    %v1214 = vrot.slane %v1207, %v1213
    %v1216 = vunpack.c.l.s4 1966171168
    %v1217 = vunpack.c.0.s8 %v1216
    %v1218 = vlaneseq
    %v1219 = vshrl.u32 %v1218, 7
    %v1220 = vsub.s32 %v1217, %v1219
    %v1221 = vrot.slane %v584, %v1220
    %v1223 = vunpack.c.l.s4 1966171168
    %v1224 = vunpack.c.0.s8 %v1223
    %v1225 = vlaneseq
    %v1226 = vshrl.u32 %v1225, 7
    %v1227 = vsub.s32 %v1224, %v1226
    %v1228 = vrot.slane %v1221, %v1227
    %v1229 = vunpack.c.l.b16 %v1158
    %v1230 = vunpack.c.l.b16 %v1172
    %v1231 = vunpack.c.l.b16 %v1186
    %v1232 = vunpack.c.l.b16 %v1200
    %v1233 = vunpack.c.l.b16 %v1214
    %v1234 = vunpack.c.l.b16 %v1228
    %v1235 = vsel %vm1072, %v1105, %v1054
    %v1236 = vrot.slane %v1229, 6
    %v1237 = vsel %vm1075, %v1236, %v1235
    %v1238 = vsel %vm1072, %v1109, %v1057
    %v1239 = vrot.slane %v1230, 6
    %v1240 = vsel %vm1075, %v1239, %v1238
    %v1241 = vsel %vm1072, %v1113, %v1060
    %v1242 = vrot.slane %v1231, 6
    %v1243 = vsel %vm1075, %v1242, %v1241
    %v1244 = vsel %vm1072, %v1117, %v1063
    %v1245 = vrot.slane %v1232, 6
    %v1246 = vsel %vm1075, %v1245, %v1244
    %v1247 = vsel %vm1072, %v1121, %v1066
    %v1248 = vrot.slane %v1233, 6
    %v1249 = vsel %vm1075, %v1248, %v1247
    %v1250 = vsel %vm1072, %v1125, %v1069
    %v1251 = vrot.slane %v1234, 6
    %v1252 = vsel %vm1075, %v1251, %v1250
    %v1253 = vpack.c.b16 %v1237, %v1237
    %v1254 = vpack.c.b16 %v1240, %v1240
    %v1255 = vpack.c.b16 %v1243, %v1243
    %v1256 = vpack.c.b16 %v1246, %v1246
    %v1257 = vpack.c.b16 %v1249, %v1249
    %v1258 = vpack.c.b16 %v1252, %v1252
    %1259 = vrot.lane.b32.xlu0 %v1253, 64
    %v1260 = vpop.permute.xlu0 %1259
    %1261 = vrot.lane.b32.xlu0 %v1254, 64
    %v1262 = vpop.permute.xlu0 %1261
    %1263 = vrot.lane.b32.xlu0 %v1255, 64
    %v1264 = vpop.permute.xlu0 %1263
    %1265 = vrot.lane.b32.xlu0 %v1256, 64
    %v1266 = vpop.permute.xlu0 %1265
    %1267 = vrot.lane.b32.xlu0 %v1257, 64
    %v1268 = vpop.permute.xlu0 %1267
    %1269 = vrot.lane.b32.xlu0 %v1258, 64
    %v1270 = vpop.permute.xlu0 %1269
    %v1271 = vrot.slane %v1054, 1
    %v1272 = vsel %vm1072, %v1055, %v1271
    %v1273 = vrot.slane %v1229, 7
    %v1274 = vsel %vm1075, %v1273, %v1272
    %v1275 = vrot.slane %v1057, 1
    %v1276 = vsel %vm1072, %v1058, %v1275
    %v1277 = vrot.slane %v1230, 7
    %v1278 = vsel %vm1075, %v1277, %v1276
    %v1279 = vrot.slane %v1060, 1
    %v1280 = vsel %vm1072, %v1061, %v1279
    %v1281 = vrot.slane %v1231, 7
    %v1282 = vsel %vm1075, %v1281, %v1280
    %v1283 = vrot.slane %v1063, 1
    %v1284 = vsel %vm1072, %v1064, %v1283
    %v1285 = vrot.slane %v1232, 7
    %v1286 = vsel %vm1075, %v1285, %v1284
    %v1287 = vrot.slane %v1066, 1
    %v1288 = vsel %vm1072, %v1067, %v1287
    %v1289 = vrot.slane %v1233, 7
    %v1290 = vsel %vm1075, %v1289, %v1288
    %v1291 = vrot.slane %v1069, 1
    %v1292 = vsel %vm1072, %v1070, %v1291
    %v1293 = vrot.slane %v1234, 7
    %v1294 = vsel %vm1075, %v1293, %v1292
    %v1295 = vpack.c.b16 %v1274, %v1274
    %v1296 = vpack.c.b16 %v1278, %v1278
    %v1297 = vpack.c.b16 %v1282, %v1282
    %v1298 = vpack.c.b16 %v1286, %v1286
    %v1299 = vpack.c.b16 %v1290, %v1290
    %v1300 = vpack.c.b16 %v1294, %v1294
    %1301 = vrot.lane.b32.xlu0 %v1295, 96
    %v1302 = vpop.permute.xlu0 %1301
    %1303 = vrot.lane.b32.xlu0 %v1296, 96
    %v1304 = vpop.permute.xlu0 %1303
    %1305 = vrot.lane.b32.xlu0 %v1297, 96
    %v1306 = vpop.permute.xlu0 %1305
    %1307 = vrot.lane.b32.xlu0 %v1298, 96
    %v1308 = vpop.permute.xlu0 %1307
    %1309 = vrot.lane.b32.xlu0 %v1299, 96
    %v1310 = vpop.permute.xlu0 %1309
    %1311 = vrot.lane.b32.xlu0 %v1300, 96
    %v1312 = vpop.permute.xlu0 %1311
    %v1314 = vunpack.c.l.s4 1966171168
    %v1315 = vunpack.c.0.s8 %v1314
    %v1316 = vlaneseq
    %v1317 = vshrl.u32 %v1316, 7
    %v1318 = vsub.s32 %v1315, %v1317
    %v1319 = vrot.slane %v623, %v1318
    %v1321 = vunpack.c.l.s4 1966171168
    %v1322 = vunpack.c.0.s8 %v1321
    %v1323 = vlaneseq
    %v1324 = vshrl.u32 %v1323, 7
    %v1325 = vsub.s32 %v1322, %v1324
    %v1326 = vrot.slane %v1319, %v1325
    %v1328 = vunpack.c.l.s4 1966171168
    %v1329 = vunpack.c.0.s8 %v1328
    %v1330 = vlaneseq
    %v1331 = vshrl.u32 %v1330, 7
    %v1332 = vsub.s32 %v1329, %v1331
    %v1333 = vrot.slane %v630, %v1332
    %v1335 = vunpack.c.l.s4 1966171168
    %v1336 = vunpack.c.0.s8 %v1335
    %v1337 = vlaneseq
    %v1338 = vshrl.u32 %v1337, 7
    %v1339 = vsub.s32 %v1336, %v1338
    %v1340 = vrot.slane %v1333, %v1339
    %v1342 = vunpack.c.l.s4 1966171168
    %v1343 = vunpack.c.0.s8 %v1342
    %v1344 = vlaneseq
    %v1345 = vshrl.u32 %v1344, 7
    %v1346 = vsub.s32 %v1343, %v1345
    %v1347 = vrot.slane %v631, %v1346
    %v1349 = vunpack.c.l.s4 1966171168
    %v1350 = vunpack.c.0.s8 %v1349
    %v1351 = vlaneseq
    %v1352 = vshrl.u32 %v1351, 7
    %v1353 = vsub.s32 %v1350, %v1352
    %v1354 = vrot.slane %v1347, %v1353
    %v1356 = vunpack.c.l.s4 1966171168
    %v1357 = vunpack.c.0.s8 %v1356
    %v1358 = vlaneseq
    %v1359 = vshrl.u32 %v1358, 7
    %v1360 = vsub.s32 %v1357, %v1359
    %v1361 = vrot.slane %v647, %v1360
    %v1363 = vunpack.c.l.s4 1966171168
    %v1364 = vunpack.c.0.s8 %v1363
    %v1365 = vlaneseq
    %v1366 = vshrl.u32 %v1365, 7
    %v1367 = vsub.s32 %v1364, %v1366
    %v1368 = vrot.slane %v1361, %v1367
    %v1370 = vunpack.c.l.s4 1966171168
    %v1371 = vunpack.c.0.s8 %v1370
    %v1372 = vlaneseq
    %v1373 = vshrl.u32 %v1372, 7
    %v1374 = vsub.s32 %v1371, %v1373
    %v1375 = vrot.slane %v654, %v1374
    %v1377 = vunpack.c.l.s4 1966171168
    %v1378 = vunpack.c.0.s8 %v1377
    %v1379 = vlaneseq
    %v1380 = vshrl.u32 %v1379, 7
    %v1381 = vsub.s32 %v1378, %v1380
    %v1382 = vrot.slane %v1375, %v1381
    %v1384 = vunpack.c.l.s4 1966171168
    %v1385 = vunpack.c.0.s8 %v1384
    %v1386 = vlaneseq
    %v1387 = vshrl.u32 %v1386, 7
    %v1388 = vsub.s32 %v1385, %v1387
    %v1389 = vrot.slane %v655, %v1388
    %v1391 = vunpack.c.l.s4 1966171168
    %v1392 = vunpack.c.0.s8 %v1391
    %v1393 = vlaneseq
    %v1394 = vshrl.u32 %v1393, 7
    %v1395 = vsub.s32 %v1392, %v1394
    %v1396 = vrot.slane %v1389, %v1395
    %v1398 = vunpack.c.l.s4 1966171168
    %v1399 = vunpack.c.0.s8 %v1398
    %v1400 = vlaneseq
    %v1401 = vshrl.u32 %v1400, 7
    %v1402 = vsub.s32 %v1399, %v1401
    %v1403 = vrot.slane %v671, %v1402
    %v1405 = vunpack.c.l.s4 1966171168
    %v1406 = vunpack.c.0.s8 %v1405
    %v1407 = vlaneseq
    %v1408 = vshrl.u32 %v1407, 7
    %v1409 = vsub.s32 %v1406, %v1408
    %v1410 = vrot.slane %v1403, %v1409
    %v1412 = vunpack.c.l.s4 1966171168
    %v1413 = vunpack.c.0.s8 %v1412
    %v1414 = vlaneseq
    %v1415 = vshrl.u32 %v1414, 7
    %v1416 = vsub.s32 %v1413, %v1415
    %v1417 = vrot.slane %v678, %v1416
    %v1419 = vunpack.c.l.s4 1966171168
    %v1420 = vunpack.c.0.s8 %v1419
    %v1421 = vlaneseq
    %v1422 = vshrl.u32 %v1421, 7
    %v1423 = vsub.s32 %v1420, %v1422
    %v1424 = vrot.slane %v1417, %v1423
    %v1426 = vunpack.c.l.s4 1966171168
    %v1427 = vunpack.c.0.s8 %v1426
    %v1428 = vlaneseq
    %v1429 = vshrl.u32 %v1428, 7
    %v1430 = vsub.s32 %v1427, %v1429
    %v1431 = vrot.slane %v679, %v1430
    %v1433 = vunpack.c.l.s4 1966171168
    %v1434 = vunpack.c.0.s8 %v1433
    %v1435 = vlaneseq
    %v1436 = vshrl.u32 %v1435, 7
    %v1437 = vsub.s32 %v1434, %v1436
    %v1438 = vrot.slane %v1431, %v1437
    %v1440 = vunpack.c.l.s4 1966171168
    %v1441 = vunpack.c.0.s8 %v1440
    %v1442 = vlaneseq
    %v1443 = vshrl.u32 %v1442, 7
    %v1444 = vsub.s32 %v1441, %v1443
    %v1445 = vrot.slane %v719, %v1444
    %v1447 = vunpack.c.l.s4 1966171168
    %v1448 = vunpack.c.0.s8 %v1447
    %v1449 = vlaneseq
    %v1450 = vshrl.u32 %v1449, 7
    %v1451 = vsub.s32 %v1448, %v1450
    %v1452 = vrot.slane %v1445, %v1451
    %v1454 = vunpack.c.l.s4 1966171168
    %v1455 = vunpack.c.0.s8 %v1454
    %v1456 = vlaneseq
    %v1457 = vshrl.u32 %v1456, 7
    %v1458 = vsub.s32 %v1455, %v1457
    %v1459 = vrot.slane %v726, %v1458
    %v1461 = vunpack.c.l.s4 1966171168
    %v1462 = vunpack.c.0.s8 %v1461
    %v1463 = vlaneseq
    %v1464 = vshrl.u32 %v1463, 7
    %v1465 = vsub.s32 %v1462, %v1464
    %v1466 = vrot.slane %v1459, %v1465
    %v1468 = vunpack.c.l.s4 1966171168
    %v1469 = vunpack.c.0.s8 %v1468
    %v1470 = vlaneseq
    %v1471 = vshrl.u32 %v1470, 7
    %v1472 = vsub.s32 %v1469, %v1471
    %v1473 = vrot.slane %v727, %v1472
    %v1475 = vunpack.c.l.s4 1966171168
    %v1476 = vunpack.c.0.s8 %v1475
    %v1477 = vlaneseq
    %v1478 = vshrl.u32 %v1477, 7
    %v1479 = vsub.s32 %v1476, %v1478
    %v1480 = vrot.slane %v1473, %v1479
    %v1482 = vunpack.c.l.s4 1966171168
    %v1483 = vunpack.c.0.s8 %v1482
    %v1484 = vlaneseq
    %v1485 = vshrl.u32 %v1484, 7
    %v1486 = vsub.s32 %v1483, %v1485
    %v1487 = vrot.slane %v743, %v1486
    %v1489 = vunpack.c.l.s4 1966171168
    %v1490 = vunpack.c.0.s8 %v1489
    %v1491 = vlaneseq
    %v1492 = vshrl.u32 %v1491, 7
    %v1493 = vsub.s32 %v1490, %v1492
    %v1494 = vrot.slane %v1487, %v1493
    %v1496 = vunpack.c.l.s4 1966171168
    %v1497 = vunpack.c.0.s8 %v1496
    %v1498 = vlaneseq
    %v1499 = vshrl.u32 %v1498, 7
    %v1500 = vsub.s32 %v1497, %v1499
    %v1501 = vrot.slane %v750, %v1500
    %v1503 = vunpack.c.l.s4 1966171168
    %v1504 = vunpack.c.0.s8 %v1503
    %v1505 = vlaneseq
    %v1506 = vshrl.u32 %v1505, 7
    %v1507 = vsub.s32 %v1504, %v1506
    %v1508 = vrot.slane %v1501, %v1507
    %v1510 = vunpack.c.l.s4 1966171168
    %v1511 = vunpack.c.0.s8 %v1510
    %v1512 = vlaneseq
    %v1513 = vshrl.u32 %v1512, 7
    %v1514 = vsub.s32 %v1511, %v1513
    %v1515 = vrot.slane %v751, %v1514
    %v1517 = vunpack.c.l.s4 1966171168
    %v1518 = vunpack.c.0.s8 %v1517
    %v1519 = vlaneseq
    %v1520 = vshrl.u32 %v1519, 7
    %v1521 = vsub.s32 %v1518, %v1520
    %v1522 = vrot.slane %v1515, %v1521
    %v1524 = vunpack.c.l.s4 1966171168
    %v1525 = vunpack.c.0.s8 %v1524
    %v1526 = vlaneseq
    %v1527 = vshrl.u32 %v1526, 7
    %v1528 = vsub.s32 %v1525, %v1527
    %v1529 = vrot.slane %v767, %v1528
    %v1531 = vunpack.c.l.s4 1966171168
    %v1532 = vunpack.c.0.s8 %v1531
    %v1533 = vlaneseq
    %v1534 = vshrl.u32 %v1533, 7
    %v1535 = vsub.s32 %v1532, %v1534
    %v1536 = vrot.slane %v1529, %v1535
    %v1538 = vunpack.c.l.s4 1966171168
    %v1539 = vunpack.c.0.s8 %v1538
    %v1540 = vlaneseq
    %v1541 = vshrl.u32 %v1540, 7
    %v1542 = vsub.s32 %v1539, %v1541
    %v1543 = vrot.slane %v774, %v1542
    %v1545 = vunpack.c.l.s4 1966171168
    %v1546 = vunpack.c.0.s8 %v1545
    %v1547 = vlaneseq
    %v1548 = vshrl.u32 %v1547, 7
    %v1549 = vsub.s32 %v1546, %v1548
    %v1550 = vrot.slane %v1543, %v1549
    %v1552 = vunpack.c.l.s4 1966171168
    %v1553 = vunpack.c.0.s8 %v1552
    %v1554 = vlaneseq
    %v1555 = vshrl.u32 %v1554, 7
    %v1556 = vsub.s32 %v1553, %v1555
    %v1557 = vrot.slane %v775, %v1556
    %v1559 = vunpack.c.l.s4 1966171168
    %v1560 = vunpack.c.0.s8 %v1559
    %v1561 = vlaneseq
    %v1562 = vshrl.u32 %v1561, 7
    %v1563 = vsub.s32 %v1560, %v1562
    %v1564 = vrot.slane %v1557, %v1563
    %v1565 = vunpack.c.l.b16 %v1326
    %v1566 = vunpack.c.l.b16 %v1340
    %v1567 = vunpack.c.l.b16 %v1354
    %v1568 = vunpack.c.l.b16 %v1368
    %v1569 = vunpack.c.l.b16 %v1382
    %v1570 = vunpack.c.l.b16 %v1396
    %v1571 = vunpack.c.l.b16 %v1410
    %v1572 = vunpack.c.l.b16 %v1424
    %v1573 = vunpack.c.l.b16 %v1438
    %v1574 = vunpack.c.l.b16 %v1452
    %v1575 = vunpack.c.l.b16 %v1466
    %v1576 = vunpack.c.l.b16 %v1480
    %v1577 = vunpack.c.l.b16 %v1494
    %v1578 = vunpack.c.l.b16 %v1508
    %v1579 = vunpack.c.l.b16 %v1522
    %v1580 = vunpack.c.l.b16 %v1536
    %v1581 = vunpack.c.l.b16 %v1550
    %v1582 = vunpack.c.l.b16 %v1564
    %v1583 = vrot.slane %v1566, 7
    %v1584 = vsel %vm1072, %v1583, %v1565
    %v1585 = vrot.slane %v1567, 6
    %v1586 = vsel %vm1075, %v1585, %v1584
    %v1587 = vrot.slane %v1569, 7
    %v1588 = vsel %vm1072, %v1587, %v1568
    %v1589 = vrot.slane %v1570, 6
    %v1590 = vsel %vm1075, %v1589, %v1588
    %v1591 = vrot.slane %v1572, 7
    %v1592 = vsel %vm1072, %v1591, %v1571
    %v1593 = vrot.slane %v1573, 6
    %v1594 = vsel %vm1075, %v1593, %v1592
    %v1595 = vrot.slane %v1575, 7
    %v1596 = vsel %vm1072, %v1595, %v1574
    %v1597 = vrot.slane %v1576, 6
    %v1598 = vsel %vm1075, %v1597, %v1596
    %v1599 = vrot.slane %v1578, 7
    %v1600 = vsel %vm1072, %v1599, %v1577
    %v1601 = vrot.slane %v1579, 6
    %v1602 = vsel %vm1075, %v1601, %v1600
    %v1603 = vrot.slane %v1581, 7
    %v1604 = vsel %vm1072, %v1603, %v1580
    %v1605 = vrot.slane %v1582, 6
    %v1606 = vsel %vm1075, %v1605, %v1604
    %v1607 = vpack.c.b16 %v1586, %v1586
    %v1608 = vpack.c.b16 %v1590, %v1590
    %v1609 = vpack.c.b16 %v1594, %v1594
    %v1610 = vpack.c.b16 %v1598, %v1598
    %v1611 = vpack.c.b16 %v1602, %v1602
    %v1612 = vpack.c.b16 %v1606, %v1606
    %v1613 = vrot.slane %v1565, 1
    %v1614 = vsel %vm1072, %v1566, %v1613
    %v1615 = vrot.slane %v1567, 7
    %v1616 = vsel %vm1075, %v1615, %v1614
    %v1617 = vrot.slane %v1568, 1
    %v1618 = vsel %vm1072, %v1569, %v1617
    %v1619 = vrot.slane %v1570, 7
    %v1620 = vsel %vm1075, %v1619, %v1618
    %v1621 = vrot.slane %v1571, 1
    %v1622 = vsel %vm1072, %v1572, %v1621
    %v1623 = vrot.slane %v1573, 7
    %v1624 = vsel %vm1075, %v1623, %v1622
    %v1625 = vrot.slane %v1574, 1
    %v1626 = vsel %vm1072, %v1575, %v1625
    %v1627 = vrot.slane %v1576, 7
    %v1628 = vsel %vm1075, %v1627, %v1626
    %v1629 = vrot.slane %v1577, 1
    %v1630 = vsel %vm1072, %v1578, %v1629
    %v1631 = vrot.slane %v1579, 7
    %v1632 = vsel %vm1075, %v1631, %v1630
    %v1633 = vrot.slane %v1580, 1
    %v1634 = vsel %vm1072, %v1581, %v1633
    %v1635 = vrot.slane %v1582, 7
    %v1636 = vsel %vm1075, %v1635, %v1634
    %v1637 = vpack.c.b16 %v1616, %v1616
    %v1638 = vpack.c.b16 %v1620, %v1620
    %v1639 = vpack.c.b16 %v1624, %v1624
    %v1640 = vpack.c.b16 %v1628, %v1628
    %v1641 = vpack.c.b16 %v1632, %v1632
    %v1642 = vpack.c.b16 %v1636, %v1636
    %1643 = vrot.lane.b32.xlu0 %v1637, 32
    %v1644 = vpop.permute.xlu0 %1643
    %1645 = vrot.lane.b32.xlu0 %v1638, 32
    %v1646 = vpop.permute.xlu0 %1645
    %1647 = vrot.lane.b32.xlu0 %v1639, 32
    %v1648 = vpop.permute.xlu0 %1647
    %1649 = vrot.lane.b32.xlu0 %v1640, 32
    %v1650 = vpop.permute.xlu0 %1649
    %1651 = vrot.lane.b32.xlu0 %v1641, 32
    %v1652 = vpop.permute.xlu0 %1651
    %1653 = vrot.lane.b32.xlu0 %v1642, 32
    %v1654 = vpop.permute.xlu0 %1653
    %v1656 = vunpack.c.l.s4 1966171168
    %v1657 = vunpack.c.0.s8 %v1656
    %v1658 = vlaneseq
    %v1659 = vshrl.u32 %v1658, 7
    %v1660 = vsub.s32 %v1657, %v1659
    %v1661 = vrot.slane %v632, %v1660
    %v1663 = vunpack.c.l.s4 1966171168
    %v1664 = vunpack.c.0.s8 %v1663
    %v1665 = vlaneseq
    %v1666 = vshrl.u32 %v1665, 7
    %v1667 = vsub.s32 %v1664, %v1666
    %v1668 = vrot.slane %v1661, %v1667
    %v1670 = vunpack.c.l.s4 1966171168
    %v1671 = vunpack.c.0.s8 %v1670
    %v1672 = vlaneseq
    %v1673 = vshrl.u32 %v1672, 7
    %v1674 = vsub.s32 %v1671, %v1673
    %v1675 = vrot.slane %v656, %v1674
    %v1677 = vunpack.c.l.s4 1966171168
    %v1678 = vunpack.c.0.s8 %v1677
    %v1679 = vlaneseq
    %v1680 = vshrl.u32 %v1679, 7
    %v1681 = vsub.s32 %v1678, %v1680
    %v1682 = vrot.slane %v1675, %v1681
    %v1684 = vunpack.c.l.s4 1966171168
    %v1685 = vunpack.c.0.s8 %v1684
    %v1686 = vlaneseq
    %v1687 = vshrl.u32 %v1686, 7
    %v1688 = vsub.s32 %v1685, %v1687
    %v1689 = vrot.slane %v680, %v1688
    %v1691 = vunpack.c.l.s4 1966171168
    %v1692 = vunpack.c.0.s8 %v1691
    %v1693 = vlaneseq
    %v1694 = vshrl.u32 %v1693, 7
    %v1695 = vsub.s32 %v1692, %v1694
    %v1696 = vrot.slane %v1689, %v1695
    %v1698 = vunpack.c.l.s4 1966171168
    %v1699 = vunpack.c.0.s8 %v1698
    %v1700 = vlaneseq
    %v1701 = vshrl.u32 %v1700, 7
    %v1702 = vsub.s32 %v1699, %v1701
    %v1703 = vrot.slane %v728, %v1702
    %v1705 = vunpack.c.l.s4 1966171168
    %v1706 = vunpack.c.0.s8 %v1705
    %v1707 = vlaneseq
    %v1708 = vshrl.u32 %v1707, 7
    %v1709 = vsub.s32 %v1706, %v1708
    %v1710 = vrot.slane %v1703, %v1709
    %v1712 = vunpack.c.l.s4 1966171168
    %v1713 = vunpack.c.0.s8 %v1712
    %v1714 = vlaneseq
    %v1715 = vshrl.u32 %v1714, 7
    %v1716 = vsub.s32 %v1713, %v1715
    %v1717 = vrot.slane %v752, %v1716
    %v1719 = vunpack.c.l.s4 1966171168
    %v1720 = vunpack.c.0.s8 %v1719
    %v1721 = vlaneseq
    %v1722 = vshrl.u32 %v1721, 7
    %v1723 = vsub.s32 %v1720, %v1722
    %v1724 = vrot.slane %v1717, %v1723
    %v1726 = vunpack.c.l.s4 1966171168
    %v1727 = vunpack.c.0.s8 %v1726
    %v1728 = vlaneseq
    %v1729 = vshrl.u32 %v1728, 7
    %v1730 = vsub.s32 %v1727, %v1729
    %v1731 = vrot.slane %v776, %v1730
    %v1733 = vunpack.c.l.s4 1966171168
    %v1734 = vunpack.c.0.s8 %v1733
    %v1735 = vlaneseq
    %v1736 = vshrl.u32 %v1735, 7
    %v1737 = vsub.s32 %v1734, %v1736
    %v1738 = vrot.slane %v1731, %v1737
    %v1739 = vunpack.c.l.b16 %v1668
    %v1740 = vunpack.c.l.b16 %v1682
    %v1741 = vunpack.c.l.b16 %v1696
    %v1742 = vunpack.c.l.b16 %v1710
    %v1743 = vunpack.c.l.b16 %v1724
    %v1744 = vunpack.c.l.b16 %v1738
    %v1745 = vsel %vm1072, %v1615, %v1566
    %v1746 = vrot.slane %v1739, 6
    %v1747 = vsel %vm1075, %v1746, %v1745
    %v1748 = vsel %vm1072, %v1619, %v1569
    %v1749 = vrot.slane %v1740, 6
    %v1750 = vsel %vm1075, %v1749, %v1748
    %v1751 = vsel %vm1072, %v1623, %v1572
    %v1752 = vrot.slane %v1741, 6
    %v1753 = vsel %vm1075, %v1752, %v1751
    %v1754 = vsel %vm1072, %v1627, %v1575
    %v1755 = vrot.slane %v1742, 6
    %v1756 = vsel %vm1075, %v1755, %v1754
    %v1757 = vsel %vm1072, %v1631, %v1578
    %v1758 = vrot.slane %v1743, 6
    %v1759 = vsel %vm1075, %v1758, %v1757
    %v1760 = vsel %vm1072, %v1635, %v1581
    %v1761 = vrot.slane %v1744, 6
    %v1762 = vsel %vm1075, %v1761, %v1760
    %v1763 = vpack.c.b16 %v1747, %v1747
    %v1764 = vpack.c.b16 %v1750, %v1750
    %v1765 = vpack.c.b16 %v1753, %v1753
    %v1766 = vpack.c.b16 %v1756, %v1756
    %v1767 = vpack.c.b16 %v1759, %v1759
    %v1768 = vpack.c.b16 %v1762, %v1762
    %1769 = vrot.lane.b32.xlu0 %v1763, 64
    %v1770 = vpop.permute.xlu0 %1769
    %1771 = vrot.lane.b32.xlu0 %v1764, 64
    %v1772 = vpop.permute.xlu0 %1771
    %1773 = vrot.lane.b32.xlu0 %v1765, 64
    %v1774 = vpop.permute.xlu0 %1773
    %1775 = vrot.lane.b32.xlu0 %v1766, 64
    %v1776 = vpop.permute.xlu0 %1775
    %1777 = vrot.lane.b32.xlu0 %v1767, 64
    %v1778 = vpop.permute.xlu0 %1777
    %1779 = vrot.lane.b32.xlu0 %v1768, 64
    %v1780 = vpop.permute.xlu0 %1779
    %v1781 = vrot.slane %v1566, 1
    %v1782 = vsel %vm1072, %v1567, %v1781
    %v1783 = vrot.slane %v1739, 7
    %v1784 = vsel %vm1075, %v1783, %v1782
    %v1785 = vrot.slane %v1569, 1
    %v1786 = vsel %vm1072, %v1570, %v1785
    %v1787 = vrot.slane %v1740, 7
    %v1788 = vsel %vm1075, %v1787, %v1786
    %v1789 = vrot.slane %v1572, 1
    %v1790 = vsel %vm1072, %v1573, %v1789
    %v1791 = vrot.slane %v1741, 7
    %v1792 = vsel %vm1075, %v1791, %v1790
    %v1793 = vrot.slane %v1575, 1
    %v1794 = vsel %vm1072, %v1576, %v1793
    %v1795 = vrot.slane %v1742, 7
    %v1796 = vsel %vm1075, %v1795, %v1794
    %v1797 = vrot.slane %v1578, 1
    %v1798 = vsel %vm1072, %v1579, %v1797
    %v1799 = vrot.slane %v1743, 7
    %v1800 = vsel %vm1075, %v1799, %v1798
    %v1801 = vrot.slane %v1581, 1
    %v1802 = vsel %vm1072, %v1582, %v1801
    %v1803 = vrot.slane %v1744, 7
    %v1804 = vsel %vm1075, %v1803, %v1802
    %v1805 = vpack.c.b16 %v1784, %v1784
    %v1806 = vpack.c.b16 %v1788, %v1788
    %v1807 = vpack.c.b16 %v1792, %v1792
    %v1808 = vpack.c.b16 %v1796, %v1796
    %v1809 = vpack.c.b16 %v1800, %v1800
    %v1810 = vpack.c.b16 %v1804, %v1804
    %1811 = vrot.lane.b32.xlu0 %v1805, 96
    %v1812 = vpop.permute.xlu0 %1811
    %1813 = vrot.lane.b32.xlu0 %v1806, 96
    %v1814 = vpop.permute.xlu0 %1813
    %1815 = vrot.lane.b32.xlu0 %v1807, 96
    %v1816 = vpop.permute.xlu0 %1815
    %1817 = vrot.lane.b32.xlu0 %v1808, 96
    %v1818 = vpop.permute.xlu0 %1817
    %1819 = vrot.lane.b32.xlu0 %v1809, 96
    %v1820 = vpop.permute.xlu0 %1819
    %1821 = vrot.lane.b32.xlu0 %v1810, 96
    %v1822 = vpop.permute.xlu0 %1821
    %v1824 = vunpack.c.l.s4 1966171168
    %v1825 = vunpack.c.0.s8 %v1824
    %v1826 = vlaneseq
    %v1827 = vshrl.u32 %v1826, 7
    %v1828 = vsub.s32 %v1825, %v1827
    %v1829 = vrot.slane %v503, %v1828
    %v1831 = vunpack.c.l.s4 1966171168
    %v1832 = vunpack.c.0.s8 %v1831
    %v1833 = vlaneseq
    %v1834 = vshrl.u32 %v1833, 7
    %v1835 = vsub.s32 %v1832, %v1834
    %v1836 = vrot.slane %v1829, %v1835
    %v1838 = vunpack.c.l.s4 1966171168
    %v1839 = vunpack.c.0.s8 %v1838
    %v1840 = vlaneseq
    %v1841 = vshrl.u32 %v1840, 7
    %v1842 = vsub.s32 %v1839, %v1841
    %v1843 = vrot.slane %v510, %v1842
    %v1845 = vunpack.c.l.s4 1966171168
    %v1846 = vunpack.c.0.s8 %v1845
    %v1847 = vlaneseq
    %v1848 = vshrl.u32 %v1847, 7
    %v1849 = vsub.s32 %v1846, %v1848
    %v1850 = vrot.slane %v1843, %v1849
    %v1852 = vunpack.c.l.s4 1966171168
    %v1853 = vunpack.c.0.s8 %v1852
    %v1854 = vlaneseq
    %v1855 = vshrl.u32 %v1854, 7
    %v1856 = vsub.s32 %v1853, %v1855
    %v1857 = vrot.slane %v511, %v1856
    %v1859 = vunpack.c.l.s4 1966171168
    %v1860 = vunpack.c.0.s8 %v1859
    %v1861 = vlaneseq
    %v1862 = vshrl.u32 %v1861, 7
    %v1863 = vsub.s32 %v1860, %v1862
    %v1864 = vrot.slane %v1857, %v1863
    %v1866 = vunpack.c.l.s4 1966171168
    %v1867 = vunpack.c.0.s8 %v1866
    %v1868 = vlaneseq
    %v1869 = vshrl.u32 %v1868, 7
    %v1870 = vsub.s32 %v1867, %v1869
    %v1871 = vrot.slane %v599, %v1870
    %v1873 = vunpack.c.l.s4 1966171168
    %v1874 = vunpack.c.0.s8 %v1873
    %v1875 = vlaneseq
    %v1876 = vshrl.u32 %v1875, 7
    %v1877 = vsub.s32 %v1874, %v1876
    %v1878 = vrot.slane %v1871, %v1877
    %v1880 = vunpack.c.l.s4 1966171168
    %v1881 = vunpack.c.0.s8 %v1880
    %v1882 = vlaneseq
    %v1883 = vshrl.u32 %v1882, 7
    %v1884 = vsub.s32 %v1881, %v1883
    %v1885 = vrot.slane %v606, %v1884
    %v1887 = vunpack.c.l.s4 1966171168
    %v1888 = vunpack.c.0.s8 %v1887
    %v1889 = vlaneseq
    %v1890 = vshrl.u32 %v1889, 7
    %v1891 = vsub.s32 %v1888, %v1890
    %v1892 = vrot.slane %v1885, %v1891
    %v1894 = vunpack.c.l.s4 1966171168
    %v1895 = vunpack.c.0.s8 %v1894
    %v1896 = vlaneseq
    %v1897 = vshrl.u32 %v1896, 7
    %v1898 = vsub.s32 %v1895, %v1897
    %v1899 = vrot.slane %v607, %v1898
    %v1901 = vunpack.c.l.s4 1966171168
    %v1902 = vunpack.c.0.s8 %v1901
    %v1903 = vlaneseq
    %v1904 = vshrl.u32 %v1903, 7
    %v1905 = vsub.s32 %v1902, %v1904
    %v1906 = vrot.slane %v1899, %v1905
    %v1907 = vunpack.c.l.b16 %v1836
    %v1908 = vunpack.c.l.b16 %v1850
    %v1909 = vunpack.c.l.b16 %v1864
    %v1910 = vunpack.c.l.b16 %v1878
    %v1911 = vunpack.c.l.b16 %v1892
    %v1912 = vunpack.c.l.b16 %v1906
    %v1913 = vrot.slane %v1908, 7
    %v1914 = vsel %vm1072, %v1913, %v1907
    %v1915 = vrot.slane %v1909, 6
    %v1916 = vsel %vm1075, %v1915, %v1914
    %v1917 = vrot.slane %v1911, 7
    %v1918 = vsel %vm1072, %v1917, %v1910
    %v1919 = vrot.slane %v1912, 6
    %v1920 = vsel %vm1075, %v1919, %v1918
    %v1921 = vpack.c.b16 %v1916, %v1916
    %v1922 = vpack.c.b16 %v1920, %v1920
    %v1923 = vrot.slane %v1907, 1
    %v1924 = vsel %vm1072, %v1908, %v1923
    %v1925 = vrot.slane %v1909, 7
    %v1926 = vsel %vm1075, %v1925, %v1924
    %v1927 = vrot.slane %v1910, 1
    %v1928 = vsel %vm1072, %v1911, %v1927
    %v1929 = vrot.slane %v1912, 7
    %v1930 = vsel %vm1075, %v1929, %v1928
    %v1931 = vpack.c.b16 %v1926, %v1926
    %v1932 = vpack.c.b16 %v1930, %v1930
    %1933 = vrot.lane.b32.xlu0 %v1931, 32
    %v1934 = vpop.permute.xlu0 %1933
    %1935 = vrot.lane.b32.xlu0 %v1932, 32
    %v1936 = vpop.permute.xlu0 %1935
    %v1938 = vunpack.c.l.s4 1966171168
    %v1939 = vunpack.c.0.s8 %v1938
    %v1940 = vlaneseq
    %v1941 = vshrl.u32 %v1940, 7
    %v1942 = vsub.s32 %v1939, %v1941
    %v1943 = vrot.slane %v512, %v1942
    %v1945 = vunpack.c.l.s4 1966171168
    %v1946 = vunpack.c.0.s8 %v1945
    %v1947 = vlaneseq
    %v1948 = vshrl.u32 %v1947, 7
    %v1949 = vsub.s32 %v1946, %v1948
    %v1950 = vrot.slane %v1943, %v1949
    %v1952 = vunpack.c.l.s4 1966171168
    %v1953 = vunpack.c.0.s8 %v1952
    %v1954 = vlaneseq
    %v1955 = vshrl.u32 %v1954, 7
    %v1956 = vsub.s32 %v1953, %v1955
    %v1957 = vrot.slane %v608, %v1956
    %v1959 = vunpack.c.l.s4 1966171168
    %v1960 = vunpack.c.0.s8 %v1959
    %v1961 = vlaneseq
    %v1962 = vshrl.u32 %v1961, 7
    %v1963 = vsub.s32 %v1960, %v1962
    %v1964 = vrot.slane %v1957, %v1963
    %v1965 = vunpack.c.l.b16 %v1950
    %v1966 = vunpack.c.l.b16 %v1964
    %v1967 = vsel %vm1072, %v1925, %v1908
    %v1968 = vrot.slane %v1965, 6
    %v1969 = vsel %vm1075, %v1968, %v1967
    %v1970 = vsel %vm1072, %v1929, %v1911
    %v1971 = vrot.slane %v1966, 6
    %v1972 = vsel %vm1075, %v1971, %v1970
    %v1973 = vpack.c.b16 %v1969, %v1969
    %v1974 = vpack.c.b16 %v1972, %v1972
    %1975 = vrot.lane.b32.xlu0 %v1973, 64
    %v1976 = vpop.permute.xlu0 %1975
    %1977 = vrot.lane.b32.xlu0 %v1974, 64
    %v1978 = vpop.permute.xlu0 %1977
    %v1979 = vrot.slane %v1908, 1
    %v1980 = vsel %vm1072, %v1909, %v1979
    %v1981 = vrot.slane %v1965, 7
    %v1982 = vsel %vm1075, %v1981, %v1980
    %v1983 = vrot.slane %v1911, 1
    %v1984 = vsel %vm1072, %v1912, %v1983
    %v1985 = vrot.slane %v1966, 7
    %v1986 = vsel %vm1075, %v1985, %v1984
    %v1987 = vpack.c.b16 %v1982, %v1982
    %v1988 = vpack.c.b16 %v1986, %v1986
    %1989 = vrot.lane.b32.xlu0 %v1987, 96
    %v1990 = vpop.permute.xlu0 %1989
    %1991 = vrot.lane.b32.xlu0 %v1988, 96
    %v1992 = vpop.permute.xlu0 %1991
    %v1994 = vunpack.c.l.s4 1966171168
    %v1995 = vunpack.c.0.s8 %v1994
    %v1996 = vlaneseq
    %v1997 = vshrl.u32 %v1996, 7
    %v1998 = vsub.s32 %v1995, %v1997
    %v1999 = vrot.slane %v695, %v1998
    %v2001 = vunpack.c.l.s4 1966171168
    %v2002 = vunpack.c.0.s8 %v2001
    %v2003 = vlaneseq
    %v2004 = vshrl.u32 %v2003, 7
    %v2005 = vsub.s32 %v2002, %v2004
    %v2006 = vrot.slane %v1999, %v2005
    %v2008 = vunpack.c.l.s4 1966171168
    %v2009 = vunpack.c.0.s8 %v2008
    %v2010 = vlaneseq
    %v2011 = vshrl.u32 %v2010, 7
    %v2012 = vsub.s32 %v2009, %v2011
    %v2013 = vrot.slane %v702, %v2012
    %v2015 = vunpack.c.l.s4 1966171168
    %v2016 = vunpack.c.0.s8 %v2015
    %v2017 = vlaneseq
    %v2018 = vshrl.u32 %v2017, 7
    %v2019 = vsub.s32 %v2016, %v2018
    %v2020 = vrot.slane %v2013, %v2019
    %v2022 = vunpack.c.l.s4 1966171168
    %v2023 = vunpack.c.0.s8 %v2022
    %v2024 = vlaneseq
    %v2025 = vshrl.u32 %v2024, 7
    %v2026 = vsub.s32 %v2023, %v2025
    %v2027 = vrot.slane %v703, %v2026
    %v2029 = vunpack.c.l.s4 1966171168
    %v2030 = vunpack.c.0.s8 %v2029
    %v2031 = vlaneseq
    %v2032 = vshrl.u32 %v2031, 7
    %v2033 = vsub.s32 %v2030, %v2032
    %v2034 = vrot.slane %v2027, %v2033
    %v2036 = vunpack.c.l.s4 1966171168
    %v2037 = vunpack.c.0.s8 %v2036
    %v2038 = vlaneseq
    %v2039 = vshrl.u32 %v2038, 7
    %v2040 = vsub.s32 %v2037, %v2039
    %v2041 = vrot.slane %v791, %v2040
    %v2043 = vunpack.c.l.s4 1966171168
    %v2044 = vunpack.c.0.s8 %v2043
    %v2045 = vlaneseq
    %v2046 = vshrl.u32 %v2045, 7
    %v2047 = vsub.s32 %v2044, %v2046
    %v2048 = vrot.slane %v2041, %v2047
    %v2050 = vunpack.c.l.s4 1966171168
    %v2051 = vunpack.c.0.s8 %v2050
    %v2052 = vlaneseq
    %v2053 = vshrl.u32 %v2052, 7
    %v2054 = vsub.s32 %v2051, %v2053
    %v2055 = vrot.slane %v798, %v2054
    %v2057 = vunpack.c.l.s4 1966171168
    %v2058 = vunpack.c.0.s8 %v2057
    %v2059 = vlaneseq
    %v2060 = vshrl.u32 %v2059, 7
    %v2061 = vsub.s32 %v2058, %v2060
    %v2062 = vrot.slane %v2055, %v2061
    %v2064 = vunpack.c.l.s4 1966171168
    %v2065 = vunpack.c.0.s8 %v2064
    %v2066 = vlaneseq
    %v2067 = vshrl.u32 %v2066, 7
    %v2068 = vsub.s32 %v2065, %v2067
    %v2069 = vrot.slane %v799, %v2068
    %v2071 = vunpack.c.l.s4 1966171168
    %v2072 = vunpack.c.0.s8 %v2071
    %v2073 = vlaneseq
    %v2074 = vshrl.u32 %v2073, 7
    %v2075 = vsub.s32 %v2072, %v2074
    %v2076 = vrot.slane %v2069, %v2075
    %v2077 = vunpack.c.l.b16 %v2006
    %v2078 = vunpack.c.l.b16 %v2020
    %v2079 = vunpack.c.l.b16 %v2034
    %v2080 = vunpack.c.l.b16 %v2048
    %v2081 = vunpack.c.l.b16 %v2062
    %v2082 = vunpack.c.l.b16 %v2076
    %v2083 = vrot.slane %v2078, 7
    %v2084 = vsel %vm1072, %v2083, %v2077
    %v2085 = vrot.slane %v2079, 6
    %v2086 = vsel %vm1075, %v2085, %v2084
    %v2087 = vrot.slane %v2081, 7
    %v2088 = vsel %vm1072, %v2087, %v2080
    %v2089 = vrot.slane %v2082, 6
    %v2090 = vsel %vm1075, %v2089, %v2088
    %v2091 = vpack.c.b16 %v2086, %v2086
    %v2092 = vpack.c.b16 %v2090, %v2090
    %v2093 = vrot.slane %v2077, 1
    %v2094 = vsel %vm1072, %v2078, %v2093
    %v2095 = vrot.slane %v2079, 7
    %v2096 = vsel %vm1075, %v2095, %v2094
    %v2097 = vrot.slane %v2080, 1
    %v2098 = vsel %vm1072, %v2081, %v2097
    %v2099 = vrot.slane %v2082, 7
    %v2100 = vsel %vm1075, %v2099, %v2098
    %v2101 = vpack.c.b16 %v2096, %v2096
    %v2102 = vpack.c.b16 %v2100, %v2100
    %2103 = vrot.lane.b32.xlu0 %v2101, 32
    %v2104 = vpop.permute.xlu0 %2103
    %2105 = vrot.lane.b32.xlu0 %v2102, 32
    %v2106 = vpop.permute.xlu0 %2105
    %v2108 = vunpack.c.l.s4 1966171168
    %v2109 = vunpack.c.0.s8 %v2108
    %v2110 = vlaneseq
    %v2111 = vshrl.u32 %v2110, 7
    %v2112 = vsub.s32 %v2109, %v2111
    %v2113 = vrot.slane %v704, %v2112
    %v2115 = vunpack.c.l.s4 1966171168
    %v2116 = vunpack.c.0.s8 %v2115
    %v2117 = vlaneseq
    %v2118 = vshrl.u32 %v2117, 7
    %v2119 = vsub.s32 %v2116, %v2118
    %v2120 = vrot.slane %v2113, %v2119
    %v2122 = vunpack.c.l.s4 1966171168
    %v2123 = vunpack.c.0.s8 %v2122
    %v2124 = vlaneseq
    %v2125 = vshrl.u32 %v2124, 7
    %v2126 = vsub.s32 %v2123, %v2125
    %v2127 = vrot.slane %v800, %v2126
    %v2129 = vunpack.c.l.s4 1966171168
    %v2130 = vunpack.c.0.s8 %v2129
    %v2131 = vlaneseq
    %v2132 = vshrl.u32 %v2131, 7
    %v2133 = vsub.s32 %v2130, %v2132
    %v2134 = vrot.slane %v2127, %v2133
    %v2135 = vunpack.c.l.b16 %v2120
    %v2136 = vunpack.c.l.b16 %v2134
    %v2137 = vsel %vm1072, %v2095, %v2078
    %v2138 = vrot.slane %v2135, 6
    %v2139 = vsel %vm1075, %v2138, %v2137
    %v2140 = vsel %vm1072, %v2099, %v2081
    %v2141 = vrot.slane %v2136, 6
    %v2142 = vsel %vm1075, %v2141, %v2140
    %v2143 = vpack.c.b16 %v2139, %v2139
    %v2144 = vpack.c.b16 %v2142, %v2142
    %2145 = vrot.lane.b32.xlu0 %v2143, 64
    %v2146 = vpop.permute.xlu0 %2145
    %2147 = vrot.lane.b32.xlu0 %v2144, 64
    %v2148 = vpop.permute.xlu0 %2147
    %v2149 = vrot.slane %v2078, 1
    %v2150 = vsel %vm1072, %v2079, %v2149
    %v2151 = vrot.slane %v2135, 7
    %v2152 = vsel %vm1075, %v2151, %v2150
    %v2153 = vrot.slane %v2081, 1
    %v2154 = vsel %vm1072, %v2082, %v2153
    %v2155 = vrot.slane %v2136, 7
    %v2156 = vsel %vm1075, %v2155, %v2154
    %v2157 = vpack.c.b16 %v2152, %v2152
    %v2158 = vpack.c.b16 %v2156, %v2156
    %2159 = vrot.lane.b32.xlu0 %v2157, 96
    %v2160 = vpop.permute.xlu0 %2159
    %2161 = vrot.lane.b32.xlu0 %v2158, 96
    %v2162 = vpop.permute.xlu0 %2161
    %vm2163 = vcmask 261120
    %v2166 = vsel %vm2163, %v1097, %v1134
    %v2169 = vsel %vm2163, %v1098, %v1136
    %v2172 = vsel %vm2163, %v1099, %v1138
    %v2175 = vsel %vm2163, %v1100, %v1140
    %v2178 = vsel %vm2163, %v1101, %v1142
    %v2181 = vsel %vm2163, %v1102, %v1144
    %v2183 = vsel %vm231, %v2166, %v1260
    %v2185 = vsel %vm231, %v2169, %v1262
    %v2187 = vsel %vm231, %v2172, %v1264
    %v2189 = vsel %vm231, %v2175, %v1266
    %v2191 = vsel %vm231, %v2178, %v1268
    %v2193 = vsel %vm231, %v2181, %v1270
    %vm2194 = vcmask 785408
    %v2196 = vsel %vm2194, %v2183, %v1302
    %v2198 = vsel %vm2194, %v2185, %v1304
    %v2200 = vsel %vm2194, %v2187, %v1306
    %v2202 = vsel %vm2194, %v2189, %v1308
    %v2204 = vsel %vm2194, %v2191, %v1310
    %v2206 = vsel %vm2194, %v2193, %v1312
    %v2209 = vsel %vm2163, %v1607, %v1644
    %v2212 = vsel %vm2163, %v1608, %v1646
    %v2215 = vsel %vm2163, %v1609, %v1648
    %v2218 = vsel %vm2163, %v1610, %v1650
    %v2221 = vsel %vm2163, %v1611, %v1652
    %v2224 = vsel %vm2163, %v1612, %v1654
    %v2226 = vsel %vm231, %v2209, %v1770
    %v2228 = vsel %vm231, %v2212, %v1772
    %v2230 = vsel %vm231, %v2215, %v1774
    %v2232 = vsel %vm231, %v2218, %v1776
    %v2234 = vsel %vm231, %v2221, %v1778
    %v2236 = vsel %vm231, %v2224, %v1780
    %v2238 = vsel %vm2194, %v2226, %v1812
    %v2240 = vsel %vm2194, %v2228, %v1814
    %v2242 = vsel %vm2194, %v2230, %v1816
    %v2244 = vsel %vm2194, %v2232, %v1818
    %v2246 = vsel %vm2194, %v2234, %v1820
    %v2248 = vsel %vm2194, %v2236, %v1822
    %v2251 = vsel %vm2163, %v1921, %v1934
    %v2254 = vsel %vm2163, %v1922, %v1936
    %v2256 = vsel %vm231, %v2251, %v1976
    %v2258 = vsel %vm231, %v2254, %v1978
    %v2260 = vsel %vm2194, %v2256, %v1990
    %v2262 = vsel %vm2194, %v2258, %v1992
    %v2265 = vsel %vm2163, %v2091, %v2104
    %v2268 = vsel %vm2163, %v2092, %v2106
    %v2270 = vsel %vm231, %v2265, %v2146
    %v2272 = vsel %vm231, %v2268, %v2148
    %v2274 = vsel %vm2194, %v2270, %v2160
    %v2276 = vsel %vm2194, %v2272, %v2162
    %v2293 = vcombine.low %v2196, %v2238
    %v2294 = vcombine.low %v2198, %v2240
    %v2296 = vunpack.c.l.s4 1966171168
    %v2297 = vunpack.c.0.s8 %v2296
    %v2298 = vlaneseq
    %v2299 = vshrl.u32 %v2298, 7
    %v2300 = vsub.s32 %v2297, %v2299
    %v2301 = vrot.slane %v2293, %v2300
    %v2303 = vunpack.c.l.s4 1966171168
    %v2304 = vunpack.c.0.s8 %v2303
    %v2305 = vlaneseq
    %v2306 = vshrl.u32 %v2305, 7
    %v2307 = vsub.s32 %v2304, %v2306
    %v2308 = vrot.slane %v2294, %v2307
    %v2309 = vcombine.low %v2301, %v2308
    %v2310 = vcombine.high %v2301, %v2308
    %v2312 = vunpack.c.l.s4 1966171168
    %v2313 = vunpack.c.0.s8 %v2312
    %v2314 = vlaneseq
    %v2315 = vshrl.u32 %v2314, 7
    %v2316 = vsub.s32 %v2313, %v2315
    %v2317 = vrot.slane %v2309, %v2316
    %v2319 = vunpack.c.l.s4 1966171168
    %v2320 = vunpack.c.0.s8 %v2319
    %v2321 = vlaneseq
    %v2322 = vshrl.u32 %v2321, 7
    %v2323 = vsub.s32 %v2320, %v2322
    %v2324 = vrot.slane %v2310, %v2323
    %v2325 = vcombine.low %v2200, %v2242
    %v2327 = vunpack.c.l.s4 1966171168
    %v2328 = vunpack.c.0.s8 %v2327
    %v2329 = vlaneseq
    %v2330 = vshrl.u32 %v2329, 7
    %v2331 = vsub.s32 %v2328, %v2330
    %v2332 = vrot.slane %v2325, %v2331
    %v2333 = vcombine.low %v2308, %v2332
    %v2334 = vcombine.high %v2308, %v2332
    %v2336 = vunpack.c.l.s4 1966171168
    %v2337 = vunpack.c.0.s8 %v2336
    %v2338 = vlaneseq
    %v2339 = vshrl.u32 %v2338, 7
    %v2340 = vsub.s32 %v2337, %v2339
    %v2341 = vrot.slane %v2333, %v2340
    %v2343 = vunpack.c.l.s4 1966171168
    %v2344 = vunpack.c.0.s8 %v2343
    %v2345 = vlaneseq
    %v2346 = vshrl.u32 %v2345, 7
    %v2347 = vsub.s32 %v2344, %v2346
    %v2348 = vrot.slane %v2334, %v2347
    %v2349 = vcombine.low %v2260, %v2274
    %v2351 = vunpack.c.l.s4 1966171168
    %v2352 = vunpack.c.0.s8 %v2351
    %v2353 = vlaneseq
    %v2354 = vshrl.u32 %v2353, 7
    %v2355 = vsub.s32 %v2352, %v2354
    %v2356 = vrot.slane %v2349, %v2355
    %v2357 = vcombine.low %v2332, %v2356
    %v2358 = vcombine.high %v2332, %v2356
    %v2360 = vunpack.c.l.s4 1966171168
    %v2361 = vunpack.c.0.s8 %v2360
    %v2362 = vlaneseq
    %v2363 = vshrl.u32 %v2362, 7
    %v2364 = vsub.s32 %v2361, %v2363
    %v2365 = vrot.slane %v2357, %v2364
    %v2367 = vunpack.c.l.s4 1966171168
    %v2368 = vunpack.c.0.s8 %v2367
    %v2369 = vlaneseq
    %v2370 = vshrl.u32 %v2369, 7
    %v2371 = vsub.s32 %v2368, %v2370
    %v2372 = vrot.slane %v2358, %v2371
    %v2373 = vcombine.low %v2202, %v2244
    %v2374 = vcombine.low %v2204, %v2246
    %v2376 = vunpack.c.l.s4 1966171168
    %v2377 = vunpack.c.0.s8 %v2376
    %v2378 = vlaneseq
    %v2379 = vshrl.u32 %v2378, 7
    %v2380 = vsub.s32 %v2377, %v2379
    %v2381 = vrot.slane %v2373, %v2380
    %v2383 = vunpack.c.l.s4 1966171168
    %v2384 = vunpack.c.0.s8 %v2383
    %v2385 = vlaneseq
    %v2386 = vshrl.u32 %v2385, 7
    %v2387 = vsub.s32 %v2384, %v2386
    %v2388 = vrot.slane %v2374, %v2387
    %v2389 = vcombine.low %v2381, %v2388
    %v2390 = vcombine.high %v2381, %v2388
    %v2392 = vunpack.c.l.s4 1966171168
    %v2393 = vunpack.c.0.s8 %v2392
    %v2394 = vlaneseq
    %v2395 = vshrl.u32 %v2394, 7
    %v2396 = vsub.s32 %v2393, %v2395
    %v2397 = vrot.slane %v2389, %v2396
    %v2399 = vunpack.c.l.s4 1966171168
    %v2400 = vunpack.c.0.s8 %v2399
    %v2401 = vlaneseq
    %v2402 = vshrl.u32 %v2401, 7
    %v2403 = vsub.s32 %v2400, %v2402
    %v2404 = vrot.slane %v2390, %v2403
    %v2405 = vcombine.low %v2206, %v2248
    %v2407 = vunpack.c.l.s4 1966171168
    %v2408 = vunpack.c.0.s8 %v2407
    %v2409 = vlaneseq
    %v2410 = vshrl.u32 %v2409, 7
    %v2411 = vsub.s32 %v2408, %v2410
    %v2412 = vrot.slane %v2405, %v2411
    %v2413 = vcombine.low %v2388, %v2412
    %v2414 = vcombine.high %v2388, %v2412
    %v2416 = vunpack.c.l.s4 1966171168
    %v2417 = vunpack.c.0.s8 %v2416
    %v2418 = vlaneseq
    %v2419 = vshrl.u32 %v2418, 7
    %v2420 = vsub.s32 %v2417, %v2419
    %v2421 = vrot.slane %v2413, %v2420
    %v2423 = vunpack.c.l.s4 1966171168
    %v2424 = vunpack.c.0.s8 %v2423
    %v2425 = vlaneseq
    %v2426 = vshrl.u32 %v2425, 7
    %v2427 = vsub.s32 %v2424, %v2426
    %v2428 = vrot.slane %v2414, %v2427
    %v2429 = vcombine.low %v2262, %v2276
    %v2431 = vunpack.c.l.s4 1966171168
    %v2432 = vunpack.c.0.s8 %v2431
    %v2433 = vlaneseq
    %v2434 = vshrl.u32 %v2433, 7
    %v2435 = vsub.s32 %v2432, %v2434
    %v2436 = vrot.slane %v2429, %v2435
    %v2437 = vcombine.low %v2412, %v2436
    %v2438 = vcombine.high %v2412, %v2436
    %v2440 = vunpack.c.l.s4 1966171168
    %v2441 = vunpack.c.0.s8 %v2440
    %v2442 = vlaneseq
    %v2443 = vshrl.u32 %v2442, 7
    %v2444 = vsub.s32 %v2441, %v2443
    %v2445 = vrot.slane %v2437, %v2444
    %v2447 = vunpack.c.l.s4 1966171168
    %v2448 = vunpack.c.0.s8 %v2447
    %v2449 = vlaneseq
    %v2450 = vshrl.u32 %v2449, 7
    %v2451 = vsub.s32 %v2448, %v2450
    %v2452 = vrot.slane %v2438, %v2451
    %v2453 = vunpack.i.l.s16 %v2317
    %v2454 = vunpack.i.h.s16 %v2317
    %v2455 = vunpack.i.l.s16 %v2324
    %v2456 = vunpack.i.l.s16 %v2341
    %v2457 = vunpack.i.h.s16 %v2341
    %v2458 = vunpack.i.l.s16 %v2348
    %v2459 = vunpack.i.l.s16 %v2365
    %v2460 = vunpack.i.h.s16 %v2365
    %v2461 = vunpack.i.l.s16 %v2372
    %v2462 = vunpack.i.l.s16 %v2397
    %v2463 = vunpack.i.h.s16 %v2397
    %v2464 = vunpack.i.l.s16 %v2404
    %v2465 = vunpack.i.l.s16 %v2421
    %v2466 = vunpack.i.h.s16 %v2421
    %v2467 = vunpack.i.l.s16 %v2428
    %v2468 = vunpack.i.l.s16 %v2445
    %v2469 = vunpack.i.h.s16 %v2445
    %v2470 = vunpack.i.l.s16 %v2452
    %v2471 = vld [vmem:[%s3] sm:$0xf]
    %v2472 = vld [vmem:[%s3 + $0x4] sm:$0xf]
    %v2473 = vld [vmem:[%s3 + $0x8] sm:$0xf]
    %v2474 = vld [vmem:[%s3 + $0xc] sm:$0xf]
    %v2475 = vld [vmem:[%s3 + $0x10] sm:$0xf]
    %v2476 = vld [vmem:[%s3 + $0x14] sm:$0xf]
    %v2477 = vld [vmem:[%s3 + $0x18] sm:$0xf]
    %v2478 = vld [vmem:[%s3 + $0x1c] sm:$0xf]
    %v2479 = vld [vmem:[%s3 + $0x20] sm:$0xf]
    %v2480 = vld [vmem:[%s3 + $0x24] sm:$0xf]
    %v2481 = vld [vmem:[%s3 + $0x28] sm:$0xf]
    %v2482 = vld [vmem:[%s3 + $0x2c] sm:$0xf]
    %v2483 = vld [vmem:[%s3 + $0x30] sm:$0xf]
    %v2484 = vld [vmem:[%s3 + $0x34] sm:$0xf]
    %v2485 = vld [vmem:[%s3 + $0x38] sm:$0xf]
    %v2486 = vld [vmem:[%s3 + $0x3c] sm:$0xf]
    %v2487 = vld [vmem:[%s3 + $0x40] sm:$0xf]
    %v2488 = vld [vmem:[%s3 + $0x44] sm:$0xf]
    %v2489 = vld [vmem:[%s3 + $0x48] sm:$0xf]
    %v2490 = vld [vmem:[%s3 + $0x4c] sm:$0xf]
    %v2491 = vld [vmem:[%s3 + $0x50] sm:$0xf]
    %v2492 = vld [vmem:[%s3 + $0x54] sm:$0xf]
    %v2493 = vld [vmem:[%s3 + $0x58] sm:$0xf]
    %v2494 = vld [vmem:[%s3 + $0x5c] sm:$0xf]
    %v2495 = vld [vmem:[%s3 + $0x60] sm:$0xf]
    %v2496 = vld [vmem:[%s3 + $0x64] sm:$0xf]
    %v2497 = vld [vmem:[%s3 + $0x68] sm:$0xf]
    %v2498 = vld [vmem:[%s3 + $0x6c] sm:$0xf]
    %v2499 = vld [vmem:[%s3 + $0x70] sm:$0xf]
    %v2500 = vld [vmem:[%s3 + $0x74] sm:$0xf]
    %v2501 = vld [vmem:[%s3 + $0x78] sm:$0xf]
    %v2502 = vld [vmem:[%s3 + $0x7c] sm:$0xf]
    %v2503 = vld [vmem:[%s3 + $0x80] sm:$0xf]
    %v2504 = vld [vmem:[%s3 + $0x84] sm:$0xf]
    %v2505 = vld [vmem:[%s3 + $0x88] sm:$0xf]
    %v2506 = vld [vmem:[%s3 + $0x8c] sm:$0xf]
    %v2507 = vld [vmem:[%s3 + $0x90] sm:$0xf]
    %v2508 = vld [vmem:[%s3 + $0x94] sm:$0xf]
    %v2509 = vld [vmem:[%s3 + $0x98] sm:$0xf]
    %v2510 = vld [vmem:[%s3 + $0x9c] sm:$0xf]
    %v2511 = vld [vmem:[%s3 + $0xa0] sm:$0xf]
    %v2512 = vld [vmem:[%s3 + $0xa4] sm:$0xf]
    %v2513 = vld [vmem:[%s3 + $0xa8] sm:$0xf]
    %v2514 = vld [vmem:[%s3 + $0xac] sm:$0xf]
    %v2515 = vld [vmem:[%s3 + $0xb0] sm:$0xf]
    %v2516 = vld [vmem:[%s3 + $0xb4] sm:$0xf]
    %v2517 = vld [vmem:[%s3 + $0xb8] sm:$0xf]
    %v2518 = vld [vmem:[%s3 + $0xbc] sm:$0xf]
    %v2519 = vld [vmem:[%s3 + $0xc0] sm:$0xf]
    %v2520 = vld [vmem:[%s3 + $0xc4] sm:$0xf]
    %v2521 = vld [vmem:[%s3 + $0xc8] sm:$0xf]
    %v2522 = vld [vmem:[%s3 + $0xcc] sm:$0xf]
    %v2523 = vld [vmem:[%s3 + $0xd0] sm:$0xf]
    %v2524 = vld [vmem:[%s3 + $0xd4] sm:$0xf]
    %v2525 = vld [vmem:[%s3 + $0xd8] sm:$0xf]
    %v2526 = vld [vmem:[%s3 + $0xdc] sm:$0xf]
    %v2527 = vld [vmem:[%s3 + $0xe0] sm:$0xf]
    %v2528 = vld [vmem:[%s3 + $0xe4] sm:$0xf]
    %v2529 = vld [vmem:[%s3 + $0xe8] sm:$0xf]
    %v2530 = vld [vmem:[%s3 + $0xec] sm:$0xf]
    %v2531 = vld [vmem:[%s3 + $0xf0] sm:$0xf]
    %v2532 = vld [vmem:[%s3 + $0xf4] sm:$0xf]
    %v2533 = vld [vmem:[%s3 + $0xf8] sm:$0xf]
    %v2534 = vld [vmem:[%s3 + $0xfc] sm:$0xf]
    %v2535 = vld [vmem:[%s4] sm:$0x1]
    %v2537 = vlaneseq
    %v2538 = vshrl.u32 %v2537, 7
    %v2539 = vsub.s32 0, %v2538
    %v2540 = vrot.slane %v2535, %v2539
    %v2542 = vpack.i.b16 %v2454, %v2453
    %v2543 = vpack.i.b16 %v2456, %v2455
    %v2544 = vpack.i.b16 %v2458, %v2457
    %v2545 = vpack.i.b16 %v2460, %v2459
    %v2546 = vpack.i.b16 %v2462, %v2461
    %v2547 = vpack.i.b16 %v2464, %v2463
    %v2548 = vpack.i.b16 %v2466, %v2465
    %v2549 = vpack.i.b16 %v2468, %v2467
    %v2550 = vpack.i.b16 %v2470, %v2469
    %v2551 = vcombine.low %v2542, %v2543
    %v2552 = vcombine.low %v2544, %v2545
    %v2553 = vcombine.low %v2546, %v2547
    %v2554 = vcombine.low %v2548, %v2549
    %v2556 = vunpack.c.l.s4 1966171168
    %v2557 = vunpack.c.0.s8 %v2556
    %v2558 = vlaneseq
    %v2559 = vshrl.u32 %v2558, 7
    %v2560 = vsub.s32 %v2557, %v2559
    %v2561 = vrot.slane %v2551, %v2560
    %v2563 = vunpack.c.l.s4 1966171168
    %v2564 = vunpack.c.0.s8 %v2563
    %v2565 = vlaneseq
    %v2566 = vshrl.u32 %v2565, 7
    %v2567 = vsub.s32 %v2564, %v2566
    %v2568 = vrot.slane %v2552, %v2567
    %v2570 = vunpack.c.l.s4 1966171168
    %v2571 = vunpack.c.0.s8 %v2570
    %v2572 = vlaneseq
    %v2573 = vshrl.u32 %v2572, 7
    %v2574 = vsub.s32 %v2571, %v2573
    %v2575 = vrot.slane %v2553, %v2574
    %v2577 = vunpack.c.l.s4 1966171168
    %v2578 = vunpack.c.0.s8 %v2577
    %v2579 = vlaneseq
    %v2580 = vshrl.u32 %v2579, 7
    %v2581 = vsub.s32 %v2578, %v2580
    %v2582 = vrot.slane %v2554, %v2581
    %v2583 = vcombine.low %v2561, %v2568
    %v2584 = vcombine.high %v2561, %v2568
    %v2585 = vcombine.low %v2575, %v2582
    %v2586 = vcombine.high %v2575, %v2582
    %v2588 = vunpack.c.l.s4 1966171168
    %v2589 = vunpack.c.0.s8 %v2588
    %v2590 = vlaneseq
    %v2591 = vshrl.u32 %v2590, 7
    %v2592 = vsub.s32 %v2589, %v2591
    %v2593 = vrot.slane %v2583, %v2592
    %v2595 = vunpack.c.l.s4 1966171168
    %v2596 = vunpack.c.0.s8 %v2595
    %v2597 = vlaneseq
    %v2598 = vshrl.u32 %v2597, 7
    %v2599 = vsub.s32 %v2596, %v2598
    %v2600 = vrot.slane %v2584, %v2599
    %v2602 = vunpack.c.l.s4 1966171168
    %v2603 = vunpack.c.0.s8 %v2602
    %v2604 = vlaneseq
    %v2605 = vshrl.u32 %v2604, 7
    %v2606 = vsub.s32 %v2603, %v2605
    %v2607 = vrot.slane %v2585, %v2606
    %v2609 = vunpack.c.l.s4 1966171168
    %v2610 = vunpack.c.0.s8 %v2609
    %v2611 = vlaneseq
    %v2612 = vshrl.u32 %v2611, 7
    %v2613 = vsub.s32 %v2610, %v2612
    %v2614 = vrot.slane %v2586, %v2613
    %v2615 = vcombine.low %v2593, %v2607
    %v2616 = vcombine.high %v2593, %v2607
    %v2617 = vcombine.low %v2600, %v2614
    %v2618 = vcombine.high %v2600, %v2614
    %v2620 = vunpack.c.l.s4 1966171168
    %v2621 = vunpack.c.0.s8 %v2620
    %v2622 = vlaneseq
    %v2623 = vshrl.u32 %v2622, 7
    %v2624 = vsub.s32 %v2621, %v2623
    %v2625 = vrot.slane %v2550, %v2624
    %v2626 = vcombine.high %v2625, %v2625
    %v2628 = vunpack.c.l.s4 1966171168
    %v2629 = vunpack.c.0.s8 %v2628
    %v2630 = vlaneseq
    %v2631 = vshrl.u32 %v2630, 7
    %v2632 = vsub.s32 %v2629, %v2631
    %v2633 = vrot.slane %v2625, %v2632
    %v2635 = vunpack.c.l.s4 1966171168
    %v2636 = vunpack.c.0.s8 %v2635
    %v2637 = vlaneseq
    %v2638 = vshrl.u32 %v2637, 7
    %v2639 = vsub.s32 %v2636, %v2638
    %v2640 = vrot.slane %v2626, %v2639
    %v2641 = vcombine.high %v2633, %v2633
    %v2642 = vcombine.high %v2640, %v2640
    %v2715 = vunpack.c.l.b16 %v2471
    %v2716 = vunpack.c.l.b16 %v2472
    %v2717 = vunpack.c.l.b16 %v2473
    %v2718 = vunpack.c.l.b16 %v2474
    %v2719 = vunpack.c.l.b16 %v2475
    %v2720 = vunpack.c.l.b16 %v2476
    %v2721 = vunpack.c.l.b16 %v2477
    %v2722 = vunpack.c.l.b16 %v2478
    %v2723 = vunpack.c.l.b16 %v2479
    %v2724 = vunpack.c.l.b16 %v2480
    %v2725 = vunpack.c.l.b16 %v2481
    %v2726 = vunpack.c.l.b16 %v2482
    %v2727 = vunpack.c.l.b16 %v2483
    %v2728 = vunpack.c.l.b16 %v2484
    %v2729 = vunpack.c.l.b16 %v2485
    %v2730 = vunpack.c.l.b16 %v2486
    %v2731 = vunpack.c.l.b16 %v2487
    %v2732 = vunpack.c.l.b16 %v2488
    %v2733 = vunpack.c.l.b16 %v2489
    %v2734 = vunpack.c.l.b16 %v2490
    %v2735 = vunpack.c.l.b16 %v2491
    %v2736 = vunpack.c.l.b16 %v2492
    %v2737 = vunpack.c.l.b16 %v2493
    %v2738 = vunpack.c.l.b16 %v2494
    %v2739 = vunpack.c.l.b16 %v2495
    %v2740 = vunpack.c.l.b16 %v2496
    %v2741 = vunpack.c.l.b16 %v2497
    %v2742 = vunpack.c.l.b16 %v2498
    %v2743 = vunpack.c.l.b16 %v2499
    %v2744 = vunpack.c.l.b16 %v2500
    %v2745 = vunpack.c.l.b16 %v2501
    %v2746 = vunpack.c.l.b16 %v2502
    %v2747 = vunpack.c.l.b16 %v2503
    %v2748 = vunpack.c.l.b16 %v2504
    %v2749 = vunpack.c.l.b16 %v2505
    %v2750 = vunpack.c.l.b16 %v2506
    %v2751 = vunpack.c.l.b16 %v2507
    %v2752 = vunpack.c.l.b16 %v2508
    %v2753 = vunpack.c.l.b16 %v2509
    %v2754 = vunpack.c.l.b16 %v2510
    %v2755 = vunpack.c.l.b16 %v2511
    %v2756 = vunpack.c.l.b16 %v2512
    %v2757 = vunpack.c.l.b16 %v2513
    %v2758 = vunpack.c.l.b16 %v2514
    %v2759 = vunpack.c.l.b16 %v2515
    %v2760 = vunpack.c.l.b16 %v2516
    %v2761 = vunpack.c.l.b16 %v2517
    %v2762 = vunpack.c.l.b16 %v2518
    %v2763 = vunpack.c.l.b16 %v2519
    %v2764 = vunpack.c.l.b16 %v2520
    %v2765 = vunpack.c.l.b16 %v2521
    %v2766 = vunpack.c.l.b16 %v2522
    %v2767 = vunpack.c.l.b16 %v2523
    %v2768 = vunpack.c.l.b16 %v2524
    %v2769 = vunpack.c.l.b16 %v2525
    %v2770 = vunpack.c.l.b16 %v2526
    %v2771 = vunpack.c.l.b16 %v2527
    %v2772 = vunpack.c.l.b16 %v2528
    %v2773 = vunpack.c.l.b16 %v2529
    %v2774 = vunpack.c.l.b16 %v2530
    %v2775 = vunpack.c.l.b16 %v2531
    %v2776 = vunpack.c.l.b16 %v2532
    %v2777 = vunpack.c.l.b16 %v2533
    %v2778 = vunpack.c.l.b16 %v2534
    %v2779 = vpack.c.b16 %v2716, %v2715
    %v2780 = vpack.c.b16 %v2718, %v2717
    %v2781 = vpack.c.b16 %v2720, %v2719
    %v2782 = vpack.c.b16 %v2722, %v2721
    %v2783 = vpack.c.b16 %v2724, %v2723
    %v2784 = vpack.c.b16 %v2726, %v2725
    %v2785 = vpack.c.b16 %v2728, %v2727
    %v2786 = vpack.c.b16 %v2730, %v2729
    %v2787 = vpack.c.b16 %v2732, %v2731
    %v2788 = vpack.c.b16 %v2734, %v2733
    %v2789 = vpack.c.b16 %v2736, %v2735
    %v2790 = vpack.c.b16 %v2738, %v2737
    %v2791 = vpack.c.b16 %v2740, %v2739
    %v2792 = vpack.c.b16 %v2742, %v2741
    %v2793 = vpack.c.b16 %v2744, %v2743
    %v2794 = vpack.c.b16 %v2746, %v2745
    %v2795 = vpack.c.b16 %v2748, %v2747
    %v2796 = vpack.c.b16 %v2750, %v2749
    %v2797 = vpack.c.b16 %v2752, %v2751
    %v2798 = vpack.c.b16 %v2754, %v2753
    %v2799 = vpack.c.b16 %v2756, %v2755
    %v2800 = vpack.c.b16 %v2758, %v2757
    %v2801 = vpack.c.b16 %v2760, %v2759
    %v2802 = vpack.c.b16 %v2762, %v2761
    %v2803 = vpack.c.b16 %v2764, %v2763
    %v2804 = vpack.c.b16 %v2766, %v2765
    %v2805 = vpack.c.b16 %v2768, %v2767
    %v2806 = vpack.c.b16 %v2770, %v2769
    %v2807 = vpack.c.b16 %v2772, %v2771
    %v2808 = vpack.c.b16 %v2774, %v2773
    %v2809 = vpack.c.b16 %v2776, %v2775
    %v2810 = vpack.c.b16 %v2778, %v2777
    %2843 = vmatprep.subr.bf16.mxu0 0
    %2844 = vmatpush1.bf16.msra.mxu0 %v2779
    %2845 = vmatprep.subr.bf16.mxu0 0
    %2846 = vmatpush1.bf16.msra.mxu0 %v2780
    %2847 = vmatprep.subr.bf16.mxu0 0
    %2848 = vmatpush1.bf16.msra.mxu0 %v2781
    %2849 = vmatprep.subr.bf16.mxu0 0
    %2850 = vmatpush1.bf16.msra.mxu0 %v2782
    %2851 = vmatprep.subr.bf16.mxu0 0
    %2852 = vmatpush1.bf16.msra.mxu0 %v2783
    %2853 = vmatprep.subr.bf16.mxu0 0
    %2854 = vmatpush1.bf16.msra.mxu0 %v2784
    %2855 = vmatprep.subr.bf16.mxu0 0
    %2856 = vmatpush1.bf16.msra.mxu0 %v2785
    %2857 = vmatprep.subr.bf16.mxu0 0
    %2858 = vmatpush1.bf16.msra.mxu0 %v2786
    %2859 = vmatprep.subr.bf16.mxu0 0
    %2860 = vmatpush1.bf16.msra.mxu0 %v2787
    %2861 = vmatprep.subr.bf16.mxu0 0
    %2862 = vmatpush1.bf16.msra.mxu0 %v2788
    %2863 = vmatprep.subr.bf16.mxu0 0
    %2864 = vmatpush1.bf16.msra.mxu0 %v2789
    %2865 = vmatprep.subr.bf16.mxu0 0
    %2866 = vmatpush1.bf16.msra.mxu0 %v2790
    %2867 = vmatprep.subr.bf16.mxu0 0
    %2868 = vmatpush1.bf16.msra.mxu0 %v2791
    %2869 = vmatprep.subr.bf16.mxu0 0
    %2870 = vmatpush1.bf16.msra.mxu0 %v2792
    %2871 = vmatprep.subr.bf16.mxu0 0
    %2872 = vmatpush1.bf16.msra.mxu0 %v2793
    %2873 = vmatprep.subr.bf16.mxu0 0
    %2874 = vmatpush1.bf16.msra.mxu0 %v2794
    %2875 = vmatprep.mubr.bf16.mxu0 %v2617
    %2876 = vmatmul.mubr.bf16.gmra.mrb[0].mxu0 %v2615
    %v2877 = vpop.f32.mrb[0].mxu0
    %v2878 = vadd.f32 %v2540, %v2877
    %v2879 = vpop.f32.mrb[0].mxu0
    %v2880 = vpop.f32.mrb[0].mxu0
    %v2881 = vadd.f32 %v2540, %v2880
    %v2882 = vpop.f32.mrb[0].mxu0
    %2883 = vmatprep.mubr.bf16.mxu0 %v2640
    %2884 = vmatmul.mubr.bf16.gmra.mrb[0].mxu0 %v2633
    %v2885 = vpop.f32.mrb[0].mxu0
    %v2886 = vadd.f32 %v2540, %v2885
    %v2887 = vpop.f32.mrb[0].mxu0
    %v2888 = vpop.f32.mrb[0].mxu0
    %v2889 = vpop.f32.mrb[0].mxu0
    %2890 = vdwg.mxu0
    %2891 = vmatprep.subr.bf16.mxu0 0
    %2892 = vmatpush1.bf16.msra.mxu0 %v2795
    %2893 = vmatprep.subr.bf16.mxu0 0
    %2894 = vmatpush1.bf16.msra.mxu0 %v2796
    %2895 = vmatprep.subr.bf16.mxu0 0
    %2896 = vmatpush1.bf16.msra.mxu0 %v2797
    %2897 = vmatprep.subr.bf16.mxu0 0
    %2898 = vmatpush1.bf16.msra.mxu0 %v2798
    %2899 = vmatprep.subr.bf16.mxu0 0
    %2900 = vmatpush1.bf16.msra.mxu0 %v2799
    %2901 = vmatprep.subr.bf16.mxu0 0
    %2902 = vmatpush1.bf16.msra.mxu0 %v2800
    %2903 = vmatprep.subr.bf16.mxu0 0
    %2904 = vmatpush1.bf16.msra.mxu0 %v2801
    %2905 = vmatprep.subr.bf16.mxu0 0
    %2906 = vmatpush1.bf16.msra.mxu0 %v2802
    %2907 = vmatprep.subr.bf16.mxu0 0
    %2908 = vmatpush1.bf16.msra.mxu0 %v2803
    %2909 = vmatprep.subr.bf16.mxu0 0
    %2910 = vmatpush1.bf16.msra.mxu0 %v2804
    %2911 = vmatprep.subr.bf16.mxu0 0
    %2912 = vmatpush1.bf16.msra.mxu0 %v2805
    %2913 = vmatprep.subr.bf16.mxu0 0
    %2914 = vmatpush1.bf16.msra.mxu0 %v2806
    %2915 = vmatprep.subr.bf16.mxu0 0
    %2916 = vmatpush1.bf16.msra.mxu0 %v2807
    %2917 = vmatprep.subr.bf16.mxu0 0
    %2918 = vmatpush1.bf16.msra.mxu0 %v2808
    %2919 = vmatprep.subr.bf16.mxu0 0
    %2920 = vmatpush1.bf16.msra.mxu0 %v2809
    %2921 = vmatprep.subr.bf16.mxu0 0
    %2922 = vmatpush1.bf16.msra.mxu0 %v2810
    %2923 = vmatprep.mubr.bf16.mxu0 %v2618
    %2924 = vmatmul.mubr.bf16.gmra.mrb[0].mxu0 %v2616
    %v2925 = vpop.f32.mrb[0].mxu0
    %v2926 = vadd.f32 %v2878, %v2925
    %v2927 = vpop.f32.mrb[0].mxu0
    %v2928 = vpop.f32.mrb[0].mxu0
    %v2929 = vadd.f32 %v2881, %v2928
    %v2930 = vpop.f32.mrb[0].mxu0
    %2931 = vmatprep.mubr.bf16.mxu0 %v2642
    %2932 = vmatmul.mubr.bf16.gmra.mrb[0].mxu0 %v2641
    %v2933 = vpop.f32.mrb[0].mxu0
    %v2934 = vadd.f32 %v2886, %v2933
    %v2935 = vpop.f32.mrb[0].mxu0
    %v2936 = vpop.f32.mrb[0].mxu0
    %v2937 = vpop.f32.mrb[0].mxu0
    %2938 = vdwg.mxu0
    %v2939 = vmax.f32 %v2926, 0.0
    %v2940 = vmax.f32 %v2929, 0.0
    %v2941 = vmax.f32 %v2934, 0.0
    %v2942 = vpack.c.bf16 %v2940, %v2939
    %v2943 = vpack.c.bf16 %v2941, %v2941
    %v2946 = vcombine.high %v2942, %v2942
    %v2948 = vunpack.c.l.s4 1966171168
    %v2949 = vunpack.c.0.s8 %v2948
    %v2950 = vlaneseq
    %v2951 = vshrl.u32 %v2950, 7
    %v2952 = vsub.s32 %v2949, %v2951
    %v2953 = vrot.slane %v2942, %v2952
    %v2955 = vunpack.c.l.s4 1966171168
    %v2956 = vunpack.c.0.s8 %v2955
    %v2957 = vlaneseq
    %v2958 = vshrl.u32 %v2957, 7
    %v2959 = vsub.s32 %v2956, %v2958
    %v2960 = vrot.slane %v2946, %v2959
    %v2961 = vcombine.high %v2953, %v2953
    %v2962 = vcombine.high %v2960, %v2960
    %v2964 = vunpack.c.l.s4 1966171168
    %v2965 = vunpack.c.0.s8 %v2964
    %v2966 = vlaneseq
    %v2967 = vshrl.u32 %v2966, 7
    %v2968 = vsub.s32 %v2965, %v2967
    %v2969 = vrot.slane %v2953, %v2968
    %v2971 = vunpack.c.l.s4 1966171168
    %v2972 = vunpack.c.0.s8 %v2971
    %v2973 = vlaneseq
    %v2974 = vshrl.u32 %v2973, 7
    %v2975 = vsub.s32 %v2972, %v2974
    %v2976 = vrot.slane %v2960, %v2975
    %v2978 = vunpack.c.l.s4 1966171168
    %v2979 = vunpack.c.0.s8 %v2978
    %v2980 = vlaneseq
    %v2981 = vshrl.u32 %v2980, 7
    %v2982 = vsub.s32 %v2979, %v2981
    %v2983 = vrot.slane %v2961, %v2982
    %v2985 = vunpack.c.l.s4 1966171168
    %v2986 = vunpack.c.0.s8 %v2985
    %v2987 = vlaneseq
    %v2988 = vshrl.u32 %v2987, 7
    %v2989 = vsub.s32 %v2986, %v2988
    %v2990 = vrot.slane %v2962, %v2989
    %v2991 = vcombine.high %v2969, %v2969
    %v2992 = vcombine.high %v2976, %v2976
    %v2993 = vcombine.high %v2983, %v2983
    %v2994 = vcombine.high %v2990, %v2990
    %v2996 = vunpack.c.l.s4 1966171168
    %v2997 = vunpack.c.0.s8 %v2996
    %v2998 = vlaneseq
    %v2999 = vshrl.u32 %v2998, 7
    %v3000 = vsub.s32 %v2997, %v2999
    %v3001 = vrot.slane %v2943, %v3000
    %v3003 = vunpack.c.l.s4 1966171168
    %v3004 = vunpack.c.0.s8 %v3003
    %v3005 = vlaneseq
    %v3006 = vshrl.u32 %v3005, 7
    %v3007 = vsub.s32 %v3004, %v3006
    %v3008 = vrot.slane %v3001, %v3007
    %v3009 = vunpack.i.l.s16 %v2969
    %v3010 = vunpack.i.h.s16 %v2969
    %v3011 = vunpack.i.l.s16 %v2983
    %v3012 = vunpack.i.h.s16 %v2983
    %v3013 = vunpack.i.l.s16 %v2991
    %v3014 = vunpack.i.h.s16 %v2991
    %v3015 = vunpack.i.l.s16 %v2993
    %v3016 = vunpack.i.h.s16 %v2993
    %v3017 = vunpack.i.l.s16 %v2976
    %v3018 = vunpack.i.h.s16 %v2976
    %v3019 = vunpack.i.l.s16 %v2990
    %v3020 = vunpack.i.h.s16 %v2990
    %v3021 = vunpack.i.l.s16 %v2992
    %v3022 = vunpack.i.h.s16 %v2992
    %v3023 = vunpack.i.l.s16 %v2994
    %v3024 = vunpack.i.h.s16 %v2994
    %v3025 = vunpack.i.l.s16 %v3008
    %v3026 = vunpack.i.h.s16 %v3008
    %v3027 = vpack.i.b16 %v3009, %v3009
    %v3028 = vpack.i.b16 %v3018, %v3018
    %v3029 = vlaneseq
    %v3030 = vshrl.u32 %v3029, 7
    %v3031 = vsub.s32 0, %v3030
    %v3032 = vrot.slane %v3027, %v3031
    %v3033 = vlaneseq
    %v3034 = vshrl.u32 %v3033, 7
    %v3035 = vsub.s32 0, %v3034
    %v3036 = vrot.slane %v3028, %v3035
    %v3037 = vpack.i.b16 %v3010, %v3010
    %v3038 = vpack.i.b16 %v3019, %v3019
    %v3039 = vlaneseq
    %v3040 = vshrl.u32 %v3039, 7
    %v3041 = vsub.s32 0, %v3040
    %v3042 = vrot.slane %v3037, %v3041
    %v3043 = vlaneseq
    %v3044 = vshrl.u32 %v3043, 7
    %v3045 = vsub.s32 0, %v3044
    %v3046 = vrot.slane %v3038, %v3045
    %3047 = vrot.lane.b32.xlu0 %v3042, 64
    %v3048 = vpop.permute.xlu0 %3047
    %3049 = vrot.lane.b32.xlu0 %v3046, 64
    %v3050 = vpop.permute.xlu0 %3049
    %v3051 = vpack.i.b16 %v3011, %v3011
    %v3052 = vpack.i.b16 %v3020, %v3020
    %v3053 = vlaneseq
    %v3054 = vshrl.u32 %v3053, 7
    %v3055 = vsub.s32 0, %v3054
    %v3056 = vrot.slane %v3051, %v3055
    %v3057 = vlaneseq
    %v3058 = vshrl.u32 %v3057, 7
    %v3059 = vsub.s32 0, %v3058
    %v3060 = vrot.slane %v3052, %v3059
    %v3061 = vpack.i.b16 %v3012, %v3012
    %v3062 = vpack.i.b16 %v3021, %v3021
    %v3063 = vlaneseq
    %v3064 = vshrl.u32 %v3063, 7
    %v3065 = vsub.s32 0, %v3064
    %v3066 = vrot.slane %v3061, %v3065
    %v3067 = vlaneseq
    %v3068 = vshrl.u32 %v3067, 7
    %v3069 = vsub.s32 0, %v3068
    %v3070 = vrot.slane %v3062, %v3069
    %3071 = vrot.lane.b32.xlu0 %v3066, 64
    %v3072 = vpop.permute.xlu0 %3071
    %3073 = vrot.lane.b32.xlu0 %v3070, 64
    %v3074 = vpop.permute.xlu0 %3073
    %v3075 = vpack.i.b16 %v3013, %v3013
    %v3076 = vpack.i.b16 %v3022, %v3022
    %v3077 = vlaneseq
    %v3078 = vshrl.u32 %v3077, 7
    %v3079 = vsub.s32 0, %v3078
    %v3080 = vrot.slane %v3075, %v3079
    %v3081 = vlaneseq
    %v3082 = vshrl.u32 %v3081, 7
    %v3083 = vsub.s32 0, %v3082
    %v3084 = vrot.slane %v3076, %v3083
    %v3085 = vpack.i.b16 %v3014, %v3014
    %v3086 = vpack.i.b16 %v3023, %v3023
    %v3087 = vlaneseq
    %v3088 = vshrl.u32 %v3087, 7
    %v3089 = vsub.s32 0, %v3088
    %v3090 = vrot.slane %v3085, %v3089
    %v3091 = vlaneseq
    %v3092 = vshrl.u32 %v3091, 7
    %v3093 = vsub.s32 0, %v3092
    %v3094 = vrot.slane %v3086, %v3093
    %3095 = vrot.lane.b32.xlu0 %v3090, 64
    %v3096 = vpop.permute.xlu0 %3095
    %3097 = vrot.lane.b32.xlu0 %v3094, 64
    %v3098 = vpop.permute.xlu0 %3097
    %v3099 = vpack.i.b16 %v3015, %v3015
    %v3100 = vpack.i.b16 %v3024, %v3024
    %v3101 = vlaneseq
    %v3102 = vshrl.u32 %v3101, 7
    %v3103 = vsub.s32 0, %v3102
    %v3104 = vrot.slane %v3099, %v3103
    %v3105 = vlaneseq
    %v3106 = vshrl.u32 %v3105, 7
    %v3107 = vsub.s32 0, %v3106
    %v3108 = vrot.slane %v3100, %v3107
    %v3109 = vpack.i.b16 %v3016, %v3016
    %v3110 = vpack.i.b16 %v3025, %v3025
    %v3111 = vlaneseq
    %v3112 = vshrl.u32 %v3111, 7
    %v3113 = vsub.s32 0, %v3112
    %v3114 = vrot.slane %v3109, %v3113
    %v3115 = vlaneseq
    %v3116 = vshrl.u32 %v3115, 7
    %v3117 = vsub.s32 0, %v3116
    %v3118 = vrot.slane %v3110, %v3117
    %3119 = vrot.lane.b32.xlu0 %v3114, 64
    %v3120 = vpop.permute.xlu0 %3119
    %3121 = vrot.lane.b32.xlu0 %v3118, 64
    %v3122 = vpop.permute.xlu0 %3121
    %v3123 = vpack.i.b16 %v3017, %v3017
    %v3124 = vpack.i.b16 %v3026, %v3026
    %v3125 = vlaneseq
    %v3126 = vshrl.u32 %v3125, 7
    %v3127 = vsub.s32 0, %v3126
    %v3128 = vrot.slane %v3123, %v3127
    %v3129 = vlaneseq
    %v3130 = vshrl.u32 %v3129, 7
    %v3131 = vsub.s32 0, %v3130
    %v3132 = vrot.slane %v3124, %v3131
    %v3135 = vsel %vm231, %v3032, %v3048
    %v3138 = vsel %vm231, %v3036, %v3050
    %v3141 = vsel %vm231, %v3056, %v3072
    %v3144 = vsel %vm231, %v3060, %v3074
    %v3147 = vsel %vm231, %v3080, %v3096
    %v3150 = vsel %vm231, %v3084, %v3098
    %v3153 = vsel %vm231, %v3104, %v3120
    %v3156 = vsel %vm231, %v3108, %v3122
    %v3157 = vld [vmem:[%s5] sm:$0xf]
    %v3158 = vld [vmem:[%s5 + $0x4] sm:$0xf]
    %v3159 = vld [vmem:[%s5 + $0x8] sm:$0xf]
    %v3160 = vld [vmem:[%s5 + $0xc] sm:$0xf]
    %v3161 = vld [vmem:[%s5 + $0x10] sm:$0xf]
    %v3162 = vld [vmem:[%s5 + $0x14] sm:$0xf]
    %v3163 = vld [vmem:[%s5 + $0x18] sm:$0xf]
    %v3164 = vld [vmem:[%s5 + $0x1c] sm:$0xf]
    %v3165 = vld [vmem:[%s5 + $0x20] sm:$0xf]
    %v3166 = vld [vmem:[%s5 + $0x24] sm:$0xf]
    %v3167 = vld [vmem:[%s5 + $0x28] sm:$0xf]
    %v3168 = vld [vmem:[%s5 + $0x2c] sm:$0xf]
    %v3169 = vld [vmem:[%s5 + $0x30] sm:$0xf]
    %v3170 = vld [vmem:[%s5 + $0x34] sm:$0xf]
    %v3171 = vld [vmem:[%s5 + $0x38] sm:$0xf]
    %v3172 = vld [vmem:[%s5 + $0x3c] sm:$0xf]
    %v3173 = vld [vmem:[%s5 + $0x40] sm:$0xf]
    %v3174 = vld [vmem:[%s5 + $0x44] sm:$0xf]
    %v3175 = vld [vmem:[%s5 + $0x48] sm:$0xf]
    %v3176 = vld [vmem:[%s5 + $0x4c] sm:$0xf]
    %v3177 = vld [vmem:[%s5 + $0x50] sm:$0xf]
    %v3178 = vld [vmem:[%s5 + $0x54] sm:$0xf]
    %v3179 = vld [vmem:[%s5 + $0x58] sm:$0xf]
    %v3180 = vld [vmem:[%s5 + $0x5c] sm:$0xf]
    %v3181 = vld [vmem:[%s5 + $0x60] sm:$0xf]
    %v3182 = vld [vmem:[%s5 + $0x64] sm:$0xf]
    %v3183 = vld [vmem:[%s5 + $0x68] sm:$0xf]
    %v3184 = vld [vmem:[%s5 + $0x6c] sm:$0xf]
    %v3185 = vld [vmem:[%s5 + $0x70] sm:$0xf]
    %v3186 = vld [vmem:[%s5 + $0x74] sm:$0xf]
    %v3187 = vld [vmem:[%s5 + $0x78] sm:$0xf]
    %v3188 = vld [vmem:[%s5 + $0x7c] sm:$0xf]
    %v3189 = vld [vmem:[%s5 + $0x80] sm:$0xf]
    %v3190 = vld [vmem:[%s5 + $0x84] sm:$0xf]
    %v3191 = vld [vmem:[%s5 + $0x88] sm:$0xf]
    %v3192 = vld [vmem:[%s5 + $0x8c] sm:$0xf]
    %v3193 = vld [vmem:[%s5 + $0x90] sm:$0xf]
    %v3194 = vld [vmem:[%s5 + $0x94] sm:$0xf]
    %v3195 = vld [vmem:[%s5 + $0x98] sm:$0xf]
    %v3196 = vld [vmem:[%s5 + $0x9c] sm:$0xf]
    %v3197 = vld [vmem:[%s5 + $0xa0] sm:$0xf]
    %v3198 = vld [vmem:[%s5 + $0xa4] sm:$0xf]
    %v3199 = vld [vmem:[%s5 + $0xa8] sm:$0xf]
    %v3200 = vld [vmem:[%s5 + $0xac] sm:$0xf]
    %v3201 = vld [vmem:[%s5 + $0xb0] sm:$0xf]
    %v3202 = vld [vmem:[%s5 + $0xb4] sm:$0xf]
    %v3203 = vld [vmem:[%s5 + $0xb8] sm:$0xf]
    %v3204 = vld [vmem:[%s5 + $0xbc] sm:$0xf]
    %v3205 = vld [vmem:[%s5 + $0xc0] sm:$0xf]
    %v3206 = vld [vmem:[%s5 + $0xc4] sm:$0xf]
    %v3207 = vld [vmem:[%s5 + $0xc8] sm:$0xf]
    %v3208 = vld [vmem:[%s5 + $0xcc] sm:$0xf]
    %v3209 = vld [vmem:[%s5 + $0xd0] sm:$0xf]
    %v3210 = vld [vmem:[%s5 + $0xd4] sm:$0xf]
    %v3211 = vld [vmem:[%s5 + $0xd8] sm:$0xf]
    %v3212 = vld [vmem:[%s5 + $0xdc] sm:$0xf]
    %v3213 = vld [vmem:[%s5 + $0xe0] sm:$0xf]
    %v3214 = vld [vmem:[%s5 + $0xe4] sm:$0xf]
    %v3215 = vld [vmem:[%s5 + $0xe8] sm:$0xf]
    %v3216 = vld [vmem:[%s5 + $0xec] sm:$0xf]
    %v3217 = vld [vmem:[%s5 + $0xf0] sm:$0xf]
    %v3218 = vld [vmem:[%s5 + $0xf4] sm:$0xf]
    %v3219 = vld [vmem:[%s5 + $0xf8] sm:$0xf]
    %v3220 = vld [vmem:[%s5 + $0xfc] sm:$0xf]
    %v3221 = vld [vmem:[%s5 + $0x100] sm:$0xf]
    %v3222 = vld [vmem:[%s5 + $0x104] sm:$0xf]
    %v3223 = vld [vmem:[%s5 + $0x108] sm:$0xf]
    %v3224 = vld [vmem:[%s5 + $0x10c] sm:$0xf]
    %v3225 = vld [vmem:[%s5 + $0x110] sm:$0xf]
    %v3226 = vld [vmem:[%s5 + $0x114] sm:$0xf]
    %v3227 = vld [vmem:[%s5 + $0x118] sm:$0xf]
    %v3228 = vld [vmem:[%s5 + $0x11c] sm:$0xf]
    %v3229 = vld [vmem:[%s6] sm:$0x1]
    %v3231 = vlaneseq
    %v3232 = vshrl.u32 %v3231, 7
    %v3233 = vsub.s32 0, %v3232
    %v3234 = vrot.slane %v3229, %v3233
    %v3244 = vunpack.c.l.b16 %v3135
    %v3245 = vunpack.c.l.b16 %v3141
    %v3246 = vunpack.c.l.b16 %v3147
    %v3247 = vunpack.c.l.b16 %v3153
    %v3248 = vunpack.c.l.b16 %v3128
    %v3249 = vunpack.c.l.b16 %v3138
    %v3250 = vunpack.c.l.b16 %v3144
    %v3251 = vunpack.c.l.b16 %v3150
    %v3252 = vunpack.c.l.b16 %v3156
    %v3253 = vunpack.c.l.b16 %v3132
    %v3254 = vrot.slane %v3249, 7
    %v3255 = vsel %vm1072, %v3254, %v3244
    %v3256 = vrot.slane %v3250, 7
    %v3257 = vsel %vm1072, %v3256, %v3245
    %v3258 = vrot.slane %v3251, 7
    %v3259 = vsel %vm1072, %v3258, %v3246
    %v3260 = vrot.slane %v3252, 7
    %v3261 = vsel %vm1072, %v3260, %v3247
    %v3262 = vrot.slane %v3253, 7
    %v3263 = vsel %vm1072, %v3262, %v3248
    %v3264 = vpack.c.b16 %v3255, %v3255
    %v3265 = vpack.c.b16 %v3257, %v3257
    %v3266 = vpack.c.b16 %v3259, %v3259
    %v3267 = vpack.c.b16 %v3261, %v3261
    %v3268 = vpack.c.b16 %v3263, %v3263
    %v3345 = vunpack.c.l.b16 %v3157
    %v3346 = vunpack.c.l.b16 %v3158
    %v3347 = vunpack.c.l.b16 %v3159
    %v3348 = vunpack.c.l.b16 %v3160
    %v3349 = vunpack.c.l.b16 %v3161
    %v3350 = vunpack.c.l.b16 %v3162
    %v3351 = vunpack.c.l.b16 %v3163
    %v3352 = vunpack.c.l.b16 %v3164
    %v3353 = vunpack.c.l.b16 %v3165
    %v3354 = vunpack.c.l.b16 %v3166
    %v3355 = vunpack.c.l.b16 %v3167
    %v3356 = vunpack.c.l.b16 %v3168
    %v3357 = vunpack.c.l.b16 %v3169
    %v3358 = vunpack.c.l.b16 %v3170
    %v3359 = vunpack.c.l.b16 %v3171
    %v3360 = vunpack.c.l.b16 %v3172
    %v3361 = vunpack.c.l.b16 %v3173
    %v3362 = vunpack.c.l.b16 %v3174
    %v3363 = vunpack.c.l.b16 %v3175
    %v3364 = vunpack.c.l.b16 %v3176
    %v3365 = vunpack.c.l.b16 %v3177
    %v3366 = vunpack.c.l.b16 %v3178
    %v3367 = vunpack.c.l.b16 %v3179
    %v3368 = vunpack.c.l.b16 %v3180
    %v3369 = vunpack.c.l.b16 %v3181
    %v3370 = vunpack.c.l.b16 %v3182
    %v3371 = vunpack.c.l.b16 %v3183
    %v3372 = vunpack.c.l.b16 %v3184
    %v3373 = vunpack.c.l.b16 %v3185
    %v3374 = vunpack.c.l.b16 %v3186
    %v3375 = vunpack.c.l.b16 %v3187
    %v3376 = vunpack.c.l.b16 %v3188
    %v3377 = vunpack.c.l.b16 %v3189
    %v3378 = vunpack.c.l.b16 %v3190
    %v3379 = vunpack.c.l.b16 %v3191
    %v3380 = vunpack.c.l.b16 %v3192
    %v3381 = vunpack.c.l.b16 %v3193
    %v3382 = vunpack.c.l.b16 %v3194
    %v3383 = vunpack.c.l.b16 %v3195
    %v3384 = vunpack.c.l.b16 %v3196
    %v3385 = vunpack.c.l.b16 %v3197
    %v3386 = vunpack.c.l.b16 %v3198
    %v3387 = vunpack.c.l.b16 %v3199
    %v3388 = vunpack.c.l.b16 %v3200
    %v3389 = vunpack.c.l.b16 %v3201
    %v3390 = vunpack.c.l.b16 %v3202
    %v3391 = vunpack.c.l.b16 %v3203
    %v3392 = vunpack.c.l.b16 %v3204
    %v3393 = vunpack.c.l.b16 %v3205
    %v3394 = vunpack.c.l.b16 %v3206
    %v3395 = vunpack.c.l.b16 %v3207
    %v3396 = vunpack.c.l.b16 %v3208
    %v3397 = vunpack.c.l.b16 %v3209
    %v3398 = vunpack.c.l.b16 %v3210
    %v3399 = vunpack.c.l.b16 %v3211
    %v3400 = vunpack.c.l.b16 %v3212
    %v3401 = vunpack.c.l.b16 %v3213
    %v3402 = vunpack.c.l.b16 %v3214
    %v3403 = vunpack.c.l.b16 %v3215
    %v3404 = vunpack.c.l.b16 %v3216
    %v3405 = vunpack.c.l.b16 %v3217
    %v3406 = vunpack.c.l.b16 %v3218
    %v3407 = vunpack.c.l.b16 %v3219
    %v3408 = vunpack.c.l.b16 %v3220
    %v3409 = vunpack.c.l.b16 %v3221
    %v3410 = vunpack.c.l.b16 %v3222
    %v3411 = vunpack.c.l.b16 %v3223
    %v3412 = vunpack.c.l.b16 %v3224
    %v3413 = vunpack.c.l.b16 %v3225
    %v3414 = vunpack.c.l.b16 %v3226
    %v3415 = vunpack.c.l.b16 %v3227
    %v3416 = vunpack.c.l.b16 %v3228
    %v3417 = vpack.c.b16 %v3346, %v3345
    %v3418 = vpack.c.b16 %v3348, %v3347
    %v3419 = vpack.c.b16 %v3350, %v3349
    %v3420 = vpack.c.b16 %v3352, %v3351
    %v3421 = vpack.c.b16 %v3354, %v3353
    %v3422 = vpack.c.b16 %v3356, %v3355
    %v3423 = vpack.c.b16 %v3358, %v3357
    %v3424 = vpack.c.b16 %v3360, %v3359
    %v3425 = vpack.c.b16 %v3362, %v3361
    %v3426 = vpack.c.b16 %v3364, %v3363
    %v3427 = vpack.c.b16 %v3366, %v3365
    %v3428 = vpack.c.b16 %v3368, %v3367
    %v3429 = vpack.c.b16 %v3370, %v3369
    %v3430 = vpack.c.b16 %v3372, %v3371
    %v3431 = vpack.c.b16 %v3374, %v3373
    %v3432 = vpack.c.b16 %v3376, %v3375
    %v3433 = vpack.c.b16 %v3378, %v3377
    %v3434 = vpack.c.b16 %v3380, %v3379
    %v3435 = vpack.c.b16 %v3382, %v3381
    %v3436 = vpack.c.b16 %v3384, %v3383
    %v3437 = vpack.c.b16 %v3386, %v3385
    %v3438 = vpack.c.b16 %v3388, %v3387
    %v3439 = vpack.c.b16 %v3390, %v3389
    %v3440 = vpack.c.b16 %v3392, %v3391
    %v3441 = vpack.c.b16 %v3394, %v3393
    %v3442 = vpack.c.b16 %v3396, %v3395
    %v3443 = vpack.c.b16 %v3398, %v3397
    %v3444 = vpack.c.b16 %v3400, %v3399
    %v3445 = vpack.c.b16 %v3402, %v3401
    %v3446 = vpack.c.b16 %v3404, %v3403
    %v3447 = vpack.c.b16 %v3406, %v3405
    %v3448 = vpack.c.b16 %v3408, %v3407
    %v3449 = vpack.c.b16 %v3410, %v3409
    %v3450 = vpack.c.b16 %v3412, %v3411
    %v3451 = vpack.c.b16 %v3414, %v3413
    %v3452 = vpack.c.b16 %v3416, %v3415
    %v3490 = vsel %vm231, %v3268, 0
    %3492 = vmatprep.subr.bf16.mxu0 0
    %3493 = vmatpush1.bf16.msra.mxu0 %v3417
    %3494 = vmatprep.subr.bf16.mxu0 0
    %3495 = vmatpush1.bf16.msra.mxu0 %v3418
    %3496 = vmatprep.subr.bf16.mxu0 0
    %3497 = vmatpush1.bf16.msra.mxu0 %v3419
    %3498 = vmatprep.subr.bf16.mxu0 0
    %3499 = vmatpush1.bf16.msra.mxu0 %v3420
    %3500 = vmatprep.subr.bf16.mxu0 0
    %3501 = vmatpush1.bf16.msra.mxu0 %v3421
    %3502 = vmatprep.subr.bf16.mxu0 0
    %3503 = vmatpush1.bf16.msra.mxu0 %v3422
    %3504 = vmatprep.subr.bf16.mxu0 0
    %3505 = vmatpush1.bf16.msra.mxu0 %v3423
    %3506 = vmatprep.subr.bf16.mxu0 0
    %3507 = vmatpush1.bf16.msra.mxu0 %v3424
    %3508 = vmatprep.subr.bf16.mxu0 0
    %3509 = vmatpush1.bf16.msra.mxu0 %v3425
    %3510 = vmatprep.subr.bf16.mxu0 0
    %3511 = vmatpush1.bf16.msra.mxu0 %v3426
    %3512 = vmatprep.subr.bf16.mxu0 0
    %3513 = vmatpush1.bf16.msra.mxu0 %v3427
    %3514 = vmatprep.subr.bf16.mxu0 0
    %3515 = vmatpush1.bf16.msra.mxu0 %v3428
    %3516 = vmatprep.subr.bf16.mxu0 0
    %3517 = vmatpush1.bf16.msra.mxu0 %v3429
    %3518 = vmatprep.subr.bf16.mxu0 0
    %3519 = vmatpush1.bf16.msra.mxu0 %v3430
    %3520 = vmatprep.subr.bf16.mxu0 0
    %3521 = vmatpush1.bf16.msra.mxu0 %v3431
    %3522 = vmatprep.subr.bf16.mxu0 0
    %3523 = vmatpush1.bf16.msra.mxu0 %v3432
    %3524 = vmatprep.mubr.bf16.mxu0 %v3265
    %3525 = vmatmul.mubr.bf16.gmra.mrb[0].mxu0 %v3264
    %v3526 = vpop.f32.mrb[0].mxu0
    %v3527 = vadd.f32 %v3234, %v3526
    %v3528 = vpop.f32.mrb[0].mxu0
    %v3529 = vpop.f32.mrb[0].mxu0
    %v3530 = vpop.f32.mrb[0].mxu0
    %3531 = vdwg.mxu0
    %3532 = vmatprep.subr.bf16.mxu0 0
    %3533 = vmatpush1.bf16.msra.mxu0 %v3433
    %3534 = vmatprep.subr.bf16.mxu0 0
    %3535 = vmatpush1.bf16.msra.mxu0 %v3434
    %3536 = vmatprep.subr.bf16.mxu0 0
    %3537 = vmatpush1.bf16.msra.mxu0 %v3435
    %3538 = vmatprep.subr.bf16.mxu0 0
    %3539 = vmatpush1.bf16.msra.mxu0 %v3436
    %3540 = vmatprep.subr.bf16.mxu0 0
    %3541 = vmatpush1.bf16.msra.mxu0 %v3437
    %3542 = vmatprep.subr.bf16.mxu0 0
    %3543 = vmatpush1.bf16.msra.mxu0 %v3438
    %3544 = vmatprep.subr.bf16.mxu0 0
    %3545 = vmatpush1.bf16.msra.mxu0 %v3439
    %3546 = vmatprep.subr.bf16.mxu0 0
    %3547 = vmatpush1.bf16.msra.mxu0 %v3440
    %3548 = vmatprep.subr.bf16.mxu0 0
    %3549 = vmatpush1.bf16.msra.mxu0 %v3441
    %3550 = vmatprep.subr.bf16.mxu0 0
    %3551 = vmatpush1.bf16.msra.mxu0 %v3442
    %3552 = vmatprep.subr.bf16.mxu0 0
    %3553 = vmatpush1.bf16.msra.mxu0 %v3443
    %3554 = vmatprep.subr.bf16.mxu0 0
    %3555 = vmatpush1.bf16.msra.mxu0 %v3444
    %3556 = vmatprep.subr.bf16.mxu0 0
    %3557 = vmatpush1.bf16.msra.mxu0 %v3445
    %3558 = vmatprep.subr.bf16.mxu0 0
    %3559 = vmatpush1.bf16.msra.mxu0 %v3446
    %3560 = vmatprep.subr.bf16.mxu0 0
    %3561 = vmatpush1.bf16.msra.mxu0 %v3447
    %3562 = vmatprep.subr.bf16.mxu0 0
    %3563 = vmatpush1.bf16.msra.mxu0 %v3448
    %3564 = vmatprep.mubr.bf16.mxu0 %v3267
    %3565 = vmatmul.mubr.bf16.gmra.mrb[0].mxu0 %v3266
    %v3566 = vpop.f32.mrb[0].mxu0
    %v3567 = vadd.f32 %v3527, %v3566
    %v3568 = vpop.f32.mrb[0].mxu0
    %v3569 = vpop.f32.mrb[0].mxu0
    %v3570 = vpop.f32.mrb[0].mxu0
    %3571 = vdwg.mxu0
    %3572 = vmatprep.subr.bf16.mxu0 0
    %3573 = vmatpush1.bf16.msra.mxu0 %v3449
    %3574 = vmatprep.subr.bf16.mxu0 0
    %3575 = vmatpush1.bf16.msra.mxu0 %v3450
    %3576 = vmatprep.subr.bf16.mxu0 0
    %3577 = vmatpush1.bf16.msra.mxu0 %v3451
    %3578 = vmatprep.subr.bf16.mxu0 0
    %3579 = vmatpush1.bf16.msra.mxu0 %v3452
    %3580 = vmatprep.subr.bf16.mxu0 0
    %3581 = vmatpush1.bf16.msra.mxu0 0
    %3582 = vmatprep.subr.bf16.mxu0 0
    %3583 = vmatpush1.bf16.msra.mxu0 0
    %3584 = vmatprep.subr.bf16.mxu0 0
    %3585 = vmatpush1.bf16.msra.mxu0 0
    %3586 = vmatprep.subr.bf16.mxu0 0
    %3587 = vmatpush1.bf16.msra.mxu0 0
    %3588 = vmatprep.subr.bf16.mxu0 0
    %3589 = vmatpush1.bf16.msra.mxu0 0
    %3590 = vmatprep.subr.bf16.mxu0 0
    %3591 = vmatpush1.bf16.msra.mxu0 0
    %3592 = vmatprep.subr.bf16.mxu0 0
    %3593 = vmatpush1.bf16.msra.mxu0 0
    %3594 = vmatprep.subr.bf16.mxu0 0
    %3595 = vmatpush1.bf16.msra.mxu0 0
    %3596 = vmatprep.subr.bf16.mxu0 0
    %3597 = vmatpush1.bf16.msra.mxu0 0
    %3598 = vmatprep.subr.bf16.mxu0 0
    %3599 = vmatpush1.bf16.msra.mxu0 0
    %3600 = vmatprep.subr.bf16.mxu0 0
    %3601 = vmatpush1.bf16.msra.mxu0 0
    %3602 = vmatprep.subr.bf16.mxu0 0
    %3603 = vmatpush1.bf16.msra.mxu0 0
    %3604 = vmatprep.mubr.bf16.mxu0 0
    %3605 = vmatmul.mubr.bf16.gmra.mrb[0].mxu0 %v3490
    %v3606 = vpop.f32.mrb[0].mxu0
    %v3607 = vadd.f32 %v3567, %v3606
    %v3608 = vpop.f32.mrb[0].mxu0
    %v3609 = vpop.f32.mrb[0].mxu0
    %v3610 = vpop.f32.mrb[0].mxu0
    %3611 = vdwg.mxu0
    %v3612 = vmax.f32 %v3607, 0.0
    %v3613 = vpack.c.bf16 %v3612, %v3612
    %v3614 = vld [vmem:[%s7] sm:$0xf]
    %v3615 = vld [vmem:[%s7 + $0x4] sm:$0xf]
    %v3616 = vld [vmem:[%s7 + $0x8] sm:$0xf]
    %v3617 = vld [vmem:[%s7 + $0xc] sm:$0xf]
    %v3618 = vld [vmem:[%s7 + $0x10] sm:$0xf]
    %v3619 = vld [vmem:[%s7 + $0x14] sm:$0xf]
    %v3620 = vld [vmem:[%s7 + $0x18] sm:$0xf]
    %v3621 = vld [vmem:[%s7 + $0x1c] sm:$0xf]
    %v3622 = vld [vmem:[%s8] sm:$0x1]
    %v3624 = vlaneseq
    %v3625 = vshrl.u32 %v3624, 7
    %v3626 = vsub.s32 0, %v3625
    %v3627 = vrot.slane %v3622, %v3626
    %v3637 = vunpack.c.l.b16 %v3614
    %v3638 = vunpack.c.l.b16 %v3615
    %v3639 = vunpack.c.l.b16 %v3616
    %v3640 = vunpack.c.l.b16 %v3617
    %v3641 = vunpack.c.l.b16 %v3618
    %v3642 = vunpack.c.l.b16 %v3619
    %v3643 = vunpack.c.l.b16 %v3620
    %v3644 = vunpack.c.l.b16 %v3621
    %v3645 = vpack.c.b16 %v3638, %v3637
    %v3646 = vpack.c.b16 %v3640, %v3639
    %v3647 = vpack.c.b16 %v3642, %v3641
    %v3648 = vpack.c.b16 %v3644, %v3643
    %v3654 = vsel %vm231, %v3613, 0
    %3656 = vmatprep.subr.bf16.mxu0 0
    %3657 = vmatpush1.bf16.msra.mxu0 %v3645
    %3658 = vmatprep.subr.bf16.mxu0 0
    %3659 = vmatpush1.bf16.msra.mxu0 %v3646
    %3660 = vmatprep.subr.bf16.mxu0 0
    %3661 = vmatpush1.bf16.msra.mxu0 %v3647
    %3662 = vmatprep.subr.bf16.mxu0 0
    %3663 = vmatpush1.bf16.msra.mxu0 %v3648
    %3664 = vmatprep.subr.bf16.mxu0 0
    %3665 = vmatpush1.bf16.msra.mxu0 0
    %3666 = vmatprep.subr.bf16.mxu0 0
    %3667 = vmatpush1.bf16.msra.mxu0 0
    %3668 = vmatprep.subr.bf16.mxu0 0
    %3669 = vmatpush1.bf16.msra.mxu0 0
    %3670 = vmatprep.subr.bf16.mxu0 0
    %3671 = vmatpush1.bf16.msra.mxu0 0
    %3672 = vmatprep.subr.bf16.mxu0 0
    %3673 = vmatpush1.bf16.msra.mxu0 0
    %3674 = vmatprep.subr.bf16.mxu0 0
    %3675 = vmatpush1.bf16.msra.mxu0 0
    %3676 = vmatprep.subr.bf16.mxu0 0
    %3677 = vmatpush1.bf16.msra.mxu0 0
    %3678 = vmatprep.subr.bf16.mxu0 0
    %3679 = vmatpush1.bf16.msra.mxu0 0
    %3680 = vmatprep.subr.bf16.mxu0 0
    %3681 = vmatpush1.bf16.msra.mxu0 0
    %3682 = vmatprep.subr.bf16.mxu0 0
    %3683 = vmatpush1.bf16.msra.mxu0 0
    %3684 = vmatprep.subr.bf16.mxu0 0
    %3685 = vmatpush1.bf16.msra.mxu0 0
    %3686 = vmatprep.subr.bf16.mxu0 0
    %3687 = vmatpush1.bf16.msra.mxu0 0
    %3688 = vmatprep.mubr.bf16.mxu0 0
    %3689 = vmatmul.mubr.bf16.gmra.mrb[0].mxu0 %v3654
    %v3690 = vpop.f32.mrb[0].mxu0
    %v3691 = vadd.f32 %v3627, %v3690
    %v3692 = vpop.f32.mrb[0].mxu0
    %v3693 = vpop.f32.mrb[0].mxu0
    %v3694 = vpop.f32.mrb[0].mxu0
    %3695 = vdwg.mxu0
    %v3696 = vmax.f32 %v3691, 0.0
    %v3697 = vpack.c.bf16 %v3696, %v3696
    %v3698 = vld [vmem:[%s9] sm:$0xf]
    %v3699 = vld [vmem:[%s9 + $0x4] sm:$0xf]
    %v3700 = vld [vmem:[%s10] sm:$0x1]
    %v3702 = vlaneseq
    %v3703 = vshrl.u32 %v3702, 7
    %v3704 = vsub.s32 0, %v3703
    %v3705 = vrot.slane %v3700, %v3704
    %v3709 = vunpack.c.l.b16 %v3698
    %v3710 = vunpack.c.l.b16 %v3699
    %v3711 = vpack.c.b16 %v3710, %v3709
    %vm3713 = vcmask 130048
    %v3715 = vsel %vm3713, %v3697, 0
    %3717 = vmatprep.subr.bf16.mxu0 0
    %3718 = vmatpush1.bf16.msra.mxu0 %v3711
    %3719 = vmatprep.subr.bf16.mxu0 0
    %3720 = vmatpush1.bf16.msra.mxu0 0
    %3721 = vmatprep.subr.bf16.mxu0 0
    %3722 = vmatpush1.bf16.msra.mxu0 0
    %3723 = vmatprep.subr.bf16.mxu0 0
    %3724 = vmatpush1.bf16.msra.mxu0 0
    %3725 = vmatprep.subr.bf16.mxu0 0
    %3726 = vmatpush1.bf16.msra.mxu0 0
    %3727 = vmatprep.subr.bf16.mxu0 0
    %3728 = vmatpush1.bf16.msra.mxu0 0
    %3729 = vmatprep.subr.bf16.mxu0 0
    %3730 = vmatpush1.bf16.msra.mxu0 0
    %3731 = vmatprep.subr.bf16.mxu0 0
    %3732 = vmatpush1.bf16.msra.mxu0 0
    %3733 = vmatprep.subr.bf16.mxu0 0
    %3734 = vmatpush1.bf16.msra.mxu0 0
    %3735 = vmatprep.subr.bf16.mxu0 0
    %3736 = vmatpush1.bf16.msra.mxu0 0
    %3737 = vmatprep.subr.bf16.mxu0 0
    %3738 = vmatpush1.bf16.msra.mxu0 0
    %3739 = vmatprep.subr.bf16.mxu0 0
    %3740 = vmatpush1.bf16.msra.mxu0 0
    %3741 = vmatprep.subr.bf16.mxu0 0
    %3742 = vmatpush1.bf16.msra.mxu0 0
    %3743 = vmatprep.subr.bf16.mxu0 0
    %3744 = vmatpush1.bf16.msra.mxu0 0
    %3745 = vmatprep.subr.bf16.mxu0 0
    %3746 = vmatpush1.bf16.msra.mxu0 0
    %3747 = vmatprep.subr.bf16.mxu0 0
    %3748 = vmatpush1.bf16.msra.mxu0 0
    %3749 = vmatprep.mubr.bf16.mxu0 0
    %3750 = vmatmul.mubr.bf16.gmra.mrb[0].mxu0 %v3715
    %v3751 = vpop.f32.mrb[0].mxu0
    %v3752 = vadd.f32 %v3705, %v3751
    %v3753 = vpop.f32.mrb[0].mxu0
    %v3754 = vpop.f32.mrb[0].mxu0
    %v3755 = vpop.f32.mrb[0].mxu0
    %3756 = vdwg.mxu0
    %v3757 = vmax.f32 %v3752, 0.0
    %vm3758 = vcmask 58368
    %3759 = vst.msk [vmem:[#allocation2] sm:$0x3] %vm3758, %v3757
    // Predicated region
    $region46: #{dconv_forward.1} parent=1 // pred_check
      _
    $region47: #{dconv_forward.1} parent=1 // pred_check_branch
      %3761 = sbr.rel (0) target = $region49
    $region48: #{dconv_forward.1} parent=1 // pred_region
      %s3763 = ssub.s32 32, 32
      %3764 = vsyncadd [#allocation3], %s3763
      %s3766 = sshll.u32 [#allocation2], 4
      %s3767 = int_to_ptr.vmem [resolvable:$true] %s3766
      %3769 = dma.vmem_to_hbm [thread:$0]  %s3767, 32, %s11, [#allocation3]
    $region49: #{dconv_forward.1} parent=1 // pred_fallthru
      _
    // Predicated region
    $region50: #{dconv_forward.1} parent=1 // pred_check
      _
    $region51: #{dconv_forward.1} parent=1 // pred_check_branch
      %3771 = sbr.rel (0) target = $region53
    $region52: #{dconv_forward.1} parent=1 // pred_region
      %3772 = dma.done [#allocation3], 32
    $region53: #{dconv_forward.1} parent=1 // pred_fallthru
      _
    %3773 = vsyncpa [#allocation3], 1

</llo_original>
